<compile_context>
chip_gen: v6e
topology: v6e:2x2x1
jax: 0.10.0
libtpu: 0.0.40
codegen_flags: <defaults>
</compile_context>

<pallas_src>
import jax
import jax.numpy as jnp
from jax.experimental import pallas as pl
from jax.experimental.pallas import tpu as pltpu


def _round_up(n, m):
    return ((n + m - 1) // m) * m


def _leaky_relu(x, slope=0.2):
    return jnp.where(x > 0, x, slope * x)


def discriminator_kernel(x_ref,
                         w1_ref, b1_ref,
                         w2_ref, b2_ref,
                         w3_ref, b3_ref,
                         w4t_ref, b4_ref,
                         o_ref):
    # x tile: [D, bb] bf16 (batch on lanes).  Weights: PyTorch [out, in] bf16,
    # except fc4 which is pre-transposed to [in, 1] f32 for the VPU tail.
    x = x_ref[...]

    h = jnp.dot(w1_ref[...], x, preferred_element_type=jnp.float32)
    h = _leaky_relu(h + b1_ref[...])                       # (1024, bb) f32

    h = jnp.dot(w2_ref[...], h.astype(jnp.bfloat16),
                preferred_element_type=jnp.float32)
    h = _leaky_relu(h + b2_ref[...])                       # (512, bb) f32

    h = jnp.dot(w3_ref[...], h.astype(jnp.bfloat16),
                preferred_element_type=jnp.float32)
    h = _leaky_relu(h + b3_ref[...])                       # (256, bb) f32

    # fc4 has one output unit -> VPU multiply + XLU sublane reduce (keeps the
    # MXU out of the tail); sigmoid via EUP exp + approximate reciprocal.
    logits = jnp.sum(h * w4t_ref[...], axis=0, keepdims=True) + b4_ref[...]
    sig = pl.reciprocal(1.0 + jnp.exp(-logits), approx=True)   # (1, bb)
    o_ref[...] = sig.astype(o_ref.dtype)


def discriminator_forward(x, params, *, block_b=256):
    """x: [B, D] float32.  params: dict name -> (w [out,in], b [out,1]), f32."""
    B, D = x.shape
    w1, b1 = params["fc1"]
    w2, b2 = params["fc2"]
    w3, b3 = params["fc3"]
    w4, b4 = params["fc4"]

    # Batch tile: multiple of 128 so the batch (lane) axis tiles cleanly, and
    # at least 2 grid steps when the batch allows so both v7x TCs get work.
    bb = _round_up(max(128, min(block_b, pl.cdiv(B, 2))), 128)
    num_blocks = pl.cdiv(B, bb)
    B_pad = num_blocks * bb

    # Feature-major activations (batch on lanes), padded to whole tiles.
    xT = x.T.astype(jnp.bfloat16)
    if B_pad != B:
        xT = jnp.pad(xT, ((0, 0), (0, B_pad - B)))

    # bf16 weights (f32 accumulation in-kernel); fc4 weight stays f32 (VPU)
    # and is pre-transposed to (in, 1) so it broadcasts over the lane axis.
    w1b = w1.astype(jnp.bfloat16)
    w2b = w2.astype(jnp.bfloat16)
    w3b = w3.astype(jnp.bfloat16)
    w4t = w4.T                                   # (256, 1) f32
    b4r = b4.reshape(1, 1)                       # (1, 1)  f32

    operands = (xT, w1b, b1, w2b, b2, w3b, b3, w4t, b4r)

    flops = 2 * B_pad * (D * 1024 + 1024 * 512 + 512 * 256 + 256)
    bytes_accessed = int(
        xT.size * 2 + B_pad * 4
        + sum(int(a.size) * jnp.dtype(a.dtype).itemsize
              for a in operands[1:]))

    # Grid-invariant weights/biases: whole-array VMEM residents (no per-step
    # DMA, no double-buffering).
    vmem_full = pl.BlockSpec(memory_space=pltpu.MemorySpace.VMEM)

    out = pl.pallas_call(
        discriminator_kernel,
        out_shape=jax.ShapeDtypeStruct((1, B_pad), jnp.float32),
        grid_spec=pltpu.PrefetchScalarGridSpec(
            num_scalar_prefetch=0,
            grid=(num_blocks,),
            in_specs=[
                pl.BlockSpec((D, bb), lambda i: (0, i)),   # x^T batch tile
                vmem_full, vmem_full,                      # fc1 w, b
                vmem_full, vmem_full,                      # fc2 w, b
                vmem_full, vmem_full,                      # fc3 w, b
                vmem_full, vmem_full,                      # fc4 w^T, b
            ],
            out_specs=pl.BlockSpec((1, bb), lambda i: (0, i)),
        ),
        compiler_params=pltpu.CompilerParams(
            dimension_semantics=("parallel",),
            vmem_limit_bytes=32 * 1024 * 1024),
        cost_estimate=pl.CostEstimate(
            flops=flops,
            transcendentals=B_pad,
            bytes_accessed=bytes_accessed),
    )(*operands)

    # Lane-dense (1, B_pad) -> (B, 1), dropping batch padding.
    return out.reshape(B_pad, 1)[:B]


def init_params(key, d_input_dim):
    """Deterministic init mimicking PyTorch nn.Linear default init; weights in
    PyTorch layout [out_features, in_features], biases as [out_features, 1]."""
    dims = [d_input_dim, 1024, 1024 // 2, 1024 // 4, 1]
    names = ["fc1", "fc2", "fc3", "fc4"]
    params = {}
    for name, fan_in, fan_out in zip(names, dims[:-1], dims[1:]):
        key, kw, kb = jax.random.split(key, 3)
        bound = 1.0 / (fan_in ** 0.5)
        w = jax.random.uniform(kw, (fan_out, fan_in), jnp.float32, -bound, bound)
        b = jax.random.uniform(kb, (fan_out, 1), jnp.float32, -bound, bound)
        params[name] = (w, b)
    return params


def reference_forward(x, params):
    """Pure-JAX f32 reference matching the PyTorch module semantics."""
    h = x
    for name in ["fc1", "fc2", "fc3"]:
        w, b = params[name]
        h = h @ w.T + b[:, 0]
        h = jnp.where(h > 0, h, 0.2 * h)
    w, b = params["fc4"]
    return jax.nn.sigmoid(h @ w.T + b[:, 0])


if __name__ == "__main__":
    B = 200          # deliberately not a multiple of the batch tile
    D_INPUT = 64

    key = jax.random.PRNGKey(0)
    key, kx = jax.random.split(key)
    x = jax.random.normal(kx, (B, D_INPUT), dtype=jnp.float32)
    params = init_params(key, D_INPUT)

    out = jax.block_until_ready(discriminator_forward(x, params))
    ref = reference_forward(x, params)

    assert out.shape == (B, 1), out.shape
    err = float(jnp.max(jnp.abs(out - ref)))
    # bf16 matmuls with f32 accumulation vs f32 reference.
    assert err < 5e-2, f"max abs err {err}"

    print("KERNEL_OK")
</pallas_src>

<mosaic_0001>
module attributes {stable_mosaic.version = 11 : i64} {
  func.func @discriminator_kernel(%arg0: i32, %arg1: memref<64x128xbf16, #tpu.memory_space<vmem>>, %arg2: memref<1024x64xbf16, #tpu.memory_space<vmem>>, %arg3: memref<1024x1xf32, #tpu.memory_space<vmem>>, %arg4: memref<512x1024xbf16, #tpu.memory_space<vmem>>, %arg5: memref<512x1xf32, #tpu.memory_space<vmem>>, %arg6: memref<256x512xbf16, #tpu.memory_space<vmem>>, %arg7: memref<256x1xf32, #tpu.memory_space<vmem>>, %arg8: memref<256x1xf32, #tpu.memory_space<vmem>>, %arg9: memref<1x1xf32, #tpu.memory_space<vmem>>, %arg10: memref<1x128xf32, #tpu.memory_space<vmem>>) attributes {dimension_semantics = [#tpu.dimension_semantics<parallel>], iteration_bounds = array<i64: 2>, scalar_prefetch = 0 : i64, scratch_operands = 0 : i64, tpu.core_type = #tpu.core_type<tc>, window_params = [{transform_indices = @transform_0, window_bounds = array<i64: 64, 128>}, {pipeline_mode = #tpu.pipeline_mode<synchronous>, transform_indices = @transform_1, window_bounds = array<i64: 1024, 64>}, {pipeline_mode = #tpu.pipeline_mode<synchronous>, transform_indices = @transform_2, window_bounds = array<i64: 1024, 1>}, {pipeline_mode = #tpu.pipeline_mode<synchronous>, transform_indices = @transform_3, window_bounds = array<i64: 512, 1024>}, {pipeline_mode = #tpu.pipeline_mode<synchronous>, transform_indices = @transform_4, window_bounds = array<i64: 512, 1>}, {pipeline_mode = #tpu.pipeline_mode<synchronous>, transform_indices = @transform_5, window_bounds = array<i64: 256, 512>}, {pipeline_mode = #tpu.pipeline_mode<synchronous>, transform_indices = @transform_6, window_bounds = array<i64: 256, 1>}, {pipeline_mode = #tpu.pipeline_mode<synchronous>, transform_indices = @transform_7, window_bounds = array<i64: 256, 1>}, {pipeline_mode = #tpu.pipeline_mode<synchronous>, transform_indices = @transform_8, window_bounds = array<i64: 1, 1>}, {transform_indices = @transform_9, window_bounds = array<i64: 1, 128>}]} {
    %c0 = arith.constant 0 : index
    %c0_0 = arith.constant 0 : index
    %0 = vector.load %arg1[%c0, %c0_0] : memref<64x128xbf16, #tpu.memory_space<vmem>>, vector<64x128xbf16>
    %c0_1 = arith.constant 0 : index
    %c0_2 = arith.constant 0 : index
    %1 = vector.load %arg2[%c0_1, %c0_2] : memref<1024x64xbf16, #tpu.memory_space<vmem>>, vector<1024x64xbf16>
    %cst = arith.constant dense<0.000000e+00> : vector<1024x128xf32>
    %2 = tpu.matmul %1, %0, %cst {dimension_numbers = #tpu.dot_dimension_numbers<[1], [0], [0], [1], [0, 0, 1, 1], [], []>} : vector<1024x64xbf16>, vector<64x128xbf16>, vector<1024x128xf32> -> vector<1024x128xf32>
    %c0_3 = arith.constant 0 : index
    %c0_4 = arith.constant 0 : index
    %3 = vector.load %arg3[%c0_3, %c0_4] : memref<1024x1xf32, #tpu.memory_space<vmem>>, vector<1024x1xf32>
    %4 = vector.broadcast %3 : vector<1024x1xf32> to vector<1024x128xf32>
    %5 = arith.addf %2, %4 : vector<1024x128xf32>
    %cst_5 = arith.constant 0.000000e+00 : f32
    %6 = vector.broadcast %cst_5 : f32 to vector<1024x128xf32>
    %7 = arith.cmpf ogt, %5, %6 : vector<1024x128xf32>
    %cst_6 = arith.constant 2.000000e-01 : f32
    %8 = vector.broadcast %cst_6 : f32 to vector<1024x128xf32>
    %9 = arith.mulf %8, %5 : vector<1024x128xf32>
    %10 = arith.select %7, %5, %9 : vector<1024x128xi1>, vector<1024x128xf32>
    %c0_7 = arith.constant 0 : index
    %c0_8 = arith.constant 0 : index
    %11 = vector.load %arg4[%c0_7, %c0_8] : memref<512x1024xbf16, #tpu.memory_space<vmem>>, vector<512x1024xbf16>
    %12 = arith.truncf %10 : vector<1024x128xf32> to vector<1024x128xbf16>
    %cst_9 = arith.constant dense<0.000000e+00> : vector<512x128xf32>
    %13 = tpu.matmul %11, %12, %cst_9 {dimension_numbers = #tpu.dot_dimension_numbers<[1], [0], [0], [1], [0, 0, 1, 1], [], []>} : vector<512x1024xbf16>, vector<1024x128xbf16>, vector<512x128xf32> -> vector<512x128xf32>
    %c0_10 = arith.constant 0 : index
    %c0_11 = arith.constant 0 : index
    %14 = vector.load %arg5[%c0_10, %c0_11] : memref<512x1xf32, #tpu.memory_space<vmem>>, vector<512x1xf32>
    %15 = vector.broadcast %14 : vector<512x1xf32> to vector<512x128xf32>
    %16 = arith.addf %13, %15 : vector<512x128xf32>
    %cst_12 = arith.constant 0.000000e+00 : f32
    %17 = vector.broadcast %cst_12 : f32 to vector<512x128xf32>
    %18 = arith.cmpf ogt, %16, %17 : vector<512x128xf32>
    %cst_13 = arith.constant 2.000000e-01 : f32
    %19 = vector.broadcast %cst_13 : f32 to vector<512x128xf32>
    %20 = arith.mulf %19, %16 : vector<512x128xf32>
    %21 = arith.select %18, %16, %20 : vector<512x128xi1>, vector<512x128xf32>
    %c0_14 = arith.constant 0 : index
    %c0_15 = arith.constant 0 : index
    %22 = vector.load %arg6[%c0_14, %c0_15] : memref<256x512xbf16, #tpu.memory_space<vmem>>, vector<256x512xbf16>
    %23 = arith.truncf %21 : vector<512x128xf32> to vector<512x128xbf16>
    %cst_16 = arith.constant dense<0.000000e+00> : vector<256x128xf32>
    %24 = tpu.matmul %22, %23, %cst_16 {dimension_numbers = #tpu.dot_dimension_numbers<[1], [0], [0], [1], [0, 0, 1, 1], [], []>} : vector<256x512xbf16>, vector<512x128xbf16>, vector<256x128xf32> -> vector<256x128xf32>
    %c0_17 = arith.constant 0 : index
    %c0_18 = arith.constant 0 : index
    %25 = vector.load %arg7[%c0_17, %c0_18] : memref<256x1xf32, #tpu.memory_space<vmem>>, vector<256x1xf32>
    %26 = vector.broadcast %25 : vector<256x1xf32> to vector<256x128xf32>
    %27 = arith.addf %24, %26 : vector<256x128xf32>
    %cst_19 = arith.constant 0.000000e+00 : f32
    %28 = vector.broadcast %cst_19 : f32 to vector<256x128xf32>
    %29 = arith.cmpf ogt, %27, %28 : vector<256x128xf32>
    %cst_20 = arith.constant 2.000000e-01 : f32
    %30 = vector.broadcast %cst_20 : f32 to vector<256x128xf32>
    %31 = arith.mulf %30, %27 : vector<256x128xf32>
    %32 = arith.select %29, %27, %31 : vector<256x128xi1>, vector<256x128xf32>
    %c0_21 = arith.constant 0 : index
    %c0_22 = arith.constant 0 : index
    %33 = vector.load %arg8[%c0_21, %c0_22] : memref<256x1xf32, #tpu.memory_space<vmem>>, vector<256x1xf32>
    %34 = vector.broadcast %33 : vector<256x1xf32> to vector<256x128xf32>
    %35 = arith.mulf %32, %34 : vector<256x128xf32>
    %cst_23 = arith.constant dense<0.000000e+00> : vector<128xf32>
    %36 = vector.multi_reduction <add>, %35, %cst_23 [0] : vector<256x128xf32> to vector<128xf32>
    %37 = vector.shape_cast %36 : vector<128xf32> to vector<1x128xf32>
    %c0_24 = arith.constant 0 : index
    %c0_25 = arith.constant 0 : index
    %38 = vector.load %arg9[%c0_24, %c0_25] : memref<1x1xf32, #tpu.memory_space<vmem>>, vector<1x1xf32>
    %39 = vector.broadcast %38 : vector<1x1xf32> to vector<1x128xf32>
    %40 = arith.addf %37, %39 : vector<1x128xf32>
    %cst_26 = arith.constant 0.000000e+00 : f32
    %41 = vector.broadcast %cst_26 : f32 to vector<1x128xf32>
    %42 = arith.subf %41, %40 : vector<1x128xf32>
    %43 = math.exp %42 : vector<1x128xf32>
    %cst_27 = arith.constant 1.000000e+00 : f32
    %44 = vector.broadcast %cst_27 : f32 to vector<1x128xf32>
    %45 = arith.addf %44, %43 : vector<1x128xf32>
    %46 = tpu.reciprocal %45 {approx = true} : vector<1x128xf32> -> vector<1x128xf32>
    %c0_28 = arith.constant 0 : index
    %c0_29 = arith.constant 0 : index
    %47 = vector.load %arg10[%c0_28, %c0_29] : memref<1x128xf32, #tpu.memory_space<vmem>>, vector<1x128xf32>
    tpu.vector_store %arg10[%c0_28, %c0_29], %46 {strides = array<i32>} : memref<1x128xf32, #tpu.memory_space<vmem>>, vector<1x128xf32>,
    return
  }
  func.func @transform_0(%arg0: i32) -> (i32, i32) {
    %c0_i32 = arith.constant 0 : i32
    %c0_i32_0 = arith.constant 0 : i32
    return %c0_i32, %arg0 : i32, i32
  }
  func.func @transform_1(%arg0: i32) -> (i32, i32) {
    %c0_i32 = arith.constant 0 : i32
    %c0_i32_0 = arith.constant 0 : i32
    %c0_i32_1 = arith.constant 0 : i32
    return %c0_i32, %c0_i32_0 : i32, i32
  }
  func.func @transform_2(%arg0: i32) -> (i32, i32) {
    %c0_i32 = arith.constant 0 : i32
    %c0_i32_0 = arith.constant 0 : i32
    %c0_i32_1 = arith.constant 0 : i32
    return %c0_i32, %c0_i32_0 : i32, i32
  }
  func.func @transform_3(%arg0: i32) -> (i32, i32) {
    %c0_i32 = arith.constant 0 : i32
    %c0_i32_0 = arith.constant 0 : i32
    %c0_i32_1 = arith.constant 0 : i32
    return %c0_i32, %c0_i32_0 : i32, i32
  }
  func.func @transform_4(%arg0: i32) -> (i32, i32) {
    %c0_i32 = arith.constant 0 : i32
    %c0_i32_0 = arith.constant 0 : i32
    %c0_i32_1 = arith.constant 0 : i32
    return %c0_i32, %c0_i32_0 : i32, i32
  }
  func.func @transform_5(%arg0: i32) -> (i32, i32) {
    %c0_i32 = arith.constant 0 : i32
    %c0_i32_0 = arith.constant 0 : i32
    %c0_i32_1 = arith.constant 0 : i32
    return %c0_i32, %c0_i32_0 : i32, i32
  }
  func.func @transform_6(%arg0: i32) -> (i32, i32) {
    %c0_i32 = arith.constant 0 : i32
    %c0_i32_0 = arith.constant 0 : i32
    %c0_i32_1 = arith.constant 0 : i32
    return %c0_i32, %c0_i32_0 : i32, i32
  }
  func.func @transform_7(%arg0: i32) -> (i32, i32) {
    %c0_i32 = arith.constant 0 : i32
    %c0_i32_0 = arith.constant 0 : i32
    %c0_i32_1 = arith.constant 0 : i32
    return %c0_i32, %c0_i32_0 : i32, i32
  }
  func.func @transform_8(%arg0: i32) -> (i32, i32) {
    %c0_i32 = arith.constant 0 : i32
    %c0_i32_0 = arith.constant 0 : i32
    %c0_i32_1 = arith.constant 0 : i32
    return %c0_i32, %c0_i32_0 : i32, i32
  }
  func.func @transform_9(%arg0: i32) -> (i32, i32) {
    %c0_i32 = arith.constant 0 : i32
    %c0_i32_0 = arith.constant 0 : i32
    return %c0_i32, %arg0 : i32, i32
  }
}

</mosaic_0001>

<llo_original>
// kernel: tpu_custom_call.1
$region0: #{tpu_custom_call.1}
  #allocation0 [shape = 'u32[]', space=smem, size = 0x4, offset = 0x4, fixed_abs, tag = 'smem constant byte address 0x4 - core index']
  #allocation1 [shape = 'u32[144,128]{1,0:T(1,128)}', space=vmem, size = 0x12000, scoped, tag = 'internal scratch']
  #allocation2 [shape = 'f32[1,1]{1,0:T(1,128)S(1)}', space=vmem, size = 0x200, scoped, tag = 'scoped memory for tpu_custom_call.1']
  %s0 = inlined_call_operand.vmem [shape: bf16[64,256], index: 0, kind: input, shape index: {}]
  %s1 = inlined_call_operand.vmem [shape: bf16[1024,64], index: 1, kind: input, shape index: {}]
  %s2 = inlined_call_operand.vmem [shape: f32[1024,1], index: 2, kind: input, shape index: {}]
  %s3 = inlined_call_operand.vmem [shape: bf16[512,1024], index: 3, kind: input, shape index: {}]
  %s4 = inlined_call_operand.vmem [shape: f32[512,1], index: 4, kind: input, shape index: {}]
  %s5 = inlined_call_operand.vmem [shape: bf16[256,512], index: 5, kind: input, shape index: {}]
  %s6 = inlined_call_operand.vmem [shape: f32[256,1], index: 6, kind: input, shape index: {}]
  %s7 = inlined_call_operand.vmem [shape: f32[256,1], index: 7, kind: input, shape index: {}]
  %s8 = inlined_call_operand.<no memory space> [shape: f32[1,1], index: 8, kind: input, shape index: {}]
  %s9 = inlined_call_operand.hbm [shape: f32[1,256], index: 9, kind: output, shape index: {}]
  %s10 = sld [smem:[#allocation0]]
  $region110: #{tpu_custom_call.1} parent=0
    _
  %s12 = ssub.s32 1, %s10
  %s13 = scalar_select 0, %s12, %s10
  %v14 = vstv %s8
  %15 = vst [vmem:[#allocation2] sm:$0x1] %v14
  $region1: #{tpu_custom_call.1} parent=0
    #allocation3 [shape = 'u8[32768]{0}', space=vmem, size = 0x8000, scoped, tag = 'input window, operand 0']
    #allocation4 [shape = 'u8[1024]{0}', space=vmem, size = 0x400, scoped, tag = 'output window, operand 0']
    #allocation5 [shape = 's32[2]{0}', space=sflag, size = 0x8, scoped, tag = 'scoped memory for tpu_custom_call.1']
    %16 = vsyncpa [#allocation5], 0
    %s17 = scalar_lea.sflag [#allocation5], 1
    %18 = vsyncpa %s17, 0
    loop: start=0, step=1, limit=4
    $region2: #{tpu_custom_call.1} parent=1 // loop_pre_header
      _
    $region3: #{tpu_custom_call.1} parent=1 // loop_header
      %s20 = sphi 0, %s24
      %p21 = scmp.ge.s32.totalorder %s20, 4
      %s30 = sphi 0, %s32
      %s33 = sphi 0, %s30
      %s34 = sphi 0, %s33
      %s50 = sphi 0, %s34
      %s54 = sphi 0, %s54
      %s56 = sphi 0, %s54
      %s57 = sphi 0, %s56
      %s71 = sphi 0, %s57
      %s75 = sphi 0, %s75
      %s77 = sphi 0, %s75
      %s78 = sphi 0, %s77
      %s92 = sphi 0, %s78
      %s96 = sphi 0, %s96
      %s98 = sphi 0, %s96
      %s99 = sphi 0, %s98
      %s113 = sphi 0, %s99
      %s117 = sphi 0, %s117
      %s119 = sphi 0, %s117
      %s120 = sphi 0, %s119
      %s134 = sphi 0, %s120
      %s138 = sphi 0, %s138
      %s140 = sphi 0, %s138
      %s141 = sphi 0, %s140
      %s155 = sphi 0, %s141
      %s159 = sphi 0, %s159
      %s161 = sphi 0, %s159
      %s162 = sphi 0, %s161
      %s176 = sphi 0, %s162
      %s180 = sphi 0, %s180
      %s182 = sphi 0, %s180
      %s183 = sphi 0, %s182
      %s197 = sphi 0, %s183
      %s201 = sphi 0, %s201
      %s203 = sphi 0, %s201
      %s204 = sphi 0, %s203
      %s218 = sphi 0, %s204
      %s224 = sphi 0, %s226
      %s227 = sphi 0, %s224
      %s228 = sphi 0, %s227
      %s244 = sphi 0, %s228
    $region4: #{tpu_custom_call.1} parent=1 // loop_header_branch
      %23 = sbr.rel (%p21) target = $region8
    $region5: #{tpu_custom_call.1} parent=1 // loop_body
      %s25 = ssub.s32 %s20, 1
      %s26 = ssub.s32 %s20, 2
      %s27 = sadd.s32 %s20, 1
      %s28 = ssub.s32 %s20, %s27
      %p29 = scmp.eq.s32.totalorder %s28, 0
      %s31 = sadd.s32 %s30, 1
      %s32 = scalar_select %p29, %s30, %s31
      %p35 = pneg %p29
      %p36 = scmp.eq.s32.totalorder %s20, 1
      %p37 = por %p35, %p36
      %p38 = scmp.ne.s32.totalorder %s30, %s33
      %p39 = scmp.eq.s32.totalorder %s20, 0
      %p40 = por %p38, %p39
      %p41 = scmp.ne.s32.totalorder %s30, %s33
      %p42 = scmp.eq.s32.totalorder %s25, 1
      %p43 = por %p41, %p42
      %p44 = scmp.ne.s32.totalorder %s33, %s34
      %p45 = scmp.eq.s32.totalorder %s25, 0
      %p46 = por %p44, %p45
      %p47 = scmp.ne.s32.totalorder %s33, %s34
      %p48 = scmp.eq.s32.totalorder %s26, 1
      %p49 = por %p47, %p48
      %p51 = scmp.ne.s32.totalorder %s34, %s50
      %p52 = scmp.eq.s32.totalorder %s26, 0
      %p53 = por %p51, %p52
      %s55 = sadd.s32 %s54, 1
      %p58 = scmp.eq.s32.totalorder %s20, 1
      %p59 = scmp.ne.s32.totalorder %s54, %s56
      %p60 = scmp.eq.s32.totalorder %s20, 0
      %p61 = por %p59, %p60
      %p62 = scmp.ne.s32.totalorder %s54, %s56
      %p63 = scmp.eq.s32.totalorder %s25, 1
      %p64 = por %p62, %p63
      %p65 = scmp.ne.s32.totalorder %s56, %s57
      %p66 = scmp.eq.s32.totalorder %s25, 0
      %p67 = por %p65, %p66
      %p68 = scmp.ne.s32.totalorder %s56, %s57
      %p69 = scmp.eq.s32.totalorder %s26, 1
      %p70 = por %p68, %p69
      %p72 = scmp.ne.s32.totalorder %s57, %s71
      %p73 = scmp.eq.s32.totalorder %s26, 0
      %p74 = por %p72, %p73
      %s76 = sadd.s32 %s75, 1
      %p79 = scmp.eq.s32.totalorder %s20, 1
      %p80 = scmp.ne.s32.totalorder %s75, %s77
      %p81 = scmp.eq.s32.totalorder %s20, 0
      %p82 = por %p80, %p81
      %p83 = scmp.ne.s32.totalorder %s75, %s77
      %p84 = scmp.eq.s32.totalorder %s25, 1
      %p85 = por %p83, %p84
      %p86 = scmp.ne.s32.totalorder %s77, %s78
      %p87 = scmp.eq.s32.totalorder %s25, 0
      %p88 = por %p86, %p87
      %p89 = scmp.ne.s32.totalorder %s77, %s78
      %p90 = scmp.eq.s32.totalorder %s26, 1
      %p91 = por %p89, %p90
      %p93 = scmp.ne.s32.totalorder %s78, %s92
      %p94 = scmp.eq.s32.totalorder %s26, 0
      %p95 = por %p93, %p94
      %s97 = sadd.s32 %s96, 1
      %p100 = scmp.eq.s32.totalorder %s20, 1
      %p101 = scmp.ne.s32.totalorder %s96, %s98
      %p102 = scmp.eq.s32.totalorder %s20, 0
      %p103 = por %p101, %p102
      %p104 = scmp.ne.s32.totalorder %s96, %s98
      %p105 = scmp.eq.s32.totalorder %s25, 1
      %p106 = por %p104, %p105
      %p107 = scmp.ne.s32.totalorder %s98, %s99
      %p108 = scmp.eq.s32.totalorder %s25, 0
      %p109 = por %p107, %p108
      %p110 = scmp.ne.s32.totalorder %s98, %s99
      %p111 = scmp.eq.s32.totalorder %s26, 1
      %p112 = por %p110, %p111
      %p114 = scmp.ne.s32.totalorder %s99, %s113
      %p115 = scmp.eq.s32.totalorder %s26, 0
      %p116 = por %p114, %p115
      %s118 = sadd.s32 %s117, 1
      %p121 = scmp.eq.s32.totalorder %s20, 1
      %p122 = scmp.ne.s32.totalorder %s117, %s119
      %p123 = scmp.eq.s32.totalorder %s20, 0
      %p124 = por %p122, %p123
      %p125 = scmp.ne.s32.totalorder %s117, %s119
      %p126 = scmp.eq.s32.totalorder %s25, 1
      %p127 = por %p125, %p126
      %p128 = scmp.ne.s32.totalorder %s119, %s120
      %p129 = scmp.eq.s32.totalorder %s25, 0
      %p130 = por %p128, %p129
      %p131 = scmp.ne.s32.totalorder %s119, %s120
      %p132 = scmp.eq.s32.totalorder %s26, 1
      %p133 = por %p131, %p132
      %p135 = scmp.ne.s32.totalorder %s120, %s134
      %p136 = scmp.eq.s32.totalorder %s26, 0
      %p137 = por %p135, %p136
      %s139 = sadd.s32 %s138, 1
      %p142 = scmp.eq.s32.totalorder %s20, 1
      %p143 = scmp.ne.s32.totalorder %s138, %s140
      %p144 = scmp.eq.s32.totalorder %s20, 0
      %p145 = por %p143, %p144
      %p146 = scmp.ne.s32.totalorder %s138, %s140
      %p147 = scmp.eq.s32.totalorder %s25, 1
      %p148 = por %p146, %p147
      %p149 = scmp.ne.s32.totalorder %s140, %s141
      %p150 = scmp.eq.s32.totalorder %s25, 0
      %p151 = por %p149, %p150
      %p152 = scmp.ne.s32.totalorder %s140, %s141
      %p153 = scmp.eq.s32.totalorder %s26, 1
      %p154 = por %p152, %p153
      %p156 = scmp.ne.s32.totalorder %s141, %s155
      %p157 = scmp.eq.s32.totalorder %s26, 0
      %p158 = por %p156, %p157
      %s160 = sadd.s32 %s159, 1
      %p163 = scmp.eq.s32.totalorder %s20, 1
      %p164 = scmp.ne.s32.totalorder %s159, %s161
      %p165 = scmp.eq.s32.totalorder %s20, 0
      %p166 = por %p164, %p165
      %p167 = scmp.ne.s32.totalorder %s159, %s161
      %p168 = scmp.eq.s32.totalorder %s25, 1
      %p169 = por %p167, %p168
      %p170 = scmp.ne.s32.totalorder %s161, %s162
      %p171 = scmp.eq.s32.totalorder %s25, 0
      %p172 = por %p170, %p171
      %p173 = scmp.ne.s32.totalorder %s161, %s162
      %p174 = scmp.eq.s32.totalorder %s26, 1
      %p175 = por %p173, %p174
      %p177 = scmp.ne.s32.totalorder %s162, %s176
      %p178 = scmp.eq.s32.totalorder %s26, 0
      %p179 = por %p177, %p178
      %s181 = sadd.s32 %s180, 1
      %p184 = scmp.eq.s32.totalorder %s20, 1
      %p185 = scmp.ne.s32.totalorder %s180, %s182
      %p186 = scmp.eq.s32.totalorder %s20, 0
      %p187 = por %p185, %p186
      %p188 = scmp.ne.s32.totalorder %s180, %s182
      %p189 = scmp.eq.s32.totalorder %s25, 1
      %p190 = por %p188, %p189
      %p191 = scmp.ne.s32.totalorder %s182, %s183
      %p192 = scmp.eq.s32.totalorder %s25, 0
      %p193 = por %p191, %p192
      %p194 = scmp.ne.s32.totalorder %s182, %s183
      %p195 = scmp.eq.s32.totalorder %s26, 1
      %p196 = por %p194, %p195
      %p198 = scmp.ne.s32.totalorder %s183, %s197
      %p199 = scmp.eq.s32.totalorder %s26, 0
      %p200 = por %p198, %p199
      %s202 = sadd.s32 %s201, 1
      %p205 = scmp.eq.s32.totalorder %s20, 1
      %p206 = scmp.ne.s32.totalorder %s201, %s203
      %p207 = scmp.eq.s32.totalorder %s20, 0
      %p208 = por %p206, %p207
      %p209 = scmp.ne.s32.totalorder %s201, %s203
      %p210 = scmp.eq.s32.totalorder %s25, 1
      %p211 = por %p209, %p210
      %p212 = scmp.ne.s32.totalorder %s203, %s204
      %p213 = scmp.eq.s32.totalorder %s25, 0
      %p214 = por %p212, %p213
      %p215 = scmp.ne.s32.totalorder %s203, %s204
      %p216 = scmp.eq.s32.totalorder %s26, 1
      %p217 = por %p215, %p216
      %p219 = scmp.ne.s32.totalorder %s204, %s218
      %p220 = scmp.eq.s32.totalorder %s26, 0
      %p221 = por %p219, %p220
      %s222 = ssub.s32 %s20, %s27
      %p223 = scmp.eq.s32.totalorder %s222, 0
      %s225 = sadd.s32 %s224, 1
      %s226 = scalar_select %p223, %s224, %s225
      %p229 = pneg %p223
      %p230 = scmp.eq.s32.totalorder %s20, 1
      %p231 = por %p229, %p230
      %p232 = scmp.ne.s32.totalorder %s224, %s227
      %p233 = scmp.eq.s32.totalorder %s20, 0
      %p234 = por %p232, %p233
      %p235 = scmp.ne.s32.totalorder %s224, %s227
      %p236 = scmp.eq.s32.totalorder %s25, 1
      %p237 = por %p235, %p236
      %p238 = scmp.ne.s32.totalorder %s227, %s228
      %p239 = scmp.eq.s32.totalorder %s25, 0
      %p240 = por %p238, %p239
      %p241 = scmp.ne.s32.totalorder %s227, %s228
      %p242 = scmp.eq.s32.totalorder %s26, 1
      %p243 = por %p241, %p242
      %p245 = scmp.ne.s32.totalorder %s228, %s244
      %p246 = scmp.eq.s32.totalorder %s26, 0
      %p247 = por %p245, %p246
      %p248 = scmp.le.s32.totalorder 1, %s20
      %p249 = scmp.lt.s32.totalorder %s20, 3
      %p250 = pnand %p248, %p249
      %p251 = pneg %p250
      // Predicated region
      $region9: #{tpu_custom_call.1} parent=5 // pred_check
        _
      $region10: #{tpu_custom_call.1} parent=5 // pred_check_branch
        %253 = sbr.rel (%p250) target = $region12
      $region11: #{tpu_custom_call.1} parent=5 // pred_region
        %s254 = ssub.s32 %s20, 1
        // Predicated region
        $region13: #{tpu_custom_call.1} parent=11 // pred_check
          %p255 = pneg %p67
        $region14: #{tpu_custom_call.1} parent=11 // pred_check_branch
          %257 = sbr.rel (%p255) target = $region16
        $region15: #{tpu_custom_call.1} parent=11 // pred_region
          _
        $region16: #{tpu_custom_call.1} parent=11 // pred_fallthru
          _
        // Predicated region
        $region17: #{tpu_custom_call.1} parent=11 // pred_check
          %p258 = pneg %p88
        $region18: #{tpu_custom_call.1} parent=11 // pred_check_branch
          %260 = sbr.rel (%p258) target = $region20
        $region19: #{tpu_custom_call.1} parent=11 // pred_region
          _
        $region20: #{tpu_custom_call.1} parent=11 // pred_fallthru
          _
        // Predicated region
        $region21: #{tpu_custom_call.1} parent=11 // pred_check
          %p261 = pneg %p109
        $region22: #{tpu_custom_call.1} parent=11 // pred_check_branch
          %263 = sbr.rel (%p261) target = $region24
        $region23: #{tpu_custom_call.1} parent=11 // pred_region
          _
        $region24: #{tpu_custom_call.1} parent=11 // pred_fallthru
          _
        // Predicated region
        $region25: #{tpu_custom_call.1} parent=11 // pred_check
          %p264 = pneg %p130
        $region26: #{tpu_custom_call.1} parent=11 // pred_check_branch
          %266 = sbr.rel (%p264) target = $region28
        $region27: #{tpu_custom_call.1} parent=11 // pred_region
          _
        $region28: #{tpu_custom_call.1} parent=11 // pred_fallthru
          _
        // Predicated region
        $region29: #{tpu_custom_call.1} parent=11 // pred_check
          %p267 = pneg %p151
        $region30: #{tpu_custom_call.1} parent=11 // pred_check_branch
          %269 = sbr.rel (%p267) target = $region32
        $region31: #{tpu_custom_call.1} parent=11 // pred_region
          _
        $region32: #{tpu_custom_call.1} parent=11 // pred_fallthru
          _
        // Predicated region
        $region33: #{tpu_custom_call.1} parent=11 // pred_check
          %p270 = pneg %p172
        $region34: #{tpu_custom_call.1} parent=11 // pred_check_branch
          %272 = sbr.rel (%p270) target = $region36
        $region35: #{tpu_custom_call.1} parent=11 // pred_region
          _
        $region36: #{tpu_custom_call.1} parent=11 // pred_fallthru
          _
        // Predicated region
        $region37: #{tpu_custom_call.1} parent=11 // pred_check
          %p273 = pneg %p193
        $region38: #{tpu_custom_call.1} parent=11 // pred_check_branch
          %275 = sbr.rel (%p273) target = $region40
        $region39: #{tpu_custom_call.1} parent=11 // pred_region
          _
        $region40: #{tpu_custom_call.1} parent=11 // pred_fallthru
          _
        // Predicated region
        $region41: #{tpu_custom_call.1} parent=11 // pred_check
          %p276 = pneg %p214
        $region42: #{tpu_custom_call.1} parent=11 // pred_check_branch
          %278 = sbr.rel (%p276) target = $region44
        $region43: #{tpu_custom_call.1} parent=11 // pred_region
          _
        $region44: #{tpu_custom_call.1} parent=11 // pred_fallthru
          _
      $region12: #{tpu_custom_call.1} parent=5 // pred_fallthru
        _
      %p279 = scmp.lt.s32.totalorder %s20, 2
      // Predicated region
      $region45: #{tpu_custom_call.1} parent=5 // pred_check
        %p280 = pneg %p279
      $region46: #{tpu_custom_call.1} parent=5 // pred_check_branch
        %282 = sbr.rel (%p280) target = $region48
      $region47: #{tpu_custom_call.1} parent=5 // pred_region
        // Predicated region
        $region49: #{tpu_custom_call.1} parent=47 // pred_check
          %p283 = pneg %p40
        $region50: #{tpu_custom_call.1} parent=47 // pred_check_branch
          %285 = sbr.rel (%p283) target = $region52
        $region51: #{tpu_custom_call.1} parent=47 // pred_region
          %s286 = sand.u32 %s30, 1
          %s287 = sand.u32 %s30, 1
          %s288 = smul.addr %s287, 32
          %s289 = scalar_lea.vmem [#allocation3], %s288
          %s290 = smul.addr %s20, 4
          %s291 = scalar_lea.vmem %s0, %s290
          // Predicated region
          $region53: #{tpu_custom_call.1} parent=51 // pred_check
            _
          $region54: #{tpu_custom_call.1} parent=51 // pred_check_branch
            %293 = sbr.rel (0) target = $region56
          $region55: #{tpu_custom_call.1} parent=51 // pred_region
            // Predicated region
            $region57: #{tpu_custom_call.1} parent=55 // pred_check
              _
            $region58: #{tpu_custom_call.1} parent=55 // pred_check_branch
              %295 = sbr.rel target = $region60
            $region59: #{tpu_custom_call.1} parent=55 // pred_region
              // Predicated region
              $region72: #{tpu_custom_call.1} parent=59 // pred_check
                _
              $region73: #{tpu_custom_call.1} parent=59 // pred_check_branch
                %325 = sbr.rel (0) target = $region75
              $region74: #{tpu_custom_call.1} parent=59 // pred_region
                loop: start=0, step=1, limit=1
                $region76: #{tpu_custom_call.1} parent=74 // loop_pre_header
                  _
                $region77: #{tpu_custom_call.1} parent=74 // loop_header
                  %s327 = sphi 0, %s331
                  %p328 = scmp.ge.s32.totalorder %s327, 1
                  %s332 = sphi %s291, %s291
                  %s333 = sphi %s289, %s289
                $region78: #{tpu_custom_call.1} parent=74 // loop_header_branch
                  %330 = sbr.rel (%p328) target = $region82
                $region79: #{tpu_custom_call.1} parent=74 // loop_body
                  _
                $region80: #{tpu_custom_call.1} parent=74 // loop_footer
                  %s331 = sadd.s32 1, %s327
                $region81: #{tpu_custom_call.1} parent=74 // loop_footer_branch
                  %326 = sbr.rel target = $region77
                $region82: #{tpu_custom_call.1} parent=74 // loop_exit
                  _
                %s335 = ssub.s32 16, 1
                loop: start=0, step=1, limit=1
                $region83: #{tpu_custom_call.1} parent=74 // loop_pre_header
                  _
                $region84: #{tpu_custom_call.1} parent=74 // loop_header
                  %s337 = sphi 0, %s341
                  %p338 = scmp.ge.s32.totalorder %s337, 1
                  %s342 = sphi %s291, %s291
                  %s343 = sphi %s289, %s289
                $region85: #{tpu_custom_call.1} parent=74 // loop_header_branch
                  %340 = sbr.rel (%p338) target = $region89
                $region86: #{tpu_custom_call.1} parent=74 // loop_body
                  %v344 = vld [vmem:[%s342] sm:%s335]
                  %345 = vst [vmem:[%s343] sm:%s335] %v344
                  %v346 = vld [vmem:[%s342 + $0x8] sm:%s335]
                  %347 = vst [vmem:[%s343 + $0x4] sm:%s335] %v346
                  %v348 = vld [vmem:[%s342 + $0x10] sm:%s335]
                  %349 = vst [vmem:[%s343 + $0x8] sm:%s335] %v348
                  %v350 = vld [vmem:[%s342 + $0x18] sm:%s335]
                  %351 = vst [vmem:[%s343 + $0xc] sm:%s335] %v350
                  %v352 = vld [vmem:[%s342 + $0x20] sm:%s335]
                  %353 = vst [vmem:[%s343 + $0x10] sm:%s335] %v352
                  %v354 = vld [vmem:[%s342 + $0x28] sm:%s335]
                  %355 = vst [vmem:[%s343 + $0x14] sm:%s335] %v354
                  %v356 = vld [vmem:[%s342 + $0x30] sm:%s335]
                  %357 = vst [vmem:[%s343 + $0x18] sm:%s335] %v356
                  %v358 = vld [vmem:[%s342 + $0x38] sm:%s335]
                  %359 = vst [vmem:[%s343 + $0x1c] sm:%s335] %v358
                $region87: #{tpu_custom_call.1} parent=74 // loop_footer
                  %s341 = sadd.s32 1, %s337
                $region88: #{tpu_custom_call.1} parent=74 // loop_footer_branch
                  %336 = sbr.rel target = $region84
                $region89: #{tpu_custom_call.1} parent=74 // loop_exit
                  _
              $region75: #{tpu_custom_call.1} parent=59 // pred_fallthru
                _
            $region60: #{tpu_custom_call.1} parent=55 // pred_fallthru
              _
            // Predicated region
            $region61: #{tpu_custom_call.1} parent=55 // pred_check
              _
            $region62: #{tpu_custom_call.1} parent=55 // pred_check_branch
              %297 = sbr.rel (0) target = $region64
            $region63: #{tpu_custom_call.1} parent=55 // pred_region
              %s299 = ssub.s32 16, 1
              loop: start=0, step=1, limit=1
              $region65: #{tpu_custom_call.1} parent=63 // loop_pre_header
                _
              $region66: #{tpu_custom_call.1} parent=63 // loop_header
                %s301 = sphi 0, %s305
                %p302 = scmp.ge.s32.totalorder %s301, 1
                %s306 = sphi %s291, %s291
                %s307 = sphi %s289, %s289
              $region67: #{tpu_custom_call.1} parent=63 // loop_header_branch
                %304 = sbr.rel (%p302) target = $region71
              $region68: #{tpu_custom_call.1} parent=63 // loop_body
                %v308 = vld [vmem:[%s306] sm:%s299]
                %309 = vst [vmem:[%s307] sm:%s299] %v308
                %v310 = vld [vmem:[%s306 + $0x8] sm:%s299]
                %311 = vst [vmem:[%s307 + $0x4] sm:%s299] %v310
                %v312 = vld [vmem:[%s306 + $0x10] sm:%s299]
                %313 = vst [vmem:[%s307 + $0x8] sm:%s299] %v312
                %v314 = vld [vmem:[%s306 + $0x18] sm:%s299]
                %315 = vst [vmem:[%s307 + $0xc] sm:%s299] %v314
                %v316 = vld [vmem:[%s306 + $0x20] sm:%s299]
                %317 = vst [vmem:[%s307 + $0x10] sm:%s299] %v316
                %v318 = vld [vmem:[%s306 + $0x28] sm:%s299]
                %319 = vst [vmem:[%s307 + $0x14] sm:%s299] %v318
                %v320 = vld [vmem:[%s306 + $0x30] sm:%s299]
                %321 = vst [vmem:[%s307 + $0x18] sm:%s299] %v320
                %v322 = vld [vmem:[%s306 + $0x38] sm:%s299]
                %323 = vst [vmem:[%s307 + $0x1c] sm:%s299] %v322
              $region69: #{tpu_custom_call.1} parent=63 // loop_footer
                %s305 = sadd.s32 1, %s301
              $region70: #{tpu_custom_call.1} parent=63 // loop_footer_branch
                %300 = sbr.rel target = $region66
              $region71: #{tpu_custom_call.1} parent=63 // loop_exit
                _
            $region64: #{tpu_custom_call.1} parent=55 // pred_fallthru
              _
          $region56: #{tpu_custom_call.1} parent=51 // pred_fallthru
            _
          %360 = vnop
        $region52: #{tpu_custom_call.1} parent=47 // pred_fallthru
          _
      $region48: #{tpu_custom_call.1} parent=5 // pred_fallthru
        _
      %p361 = scmp.le.s32.totalorder 1, %s20
      %p362 = scmp.lt.s32.totalorder %s20, 3
      %p363 = pnand %p361, %p362
      %p364 = pneg %p363
      // Predicated region
      $region90: #{tpu_custom_call.1} parent=5 // pred_check
        _
      $region91: #{tpu_custom_call.1} parent=5 // pred_check_branch
        %366 = sbr.rel (%p363) target = $region93
      $region92: #{tpu_custom_call.1} parent=5 // pred_region
        %s367 = ssub.s32 %s20, 1
        %s368 = sand.u32 %s33, 1
        %s369 = sand.u32 %s33, 1
        %s370 = smul.addr %s369, 32
        %s371 = scalar_lea.vmem [#allocation3], %s370
        // Predicated region
        $region94: #{tpu_custom_call.1} parent=92 // pred_check
          %p372 = pneg %p46
        $region95: #{tpu_custom_call.1} parent=92 // pred_check_branch
          %374 = sbr.rel (%p372) target = $region97
        $region96: #{tpu_custom_call.1} parent=92 // pred_region
          _
        $region97: #{tpu_custom_call.1} parent=92 // pred_fallthru
          _
        %s375 = sand.u32 %s33, 1
        %s376 = sand.u32 %s33, 1
        %s377 = smul.addr %s376, 32
        %s378 = scalar_lea.vmem [#allocation3], %s377
        %p379 = pneg %p46
        %p380 = pneg %p43
        %p381 = pneg %p67
        %p382 = pneg %p64
        %p383 = pneg %p88
        %p384 = pneg %p85
        %p385 = pneg %p109
        %p386 = pneg %p106
        %p387 = pneg %p130
        %p388 = pneg %p127
        %p389 = pneg %p151
        %p390 = pneg %p148
        %p391 = pneg %p172
        %p392 = pneg %p169
        %p393 = pneg %p193
        %p394 = pneg %p190
        %p395 = pneg %p214
        %p396 = pneg %p211
        %p397 = pneg %p240
        %p398 = pneg %p237
        %s399 = sand.u32 %s227, 1
        %s400 = scalar_lea.sflag [#allocation5], %s399
        %s401 = sand.u32 %s227, 1
        %s402 = scalar_lea.vmem [#allocation4], %s401
        %v404 = vld [vmem:[%s371] sm:$0xf]
        %v405 = vld [vmem:[%s371 + $0x4] sm:$0xf]
        %v406 = vld [vmem:[%s371 + $0x8] sm:$0xf]
        %v407 = vld [vmem:[%s371 + $0xc] sm:$0xf]
        %v408 = vld [vmem:[%s371 + $0x10] sm:$0xf]
        %v409 = vld [vmem:[%s371 + $0x14] sm:$0xf]
        %v410 = vld [vmem:[%s371 + $0x18] sm:$0xf]
        %v411 = vld [vmem:[%s371 + $0x1c] sm:$0xf]
        %v412 = vld [vmem:[%s1] sm:$0xf]
        %v413 = vld [vmem:[%s1 + $0x4] sm:$0xf]
        %v414 = vld [vmem:[%s1 + $0x8] sm:$0xf]
        %v415 = vld [vmem:[%s1 + $0xc] sm:$0xf]
        %v416 = vld [vmem:[%s1 + $0x10] sm:$0xf]
        %v417 = vld [vmem:[%s1 + $0x14] sm:$0xf]
        %v418 = vld [vmem:[%s1 + $0x18] sm:$0xf]
        %v419 = vld [vmem:[%s1 + $0x1c] sm:$0xf]
        %v420 = vld [vmem:[%s1 + $0x20] sm:$0xf]
        %v421 = vld [vmem:[%s1 + $0x24] sm:$0xf]
        %v422 = vld [vmem:[%s1 + $0x28] sm:$0xf]
        %v423 = vld [vmem:[%s1 + $0x2c] sm:$0xf]
        %v424 = vld [vmem:[%s1 + $0x30] sm:$0xf]
        %v425 = vld [vmem:[%s1 + $0x34] sm:$0xf]
        %v426 = vld [vmem:[%s1 + $0x38] sm:$0xf]
        %v427 = vld [vmem:[%s1 + $0x3c] sm:$0xf]
        %v428 = vld [vmem:[%s1 + $0x40] sm:$0xf]
        %v429 = vld [vmem:[%s1 + $0x44] sm:$0xf]
        %v430 = vld [vmem:[%s1 + $0x48] sm:$0xf]
        %v431 = vld [vmem:[%s1 + $0x4c] sm:$0xf]
        %v432 = vld [vmem:[%s1 + $0x50] sm:$0xf]
        %v433 = vld [vmem:[%s1 + $0x54] sm:$0xf]
        %v434 = vld [vmem:[%s1 + $0x58] sm:$0xf]
        %v435 = vld [vmem:[%s1 + $0x5c] sm:$0xf]
        %v436 = vld [vmem:[%s1 + $0x60] sm:$0xf]
        %v437 = vld [vmem:[%s1 + $0x64] sm:$0xf]
        %v438 = vld [vmem:[%s1 + $0x68] sm:$0xf]
        %v439 = vld [vmem:[%s1 + $0x6c] sm:$0xf]
        %v440 = vld [vmem:[%s1 + $0x70] sm:$0xf]
        %v441 = vld [vmem:[%s1 + $0x74] sm:$0xf]
        %v442 = vld [vmem:[%s1 + $0x78] sm:$0xf]
        %v443 = vld [vmem:[%s1 + $0x7c] sm:$0xf]
        %v444 = vld [vmem:[%s1 + $0x80] sm:$0xf]
        %v445 = vld [vmem:[%s1 + $0x84] sm:$0xf]
        %v446 = vld [vmem:[%s1 + $0x88] sm:$0xf]
        %v447 = vld [vmem:[%s1 + $0x8c] sm:$0xf]
        %v448 = vld [vmem:[%s1 + $0x90] sm:$0xf]
        %v449 = vld [vmem:[%s1 + $0x94] sm:$0xf]
        %v450 = vld [vmem:[%s1 + $0x98] sm:$0xf]
        %v451 = vld [vmem:[%s1 + $0x9c] sm:$0xf]
        %v452 = vld [vmem:[%s1 + $0xa0] sm:$0xf]
        %v453 = vld [vmem:[%s1 + $0xa4] sm:$0xf]
        %v454 = vld [vmem:[%s1 + $0xa8] sm:$0xf]
        %v455 = vld [vmem:[%s1 + $0xac] sm:$0xf]
        %v456 = vld [vmem:[%s1 + $0xb0] sm:$0xf]
        %v457 = vld [vmem:[%s1 + $0xb4] sm:$0xf]
        %v458 = vld [vmem:[%s1 + $0xb8] sm:$0xf]
        %v459 = vld [vmem:[%s1 + $0xbc] sm:$0xf]
        %v460 = vld [vmem:[%s1 + $0xc0] sm:$0xf]
        %v461 = vld [vmem:[%s1 + $0xc4] sm:$0xf]
        %v462 = vld [vmem:[%s1 + $0xc8] sm:$0xf]
        %v463 = vld [vmem:[%s1 + $0xcc] sm:$0xf]
        %v464 = vld [vmem:[%s1 + $0xd0] sm:$0xf]
        %v465 = vld [vmem:[%s1 + $0xd4] sm:$0xf]
        %v466 = vld [vmem:[%s1 + $0xd8] sm:$0xf]
        %v467 = vld [vmem:[%s1 + $0xdc] sm:$0xf]
        %v468 = vld [vmem:[%s1 + $0xe0] sm:$0xf]
        %v469 = vld [vmem:[%s1 + $0xe4] sm:$0xf]
        %v470 = vld [vmem:[%s1 + $0xe8] sm:$0xf]
        %v471 = vld [vmem:[%s1 + $0xec] sm:$0xf]
        %v472 = vld [vmem:[%s1 + $0xf0] sm:$0xf]
        %v473 = vld [vmem:[%s1 + $0xf4] sm:$0xf]
        %v474 = vld [vmem:[%s1 + $0xf8] sm:$0xf]
        %v475 = vld [vmem:[%s1 + $0xfc] sm:$0xf]
        %v476 = vld [vmem:[%s1 + $0x100] sm:$0xf]
        %v477 = vld [vmem:[%s1 + $0x104] sm:$0xf]
        %v478 = vld [vmem:[%s1 + $0x108] sm:$0xf]
        %v479 = vld [vmem:[%s1 + $0x10c] sm:$0xf]
        %v480 = vld [vmem:[%s1 + $0x110] sm:$0xf]
        %v481 = vld [vmem:[%s1 + $0x114] sm:$0xf]
        %v482 = vld [vmem:[%s1 + $0x118] sm:$0xf]
        %v483 = vld [vmem:[%s1 + $0x11c] sm:$0xf]
        %v484 = vld [vmem:[%s1 + $0x120] sm:$0xf]
        %v485 = vld [vmem:[%s1 + $0x124] sm:$0xf]
        %v486 = vld [vmem:[%s1 + $0x128] sm:$0xf]
        %v487 = vld [vmem:[%s1 + $0x12c] sm:$0xf]
        %v488 = vld [vmem:[%s1 + $0x130] sm:$0xf]
        %v489 = vld [vmem:[%s1 + $0x134] sm:$0xf]
        %v490 = vld [vmem:[%s1 + $0x138] sm:$0xf]
        %v491 = vld [vmem:[%s1 + $0x13c] sm:$0xf]
        %v492 = vld [vmem:[%s1 + $0x140] sm:$0xf]
        %v493 = vld [vmem:[%s1 + $0x144] sm:$0xf]
        %v494 = vld [vmem:[%s1 + $0x148] sm:$0xf]
        %v495 = vld [vmem:[%s1 + $0x14c] sm:$0xf]
        %v496 = vld [vmem:[%s1 + $0x150] sm:$0xf]
        %v497 = vld [vmem:[%s1 + $0x154] sm:$0xf]
        %v498 = vld [vmem:[%s1 + $0x158] sm:$0xf]
        %v499 = vld [vmem:[%s1 + $0x15c] sm:$0xf]
        %v500 = vld [vmem:[%s1 + $0x160] sm:$0xf]
        %v501 = vld [vmem:[%s1 + $0x164] sm:$0xf]
        %v502 = vld [vmem:[%s1 + $0x168] sm:$0xf]
        %v503 = vld [vmem:[%s1 + $0x16c] sm:$0xf]
        %v504 = vld [vmem:[%s1 + $0x170] sm:$0xf]
        %v505 = vld [vmem:[%s1 + $0x174] sm:$0xf]
        %v506 = vld [vmem:[%s1 + $0x178] sm:$0xf]
        %v507 = vld [vmem:[%s1 + $0x17c] sm:$0xf]
        %v508 = vld [vmem:[%s1 + $0x180] sm:$0xf]
        %v509 = vld [vmem:[%s1 + $0x184] sm:$0xf]
        %v510 = vld [vmem:[%s1 + $0x188] sm:$0xf]
        %v511 = vld [vmem:[%s1 + $0x18c] sm:$0xf]
        %v512 = vld [vmem:[%s1 + $0x190] sm:$0xf]
        %v513 = vld [vmem:[%s1 + $0x194] sm:$0xf]
        %v514 = vld [vmem:[%s1 + $0x198] sm:$0xf]
        %v515 = vld [vmem:[%s1 + $0x19c] sm:$0xf]
        %v516 = vld [vmem:[%s1 + $0x1a0] sm:$0xf]
        %v517 = vld [vmem:[%s1 + $0x1a4] sm:$0xf]
        %v518 = vld [vmem:[%s1 + $0x1a8] sm:$0xf]
        %v519 = vld [vmem:[%s1 + $0x1ac] sm:$0xf]
        %v520 = vld [vmem:[%s1 + $0x1b0] sm:$0xf]
        %v521 = vld [vmem:[%s1 + $0x1b4] sm:$0xf]
        %v522 = vld [vmem:[%s1 + $0x1b8] sm:$0xf]
        %v523 = vld [vmem:[%s1 + $0x1bc] sm:$0xf]
        %v524 = vld [vmem:[%s1 + $0x1c0] sm:$0xf]
        %v525 = vld [vmem:[%s1 + $0x1c4] sm:$0xf]
        %v526 = vld [vmem:[%s1 + $0x1c8] sm:$0xf]
        %v527 = vld [vmem:[%s1 + $0x1cc] sm:$0xf]
        %v528 = vld [vmem:[%s1 + $0x1d0] sm:$0xf]
        %v529 = vld [vmem:[%s1 + $0x1d4] sm:$0xf]
        %v530 = vld [vmem:[%s1 + $0x1d8] sm:$0xf]
        %v531 = vld [vmem:[%s1 + $0x1dc] sm:$0xf]
        %v532 = vld [vmem:[%s1 + $0x1e0] sm:$0xf]
        %v533 = vld [vmem:[%s1 + $0x1e4] sm:$0xf]
        %v534 = vld [vmem:[%s1 + $0x1e8] sm:$0xf]
        %v535 = vld [vmem:[%s1 + $0x1ec] sm:$0xf]
        %v536 = vld [vmem:[%s1 + $0x1f0] sm:$0xf]
        %v537 = vld [vmem:[%s1 + $0x1f4] sm:$0xf]
        %v538 = vld [vmem:[%s1 + $0x1f8] sm:$0xf]
        %v539 = vld [vmem:[%s1 + $0x1fc] sm:$0xf]
        %v540 = vld [vmem:[%s2] sm:$0xff]
        %v541 = vld [vmem:[%s2 + $0x8] sm:$0xff]
        %v542 = vld [vmem:[%s2 + $0x10] sm:$0xff]
        %v543 = vld [vmem:[%s2 + $0x18] sm:$0xff]
        %v544 = vld [vmem:[%s2 + $0x20] sm:$0xff]
        %v545 = vld [vmem:[%s2 + $0x28] sm:$0xff]
        %v546 = vld [vmem:[%s2 + $0x30] sm:$0xff]
        %v547 = vld [vmem:[%s2 + $0x38] sm:$0xff]
        %v548 = vld [vmem:[%s2 + $0x40] sm:$0xff]
        %v549 = vld [vmem:[%s2 + $0x48] sm:$0xff]
        %v550 = vld [vmem:[%s2 + $0x50] sm:$0xff]
        %v551 = vld [vmem:[%s2 + $0x58] sm:$0xff]
        %v552 = vld [vmem:[%s2 + $0x60] sm:$0xff]
        %v553 = vld [vmem:[%s2 + $0x68] sm:$0xff]
        %v554 = vld [vmem:[%s2 + $0x70] sm:$0xff]
        %v555 = vld [vmem:[%s2 + $0x78] sm:$0xff]
        %v556 = vld [vmem:[%s2 + $0x80] sm:$0xff]
        %v557 = vld [vmem:[%s2 + $0x88] sm:$0xff]
        %v558 = vld [vmem:[%s2 + $0x90] sm:$0xff]
        %v559 = vld [vmem:[%s2 + $0x98] sm:$0xff]
        %v560 = vld [vmem:[%s2 + $0xa0] sm:$0xff]
        %v561 = vld [vmem:[%s2 + $0xa8] sm:$0xff]
        %v562 = vld [vmem:[%s2 + $0xb0] sm:$0xff]
        %v563 = vld [vmem:[%s2 + $0xb8] sm:$0xff]
        %v564 = vld [vmem:[%s2 + $0xc0] sm:$0xff]
        %v565 = vld [vmem:[%s2 + $0xc8] sm:$0xff]
        %v566 = vld [vmem:[%s2 + $0xd0] sm:$0xff]
        %v567 = vld [vmem:[%s2 + $0xd8] sm:$0xff]
        %v568 = vld [vmem:[%s2 + $0xe0] sm:$0xff]
        %v569 = vld [vmem:[%s2 + $0xe8] sm:$0xff]
        %v570 = vld [vmem:[%s2 + $0xf0] sm:$0xff]
        %v571 = vld [vmem:[%s2 + $0xf8] sm:$0xff]
        %v572 = vld [vmem:[%s2 + $0x100] sm:$0xff]
        %v573 = vld [vmem:[%s2 + $0x108] sm:$0xff]
        %v574 = vld [vmem:[%s2 + $0x110] sm:$0xff]
        %v575 = vld [vmem:[%s2 + $0x118] sm:$0xff]
        %v576 = vld [vmem:[%s2 + $0x120] sm:$0xff]
        %v577 = vld [vmem:[%s2 + $0x128] sm:$0xff]
        %v578 = vld [vmem:[%s2 + $0x130] sm:$0xff]
        %v579 = vld [vmem:[%s2 + $0x138] sm:$0xff]
        %v580 = vld [vmem:[%s2 + $0x140] sm:$0xff]
        %v581 = vld [vmem:[%s2 + $0x148] sm:$0xff]
        %v582 = vld [vmem:[%s2 + $0x150] sm:$0xff]
        %v583 = vld [vmem:[%s2 + $0x158] sm:$0xff]
        %v584 = vld [vmem:[%s2 + $0x160] sm:$0xff]
        %v585 = vld [vmem:[%s2 + $0x168] sm:$0xff]
        %v586 = vld [vmem:[%s2 + $0x170] sm:$0xff]
        %v587 = vld [vmem:[%s2 + $0x178] sm:$0xff]
        %v588 = vld [vmem:[%s2 + $0x180] sm:$0xff]
        %v589 = vld [vmem:[%s2 + $0x188] sm:$0xff]
        %v590 = vld [vmem:[%s2 + $0x190] sm:$0xff]
        %v591 = vld [vmem:[%s2 + $0x198] sm:$0xff]
        %v592 = vld [vmem:[%s2 + $0x1a0] sm:$0xff]
        %v593 = vld [vmem:[%s2 + $0x1a8] sm:$0xff]
        %v594 = vld [vmem:[%s2 + $0x1b0] sm:$0xff]
        %v595 = vld [vmem:[%s2 + $0x1b8] sm:$0xff]
        %v596 = vld [vmem:[%s2 + $0x1c0] sm:$0xff]
        %v597 = vld [vmem:[%s2 + $0x1c8] sm:$0xff]
        %v598 = vld [vmem:[%s2 + $0x1d0] sm:$0xff]
        %v599 = vld [vmem:[%s2 + $0x1d8] sm:$0xff]
        %v600 = vld [vmem:[%s2 + $0x1e0] sm:$0xff]
        %v601 = vld [vmem:[%s2 + $0x1e8] sm:$0xff]
        %v602 = vld [vmem:[%s2 + $0x1f0] sm:$0xff]
        %v603 = vld [vmem:[%s2 + $0x1f8] sm:$0xff]
        %v604 = vld [vmem:[%s2 + $0x200] sm:$0xff]
        %v605 = vld [vmem:[%s2 + $0x208] sm:$0xff]
        %v606 = vld [vmem:[%s2 + $0x210] sm:$0xff]
        %v607 = vld [vmem:[%s2 + $0x218] sm:$0xff]
        %v608 = vld [vmem:[%s2 + $0x220] sm:$0xff]
        %v609 = vld [vmem:[%s2 + $0x228] sm:$0xff]
        %v610 = vld [vmem:[%s2 + $0x230] sm:$0xff]
        %v611 = vld [vmem:[%s2 + $0x238] sm:$0xff]
        %v612 = vld [vmem:[%s2 + $0x240] sm:$0xff]
        %v613 = vld [vmem:[%s2 + $0x248] sm:$0xff]
        %v614 = vld [vmem:[%s2 + $0x250] sm:$0xff]
        %v615 = vld [vmem:[%s2 + $0x258] sm:$0xff]
        %v616 = vld [vmem:[%s2 + $0x260] sm:$0xff]
        %v617 = vld [vmem:[%s2 + $0x268] sm:$0xff]
        %v618 = vld [vmem:[%s2 + $0x270] sm:$0xff]
        %v619 = vld [vmem:[%s2 + $0x278] sm:$0xff]
        %v620 = vld [vmem:[%s2 + $0x280] sm:$0xff]
        %v621 = vld [vmem:[%s2 + $0x288] sm:$0xff]
        %v622 = vld [vmem:[%s2 + $0x290] sm:$0xff]
        %v623 = vld [vmem:[%s2 + $0x298] sm:$0xff]
        %v624 = vld [vmem:[%s2 + $0x2a0] sm:$0xff]
        %v625 = vld [vmem:[%s2 + $0x2a8] sm:$0xff]
        %v626 = vld [vmem:[%s2 + $0x2b0] sm:$0xff]
        %v627 = vld [vmem:[%s2 + $0x2b8] sm:$0xff]
        %v628 = vld [vmem:[%s2 + $0x2c0] sm:$0xff]
        %v629 = vld [vmem:[%s2 + $0x2c8] sm:$0xff]
        %v630 = vld [vmem:[%s2 + $0x2d0] sm:$0xff]
        %v631 = vld [vmem:[%s2 + $0x2d8] sm:$0xff]
        %v632 = vld [vmem:[%s2 + $0x2e0] sm:$0xff]
        %v633 = vld [vmem:[%s2 + $0x2e8] sm:$0xff]
        %v634 = vld [vmem:[%s2 + $0x2f0] sm:$0xff]
        %v635 = vld [vmem:[%s2 + $0x2f8] sm:$0xff]
        %v636 = vld [vmem:[%s2 + $0x300] sm:$0xff]
        %v637 = vld [vmem:[%s2 + $0x308] sm:$0xff]
        %v638 = vld [vmem:[%s2 + $0x310] sm:$0xff]
        %v639 = vld [vmem:[%s2 + $0x318] sm:$0xff]
        %v640 = vld [vmem:[%s2 + $0x320] sm:$0xff]
        %v641 = vld [vmem:[%s2 + $0x328] sm:$0xff]
        %v642 = vld [vmem:[%s2 + $0x330] sm:$0xff]
        %v643 = vld [vmem:[%s2 + $0x338] sm:$0xff]
        %v644 = vld [vmem:[%s2 + $0x340] sm:$0xff]
        %v645 = vld [vmem:[%s2 + $0x348] sm:$0xff]
        %v646 = vld [vmem:[%s2 + $0x350] sm:$0xff]
        %v647 = vld [vmem:[%s2 + $0x358] sm:$0xff]
        %v648 = vld [vmem:[%s2 + $0x360] sm:$0xff]
        %v649 = vld [vmem:[%s2 + $0x368] sm:$0xff]
        %v650 = vld [vmem:[%s2 + $0x370] sm:$0xff]
        %v651 = vld [vmem:[%s2 + $0x378] sm:$0xff]
        %v652 = vld [vmem:[%s2 + $0x380] sm:$0xff]
        %v653 = vld [vmem:[%s2 + $0x388] sm:$0xff]
        %v654 = vld [vmem:[%s2 + $0x390] sm:$0xff]
        %v655 = vld [vmem:[%s2 + $0x398] sm:$0xff]
        %v656 = vld [vmem:[%s2 + $0x3a0] sm:$0xff]
        %v657 = vld [vmem:[%s2 + $0x3a8] sm:$0xff]
        %v658 = vld [vmem:[%s2 + $0x3b0] sm:$0xff]
        %v659 = vld [vmem:[%s2 + $0x3b8] sm:$0xff]
        %v660 = vld [vmem:[%s2 + $0x3c0] sm:$0xff]
        %v661 = vld [vmem:[%s2 + $0x3c8] sm:$0xff]
        %v662 = vld [vmem:[%s2 + $0x3d0] sm:$0xff]
        %v663 = vld [vmem:[%s2 + $0x3d8] sm:$0xff]
        %v664 = vld [vmem:[%s2 + $0x3e0] sm:$0xff]
        %v665 = vld [vmem:[%s2 + $0x3e8] sm:$0xff]
        %v666 = vld [vmem:[%s2 + $0x3f0] sm:$0xff]
        %v667 = vld [vmem:[%s2 + $0x3f8] sm:$0xff]
        %669 = vset.pattern.permute.xlu0 0
        %670 = vperm.xlu0 %669, %v540
        %v671 = vpop.permute.xlu0 %670
        %674 = vset.pattern.permute.xlu0 0
        %675 = vperm.xlu0 %674, %v541
        %v676 = vpop.permute.xlu0 %675
        %679 = vset.pattern.permute.xlu0 0
        %680 = vperm.xlu0 %679, %v542
        %v681 = vpop.permute.xlu0 %680
        %684 = vset.pattern.permute.xlu0 0
        %685 = vperm.xlu0 %684, %v543
        %v686 = vpop.permute.xlu0 %685
        %689 = vset.pattern.permute.xlu0 0
        %690 = vperm.xlu0 %689, %v544
        %v691 = vpop.permute.xlu0 %690
        %694 = vset.pattern.permute.xlu0 0
        %695 = vperm.xlu0 %694, %v545
        %v696 = vpop.permute.xlu0 %695
        %699 = vset.pattern.permute.xlu0 0
        %700 = vperm.xlu0 %699, %v546
        %v701 = vpop.permute.xlu0 %700
        %704 = vset.pattern.permute.xlu0 0
        %705 = vperm.xlu0 %704, %v547
        %v706 = vpop.permute.xlu0 %705
        %709 = vset.pattern.permute.xlu0 0
        %710 = vperm.xlu0 %709, %v548
        %v711 = vpop.permute.xlu0 %710
        %714 = vset.pattern.permute.xlu0 0
        %715 = vperm.xlu0 %714, %v549
        %v716 = vpop.permute.xlu0 %715
        %719 = vset.pattern.permute.xlu0 0
        %720 = vperm.xlu0 %719, %v550
        %v721 = vpop.permute.xlu0 %720
        %724 = vset.pattern.permute.xlu0 0
        %725 = vperm.xlu0 %724, %v551
        %v726 = vpop.permute.xlu0 %725
        %729 = vset.pattern.permute.xlu0 0
        %730 = vperm.xlu0 %729, %v552
        %v731 = vpop.permute.xlu0 %730
        %734 = vset.pattern.permute.xlu0 0
        %735 = vperm.xlu0 %734, %v553
        %v736 = vpop.permute.xlu0 %735
        %739 = vset.pattern.permute.xlu0 0
        %740 = vperm.xlu0 %739, %v554
        %v741 = vpop.permute.xlu0 %740
        %744 = vset.pattern.permute.xlu0 0
        %745 = vperm.xlu0 %744, %v555
        %v746 = vpop.permute.xlu0 %745
        %749 = vset.pattern.permute.xlu0 0
        %750 = vperm.xlu0 %749, %v556
        %v751 = vpop.permute.xlu0 %750
        %754 = vset.pattern.permute.xlu0 0
        %755 = vperm.xlu0 %754, %v557
        %v756 = vpop.permute.xlu0 %755
        %759 = vset.pattern.permute.xlu0 0
        %760 = vperm.xlu0 %759, %v558
        %v761 = vpop.permute.xlu0 %760
        %764 = vset.pattern.permute.xlu0 0
        %765 = vperm.xlu0 %764, %v559
        %v766 = vpop.permute.xlu0 %765
        %769 = vset.pattern.permute.xlu0 0
        %770 = vperm.xlu0 %769, %v560
        %v771 = vpop.permute.xlu0 %770
        %774 = vset.pattern.permute.xlu0 0
        %775 = vperm.xlu0 %774, %v561
        %v776 = vpop.permute.xlu0 %775
        %779 = vset.pattern.permute.xlu0 0
        %780 = vperm.xlu0 %779, %v562
        %v781 = vpop.permute.xlu0 %780
        %784 = vset.pattern.permute.xlu0 0
        %785 = vperm.xlu0 %784, %v563
        %v786 = vpop.permute.xlu0 %785
        %789 = vset.pattern.permute.xlu0 0
        %790 = vperm.xlu0 %789, %v564
        %v791 = vpop.permute.xlu0 %790
        %794 = vset.pattern.permute.xlu0 0
        %795 = vperm.xlu0 %794, %v565
        %v796 = vpop.permute.xlu0 %795
        %799 = vset.pattern.permute.xlu0 0
        %800 = vperm.xlu0 %799, %v566
        %v801 = vpop.permute.xlu0 %800
        %804 = vset.pattern.permute.xlu0 0
        %805 = vperm.xlu0 %804, %v567
        %v806 = vpop.permute.xlu0 %805
        %809 = vset.pattern.permute.xlu0 0
        %810 = vperm.xlu0 %809, %v568
        %v811 = vpop.permute.xlu0 %810
        %814 = vset.pattern.permute.xlu0 0
        %815 = vperm.xlu0 %814, %v569
        %v816 = vpop.permute.xlu0 %815
        %819 = vset.pattern.permute.xlu0 0
        %820 = vperm.xlu0 %819, %v570
        %v821 = vpop.permute.xlu0 %820
        %824 = vset.pattern.permute.xlu0 0
        %825 = vperm.xlu0 %824, %v571
        %v826 = vpop.permute.xlu0 %825
        %829 = vset.pattern.permute.xlu0 0
        %830 = vperm.xlu0 %829, %v572
        %v831 = vpop.permute.xlu0 %830
        %834 = vset.pattern.permute.xlu0 0
        %835 = vperm.xlu0 %834, %v573
        %v836 = vpop.permute.xlu0 %835
        %839 = vset.pattern.permute.xlu0 0
        %840 = vperm.xlu0 %839, %v574
        %v841 = vpop.permute.xlu0 %840
        %844 = vset.pattern.permute.xlu0 0
        %845 = vperm.xlu0 %844, %v575
        %v846 = vpop.permute.xlu0 %845
        %849 = vset.pattern.permute.xlu0 0
        %850 = vperm.xlu0 %849, %v576
        %v851 = vpop.permute.xlu0 %850
        %854 = vset.pattern.permute.xlu0 0
        %855 = vperm.xlu0 %854, %v577
        %v856 = vpop.permute.xlu0 %855
        %859 = vset.pattern.permute.xlu0 0
        %860 = vperm.xlu0 %859, %v578
        %v861 = vpop.permute.xlu0 %860
        %864 = vset.pattern.permute.xlu0 0
        %865 = vperm.xlu0 %864, %v579
        %v866 = vpop.permute.xlu0 %865
        %869 = vset.pattern.permute.xlu0 0
        %870 = vperm.xlu0 %869, %v580
        %v871 = vpop.permute.xlu0 %870
        %874 = vset.pattern.permute.xlu0 0
        %875 = vperm.xlu0 %874, %v581
        %v876 = vpop.permute.xlu0 %875
        %879 = vset.pattern.permute.xlu0 0
        %880 = vperm.xlu0 %879, %v582
        %v881 = vpop.permute.xlu0 %880
        %884 = vset.pattern.permute.xlu0 0
        %885 = vperm.xlu0 %884, %v583
        %v886 = vpop.permute.xlu0 %885
        %889 = vset.pattern.permute.xlu0 0
        %890 = vperm.xlu0 %889, %v584
        %v891 = vpop.permute.xlu0 %890
        %894 = vset.pattern.permute.xlu0 0
        %895 = vperm.xlu0 %894, %v585
        %v896 = vpop.permute.xlu0 %895
        %899 = vset.pattern.permute.xlu0 0
        %900 = vperm.xlu0 %899, %v586
        %v901 = vpop.permute.xlu0 %900
        %904 = vset.pattern.permute.xlu0 0
        %905 = vperm.xlu0 %904, %v587
        %v906 = vpop.permute.xlu0 %905
        %909 = vset.pattern.permute.xlu0 0
        %910 = vperm.xlu0 %909, %v588
        %v911 = vpop.permute.xlu0 %910
        %914 = vset.pattern.permute.xlu0 0
        %915 = vperm.xlu0 %914, %v589
        %v916 = vpop.permute.xlu0 %915
        %919 = vset.pattern.permute.xlu0 0
        %920 = vperm.xlu0 %919, %v590
        %v921 = vpop.permute.xlu0 %920
        %924 = vset.pattern.permute.xlu0 0
        %925 = vperm.xlu0 %924, %v591
        %v926 = vpop.permute.xlu0 %925
        %929 = vset.pattern.permute.xlu0 0
        %930 = vperm.xlu0 %929, %v592
        %v931 = vpop.permute.xlu0 %930
        %934 = vset.pattern.permute.xlu0 0
        %935 = vperm.xlu0 %934, %v593
        %v936 = vpop.permute.xlu0 %935
        %939 = vset.pattern.permute.xlu0 0
        %940 = vperm.xlu0 %939, %v594
        %v941 = vpop.permute.xlu0 %940
        %944 = vset.pattern.permute.xlu0 0
        %945 = vperm.xlu0 %944, %v595
        %v946 = vpop.permute.xlu0 %945
        %949 = vset.pattern.permute.xlu0 0
        %950 = vperm.xlu0 %949, %v596
        %v951 = vpop.permute.xlu0 %950
        %954 = vset.pattern.permute.xlu0 0
        %955 = vperm.xlu0 %954, %v597
        %v956 = vpop.permute.xlu0 %955
        %959 = vset.pattern.permute.xlu0 0
        %960 = vperm.xlu0 %959, %v598
        %v961 = vpop.permute.xlu0 %960
        %964 = vset.pattern.permute.xlu0 0
        %965 = vperm.xlu0 %964, %v599
        %v966 = vpop.permute.xlu0 %965
        %969 = vset.pattern.permute.xlu0 0
        %970 = vperm.xlu0 %969, %v600
        %v971 = vpop.permute.xlu0 %970
        %974 = vset.pattern.permute.xlu0 0
        %975 = vperm.xlu0 %974, %v601
        %v976 = vpop.permute.xlu0 %975
        %979 = vset.pattern.permute.xlu0 0
        %980 = vperm.xlu0 %979, %v602
        %v981 = vpop.permute.xlu0 %980
        %984 = vset.pattern.permute.xlu0 0
        %985 = vperm.xlu0 %984, %v603
        %v986 = vpop.permute.xlu0 %985
        %989 = vset.pattern.permute.xlu0 0
        %990 = vperm.xlu0 %989, %v604
        %v991 = vpop.permute.xlu0 %990
        %994 = vset.pattern.permute.xlu0 0
        %995 = vperm.xlu0 %994, %v605
        %v996 = vpop.permute.xlu0 %995
        %999 = vset.pattern.permute.xlu0 0
        %1000 = vperm.xlu0 %999, %v606
        %v1001 = vpop.permute.xlu0 %1000
        %1004 = vset.pattern.permute.xlu0 0
        %1005 = vperm.xlu0 %1004, %v607
        %v1006 = vpop.permute.xlu0 %1005
        %1009 = vset.pattern.permute.xlu0 0
        %1010 = vperm.xlu0 %1009, %v608
        %v1011 = vpop.permute.xlu0 %1010
        %1014 = vset.pattern.permute.xlu0 0
        %1015 = vperm.xlu0 %1014, %v609
        %v1016 = vpop.permute.xlu0 %1015
        %1019 = vset.pattern.permute.xlu0 0
        %1020 = vperm.xlu0 %1019, %v610
        %v1021 = vpop.permute.xlu0 %1020
        %1024 = vset.pattern.permute.xlu0 0
        %1025 = vperm.xlu0 %1024, %v611
        %v1026 = vpop.permute.xlu0 %1025
        %1029 = vset.pattern.permute.xlu0 0
        %1030 = vperm.xlu0 %1029, %v612
        %v1031 = vpop.permute.xlu0 %1030
        %1034 = vset.pattern.permute.xlu0 0
        %1035 = vperm.xlu0 %1034, %v613
        %v1036 = vpop.permute.xlu0 %1035
        %1039 = vset.pattern.permute.xlu0 0
        %1040 = vperm.xlu0 %1039, %v614
        %v1041 = vpop.permute.xlu0 %1040
        %1044 = vset.pattern.permute.xlu0 0
        %1045 = vperm.xlu0 %1044, %v615
        %v1046 = vpop.permute.xlu0 %1045
        %1049 = vset.pattern.permute.xlu0 0
        %1050 = vperm.xlu0 %1049, %v616
        %v1051 = vpop.permute.xlu0 %1050
        %1054 = vset.pattern.permute.xlu0 0
        %1055 = vperm.xlu0 %1054, %v617
        %v1056 = vpop.permute.xlu0 %1055
        %1059 = vset.pattern.permute.xlu0 0
        %1060 = vperm.xlu0 %1059, %v618
        %v1061 = vpop.permute.xlu0 %1060
        %1064 = vset.pattern.permute.xlu0 0
        %1065 = vperm.xlu0 %1064, %v619
        %v1066 = vpop.permute.xlu0 %1065
        %1069 = vset.pattern.permute.xlu0 0
        %1070 = vperm.xlu0 %1069, %v620
        %v1071 = vpop.permute.xlu0 %1070
        %1074 = vset.pattern.permute.xlu0 0
        %1075 = vperm.xlu0 %1074, %v621
        %v1076 = vpop.permute.xlu0 %1075
        %1079 = vset.pattern.permute.xlu0 0
        %1080 = vperm.xlu0 %1079, %v622
        %v1081 = vpop.permute.xlu0 %1080
        %1084 = vset.pattern.permute.xlu0 0
        %1085 = vperm.xlu0 %1084, %v623
        %v1086 = vpop.permute.xlu0 %1085
        %1089 = vset.pattern.permute.xlu0 0
        %1090 = vperm.xlu0 %1089, %v624
        %v1091 = vpop.permute.xlu0 %1090
        %1094 = vset.pattern.permute.xlu0 0
        %1095 = vperm.xlu0 %1094, %v625
        %v1096 = vpop.permute.xlu0 %1095
        %1099 = vset.pattern.permute.xlu0 0
        %1100 = vperm.xlu0 %1099, %v626
        %v1101 = vpop.permute.xlu0 %1100
        %1104 = vset.pattern.permute.xlu0 0
        %1105 = vperm.xlu0 %1104, %v627
        %v1106 = vpop.permute.xlu0 %1105
        %1109 = vset.pattern.permute.xlu0 0
        %1110 = vperm.xlu0 %1109, %v628
        %v1111 = vpop.permute.xlu0 %1110
        %1114 = vset.pattern.permute.xlu0 0
        %1115 = vperm.xlu0 %1114, %v629
        %v1116 = vpop.permute.xlu0 %1115
        %1119 = vset.pattern.permute.xlu0 0
        %1120 = vperm.xlu0 %1119, %v630
        %v1121 = vpop.permute.xlu0 %1120
        %1124 = vset.pattern.permute.xlu0 0
        %1125 = vperm.xlu0 %1124, %v631
        %v1126 = vpop.permute.xlu0 %1125
        %1129 = vset.pattern.permute.xlu0 0
        %1130 = vperm.xlu0 %1129, %v632
        %v1131 = vpop.permute.xlu0 %1130
        %1134 = vset.pattern.permute.xlu0 0
        %1135 = vperm.xlu0 %1134, %v633
        %v1136 = vpop.permute.xlu0 %1135
        %1139 = vset.pattern.permute.xlu0 0
        %1140 = vperm.xlu0 %1139, %v634
        %v1141 = vpop.permute.xlu0 %1140
        %1144 = vset.pattern.permute.xlu0 0
        %1145 = vperm.xlu0 %1144, %v635
        %v1146 = vpop.permute.xlu0 %1145
        %1149 = vset.pattern.permute.xlu0 0
        %1150 = vperm.xlu0 %1149, %v636
        %v1151 = vpop.permute.xlu0 %1150
        %1154 = vset.pattern.permute.xlu0 0
        %1155 = vperm.xlu0 %1154, %v637
        %v1156 = vpop.permute.xlu0 %1155
        %1159 = vset.pattern.permute.xlu0 0
        %1160 = vperm.xlu0 %1159, %v638
        %v1161 = vpop.permute.xlu0 %1160
        %1164 = vset.pattern.permute.xlu0 0
        %1165 = vperm.xlu0 %1164, %v639
        %v1166 = vpop.permute.xlu0 %1165
        %1169 = vset.pattern.permute.xlu0 0
        %1170 = vperm.xlu0 %1169, %v640
        %v1171 = vpop.permute.xlu0 %1170
        %1174 = vset.pattern.permute.xlu0 0
        %1175 = vperm.xlu0 %1174, %v641
        %v1176 = vpop.permute.xlu0 %1175
        %1179 = vset.pattern.permute.xlu0 0
        %1180 = vperm.xlu0 %1179, %v642
        %v1181 = vpop.permute.xlu0 %1180
        %1184 = vset.pattern.permute.xlu0 0
        %1185 = vperm.xlu0 %1184, %v643
        %v1186 = vpop.permute.xlu0 %1185
        %1189 = vset.pattern.permute.xlu0 0
        %1190 = vperm.xlu0 %1189, %v644
        %v1191 = vpop.permute.xlu0 %1190
        %1194 = vset.pattern.permute.xlu0 0
        %1195 = vperm.xlu0 %1194, %v645
        %v1196 = vpop.permute.xlu0 %1195
        %1199 = vset.pattern.permute.xlu0 0
        %1200 = vperm.xlu0 %1199, %v646
        %v1201 = vpop.permute.xlu0 %1200
        %1204 = vset.pattern.permute.xlu0 0
        %1205 = vperm.xlu0 %1204, %v647
        %v1206 = vpop.permute.xlu0 %1205
        %1209 = vset.pattern.permute.xlu0 0
        %1210 = vperm.xlu0 %1209, %v648
        %v1211 = vpop.permute.xlu0 %1210
        %1214 = vset.pattern.permute.xlu0 0
        %1215 = vperm.xlu0 %1214, %v649
        %v1216 = vpop.permute.xlu0 %1215
        %1219 = vset.pattern.permute.xlu0 0
        %1220 = vperm.xlu0 %1219, %v650
        %v1221 = vpop.permute.xlu0 %1220
        %1224 = vset.pattern.permute.xlu0 0
        %1225 = vperm.xlu0 %1224, %v651
        %v1226 = vpop.permute.xlu0 %1225
        %1229 = vset.pattern.permute.xlu0 0
        %1230 = vperm.xlu0 %1229, %v652
        %v1231 = vpop.permute.xlu0 %1230
        %1234 = vset.pattern.permute.xlu0 0
        %1235 = vperm.xlu0 %1234, %v653
        %v1236 = vpop.permute.xlu0 %1235
        %1239 = vset.pattern.permute.xlu0 0
        %1240 = vperm.xlu0 %1239, %v654
        %v1241 = vpop.permute.xlu0 %1240
        %1244 = vset.pattern.permute.xlu0 0
        %1245 = vperm.xlu0 %1244, %v655
        %v1246 = vpop.permute.xlu0 %1245
        %1249 = vset.pattern.permute.xlu0 0
        %1250 = vperm.xlu0 %1249, %v656
        %v1251 = vpop.permute.xlu0 %1250
        %1254 = vset.pattern.permute.xlu0 0
        %1255 = vperm.xlu0 %1254, %v657
        %v1256 = vpop.permute.xlu0 %1255
        %1259 = vset.pattern.permute.xlu0 0
        %1260 = vperm.xlu0 %1259, %v658
        %v1261 = vpop.permute.xlu0 %1260
        %1264 = vset.pattern.permute.xlu0 0
        %1265 = vperm.xlu0 %1264, %v659
        %v1266 = vpop.permute.xlu0 %1265
        %1269 = vset.pattern.permute.xlu0 0
        %1270 = vperm.xlu0 %1269, %v660
        %v1271 = vpop.permute.xlu0 %1270
        %1274 = vset.pattern.permute.xlu0 0
        %1275 = vperm.xlu0 %1274, %v661
        %v1276 = vpop.permute.xlu0 %1275
        %1279 = vset.pattern.permute.xlu0 0
        %1280 = vperm.xlu0 %1279, %v662
        %v1281 = vpop.permute.xlu0 %1280
        %1284 = vset.pattern.permute.xlu0 0
        %1285 = vperm.xlu0 %1284, %v663
        %v1286 = vpop.permute.xlu0 %1285
        %1289 = vset.pattern.permute.xlu0 0
        %1290 = vperm.xlu0 %1289, %v664
        %v1291 = vpop.permute.xlu0 %1290
        %1294 = vset.pattern.permute.xlu0 0
        %1295 = vperm.xlu0 %1294, %v665
        %v1296 = vpop.permute.xlu0 %1295
        %1299 = vset.pattern.permute.xlu0 0
        %1300 = vperm.xlu0 %1299, %v666
        %v1301 = vpop.permute.xlu0 %1300
        %1304 = vset.pattern.permute.xlu0 0
        %1305 = vperm.xlu0 %1304, %v667
        %v1306 = vpop.permute.xlu0 %1305
        %v1436 = vunpack.c.l.b16 %v412
        %v1437 = vunpack.c.l.b16 %v413
        %v1438 = vunpack.c.l.b16 %v414
        %v1439 = vunpack.c.l.b16 %v415
        %v1440 = vunpack.c.l.b16 %v416
        %v1441 = vunpack.c.l.b16 %v417
        %v1442 = vunpack.c.l.b16 %v418
        %v1443 = vunpack.c.l.b16 %v419
        %v1444 = vunpack.c.l.b16 %v420
        %v1445 = vunpack.c.l.b16 %v421
        %v1446 = vunpack.c.l.b16 %v422
        %v1447 = vunpack.c.l.b16 %v423
        %v1448 = vunpack.c.l.b16 %v424
        %v1449 = vunpack.c.l.b16 %v425
        %v1450 = vunpack.c.l.b16 %v426
        %v1451 = vunpack.c.l.b16 %v427
        %v1452 = vunpack.c.l.b16 %v428
        %v1453 = vunpack.c.l.b16 %v429
        %v1454 = vunpack.c.l.b16 %v430
        %v1455 = vunpack.c.l.b16 %v431
        %v1456 = vunpack.c.l.b16 %v432
        %v1457 = vunpack.c.l.b16 %v433
        %v1458 = vunpack.c.l.b16 %v434
        %v1459 = vunpack.c.l.b16 %v435
        %v1460 = vunpack.c.l.b16 %v436
        %v1461 = vunpack.c.l.b16 %v437
        %v1462 = vunpack.c.l.b16 %v438
        %v1463 = vunpack.c.l.b16 %v439
        %v1464 = vunpack.c.l.b16 %v440
        %v1465 = vunpack.c.l.b16 %v441
        %v1466 = vunpack.c.l.b16 %v442
        %v1467 = vunpack.c.l.b16 %v443
        %v1468 = vunpack.c.l.b16 %v444
        %v1469 = vunpack.c.l.b16 %v445
        %v1470 = vunpack.c.l.b16 %v446
        %v1471 = vunpack.c.l.b16 %v447
        %v1472 = vunpack.c.l.b16 %v448
        %v1473 = vunpack.c.l.b16 %v449
        %v1474 = vunpack.c.l.b16 %v450
        %v1475 = vunpack.c.l.b16 %v451
        %v1476 = vunpack.c.l.b16 %v452
        %v1477 = vunpack.c.l.b16 %v453
        %v1478 = vunpack.c.l.b16 %v454
        %v1479 = vunpack.c.l.b16 %v455
        %v1480 = vunpack.c.l.b16 %v456
        %v1481 = vunpack.c.l.b16 %v457
        %v1482 = vunpack.c.l.b16 %v458
        %v1483 = vunpack.c.l.b16 %v459
        %v1484 = vunpack.c.l.b16 %v460
        %v1485 = vunpack.c.l.b16 %v461
        %v1486 = vunpack.c.l.b16 %v462
        %v1487 = vunpack.c.l.b16 %v463
        %v1488 = vunpack.c.l.b16 %v464
        %v1489 = vunpack.c.l.b16 %v465
        %v1490 = vunpack.c.l.b16 %v466
        %v1491 = vunpack.c.l.b16 %v467
        %v1492 = vunpack.c.l.b16 %v468
        %v1493 = vunpack.c.l.b16 %v469
        %v1494 = vunpack.c.l.b16 %v470
        %v1495 = vunpack.c.l.b16 %v471
        %v1496 = vunpack.c.l.b16 %v472
        %v1497 = vunpack.c.l.b16 %v473
        %v1498 = vunpack.c.l.b16 %v474
        %v1499 = vunpack.c.l.b16 %v475
        %v1500 = vunpack.c.l.b16 %v476
        %v1501 = vunpack.c.l.b16 %v477
        %v1502 = vunpack.c.l.b16 %v478
        %v1503 = vunpack.c.l.b16 %v479
        %v1504 = vunpack.c.l.b16 %v480
        %v1505 = vunpack.c.l.b16 %v481
        %v1506 = vunpack.c.l.b16 %v482
        %v1507 = vunpack.c.l.b16 %v483
        %v1508 = vunpack.c.l.b16 %v484
        %v1509 = vunpack.c.l.b16 %v485
        %v1510 = vunpack.c.l.b16 %v486
        %v1511 = vunpack.c.l.b16 %v487
        %v1512 = vunpack.c.l.b16 %v488
        %v1513 = vunpack.c.l.b16 %v489
        %v1514 = vunpack.c.l.b16 %v490
        %v1515 = vunpack.c.l.b16 %v491
        %v1516 = vunpack.c.l.b16 %v492
        %v1517 = vunpack.c.l.b16 %v493
        %v1518 = vunpack.c.l.b16 %v494
        %v1519 = vunpack.c.l.b16 %v495
        %v1520 = vunpack.c.l.b16 %v496
        %v1521 = vunpack.c.l.b16 %v497
        %v1522 = vunpack.c.l.b16 %v498
        %v1523 = vunpack.c.l.b16 %v499
        %v1524 = vunpack.c.l.b16 %v500
        %v1525 = vunpack.c.l.b16 %v501
        %v1526 = vunpack.c.l.b16 %v502
        %v1527 = vunpack.c.l.b16 %v503
        %v1528 = vunpack.c.l.b16 %v504
        %v1529 = vunpack.c.l.b16 %v505
        %v1530 = vunpack.c.l.b16 %v506
        %v1531 = vunpack.c.l.b16 %v507
        %v1532 = vunpack.c.l.b16 %v508
        %v1533 = vunpack.c.l.b16 %v509
        %v1534 = vunpack.c.l.b16 %v510
        %v1535 = vunpack.c.l.b16 %v511
        %v1536 = vunpack.c.l.b16 %v512
        %v1537 = vunpack.c.l.b16 %v513
        %v1538 = vunpack.c.l.b16 %v514
        %v1539 = vunpack.c.l.b16 %v515
        %v1540 = vunpack.c.l.b16 %v516
        %v1541 = vunpack.c.l.b16 %v517
        %v1542 = vunpack.c.l.b16 %v518
        %v1543 = vunpack.c.l.b16 %v519
        %v1544 = vunpack.c.l.b16 %v520
        %v1545 = vunpack.c.l.b16 %v521
        %v1546 = vunpack.c.l.b16 %v522
        %v1547 = vunpack.c.l.b16 %v523
        %v1548 = vunpack.c.l.b16 %v524
        %v1549 = vunpack.c.l.b16 %v525
        %v1550 = vunpack.c.l.b16 %v526
        %v1551 = vunpack.c.l.b16 %v527
        %v1552 = vunpack.c.l.b16 %v528
        %v1553 = vunpack.c.l.b16 %v529
        %v1554 = vunpack.c.l.b16 %v530
        %v1555 = vunpack.c.l.b16 %v531
        %v1556 = vunpack.c.l.b16 %v532
        %v1557 = vunpack.c.l.b16 %v533
        %v1558 = vunpack.c.l.b16 %v534
        %v1559 = vunpack.c.l.b16 %v535
        %v1560 = vunpack.c.l.b16 %v536
        %v1561 = vunpack.c.l.b16 %v537
        %v1562 = vunpack.c.l.b16 %v538
        %v1563 = vunpack.c.l.b16 %v539
        %v1564 = vpack.c.b16 %v1437, %v1436
        %v1565 = vpack.c.b16 %v1439, %v1438
        %v1566 = vpack.c.b16 %v1441, %v1440
        %v1567 = vpack.c.b16 %v1443, %v1442
        %v1568 = vpack.c.b16 %v1445, %v1444
        %v1569 = vpack.c.b16 %v1447, %v1446
        %v1570 = vpack.c.b16 %v1449, %v1448
        %v1571 = vpack.c.b16 %v1451, %v1450
        %v1572 = vpack.c.b16 %v1453, %v1452
        %v1573 = vpack.c.b16 %v1455, %v1454
        %v1574 = vpack.c.b16 %v1457, %v1456
        %v1575 = vpack.c.b16 %v1459, %v1458
        %v1576 = vpack.c.b16 %v1461, %v1460
        %v1577 = vpack.c.b16 %v1463, %v1462
        %v1578 = vpack.c.b16 %v1465, %v1464
        %v1579 = vpack.c.b16 %v1467, %v1466
        %v1580 = vpack.c.b16 %v1469, %v1468
        %v1581 = vpack.c.b16 %v1471, %v1470
        %v1582 = vpack.c.b16 %v1473, %v1472
        %v1583 = vpack.c.b16 %v1475, %v1474
        %v1584 = vpack.c.b16 %v1477, %v1476
        %v1585 = vpack.c.b16 %v1479, %v1478
        %v1586 = vpack.c.b16 %v1481, %v1480
        %v1587 = vpack.c.b16 %v1483, %v1482
        %v1588 = vpack.c.b16 %v1485, %v1484
        %v1589 = vpack.c.b16 %v1487, %v1486
        %v1590 = vpack.c.b16 %v1489, %v1488
        %v1591 = vpack.c.b16 %v1491, %v1490
        %v1592 = vpack.c.b16 %v1493, %v1492
        %v1593 = vpack.c.b16 %v1495, %v1494
        %v1594 = vpack.c.b16 %v1497, %v1496
        %v1595 = vpack.c.b16 %v1499, %v1498
        %v1596 = vpack.c.b16 %v1501, %v1500
        %v1597 = vpack.c.b16 %v1503, %v1502
        %v1598 = vpack.c.b16 %v1505, %v1504
        %v1599 = vpack.c.b16 %v1507, %v1506
        %v1600 = vpack.c.b16 %v1509, %v1508
        %v1601 = vpack.c.b16 %v1511, %v1510
        %v1602 = vpack.c.b16 %v1513, %v1512
        %v1603 = vpack.c.b16 %v1515, %v1514
        %v1604 = vpack.c.b16 %v1517, %v1516
        %v1605 = vpack.c.b16 %v1519, %v1518
        %v1606 = vpack.c.b16 %v1521, %v1520
        %v1607 = vpack.c.b16 %v1523, %v1522
        %v1608 = vpack.c.b16 %v1525, %v1524
        %v1609 = vpack.c.b16 %v1527, %v1526
        %v1610 = vpack.c.b16 %v1529, %v1528
        %v1611 = vpack.c.b16 %v1531, %v1530
        %v1612 = vpack.c.b16 %v1533, %v1532
        %v1613 = vpack.c.b16 %v1535, %v1534
        %v1614 = vpack.c.b16 %v1537, %v1536
        %v1615 = vpack.c.b16 %v1539, %v1538
        %v1616 = vpack.c.b16 %v1541, %v1540
        %v1617 = vpack.c.b16 %v1543, %v1542
        %v1618 = vpack.c.b16 %v1545, %v1544
        %v1619 = vpack.c.b16 %v1547, %v1546
        %v1620 = vpack.c.b16 %v1549, %v1548
        %v1621 = vpack.c.b16 %v1551, %v1550
        %v1622 = vpack.c.b16 %v1553, %v1552
        %v1623 = vpack.c.b16 %v1555, %v1554
        %v1624 = vpack.c.b16 %v1557, %v1556
        %v1625 = vpack.c.b16 %v1559, %v1558
        %v1626 = vpack.c.b16 %v1561, %v1560
        %v1627 = vpack.c.b16 %v1563, %v1562
        %v1636 = vunpack.c.l.b16 %v404
        %v1637 = vunpack.c.l.b16 %v405
        %v1638 = vunpack.c.l.b16 %v406
        %v1639 = vunpack.c.l.b16 %v407
        %v1640 = vunpack.c.l.b16 %v408
        %v1641 = vunpack.c.l.b16 %v409
        %v1642 = vunpack.c.l.b16 %v410
        %v1643 = vunpack.c.l.b16 %v411
        %v1644 = vpack.c.b16 %v1637, %v1636
        %v1645 = vpack.c.b16 %v1639, %v1638
        %v1646 = vpack.c.b16 %v1641, %v1640
        %v1647 = vpack.c.b16 %v1643, %v1642
        %vm1652 = vcmask 523264
        %v1654 = vsel %vm1652, %v1564, 0
        %v1657 = vsel %vm1652, %v1565, 0
        %v1660 = vsel %vm1652, %v1566, 0
        %v1663 = vsel %vm1652, %v1567, 0
        %v1666 = vsel %vm1652, %v1568, 0
        %v1669 = vsel %vm1652, %v1569, 0
        %v1672 = vsel %vm1652, %v1570, 0
        %v1675 = vsel %vm1652, %v1571, 0
        %v1678 = vsel %vm1652, %v1572, 0
        %v1681 = vsel %vm1652, %v1573, 0
        %v1684 = vsel %vm1652, %v1574, 0
        %v1687 = vsel %vm1652, %v1575, 0
        %v1690 = vsel %vm1652, %v1576, 0
        %v1693 = vsel %vm1652, %v1577, 0
        %v1696 = vsel %vm1652, %v1578, 0
        %v1699 = vsel %vm1652, %v1579, 0
        %v1702 = vsel %vm1652, %v1580, 0
        %v1705 = vsel %vm1652, %v1581, 0
        %v1708 = vsel %vm1652, %v1582, 0
        %v1711 = vsel %vm1652, %v1583, 0
        %v1714 = vsel %vm1652, %v1584, 0
        %v1717 = vsel %vm1652, %v1585, 0
        %v1720 = vsel %vm1652, %v1586, 0
        %v1723 = vsel %vm1652, %v1587, 0
        %v1726 = vsel %vm1652, %v1588, 0
        %v1729 = vsel %vm1652, %v1589, 0
        %v1732 = vsel %vm1652, %v1590, 0
        %v1735 = vsel %vm1652, %v1591, 0
        %v1738 = vsel %vm1652, %v1592, 0
        %v1741 = vsel %vm1652, %v1593, 0
        %v1744 = vsel %vm1652, %v1594, 0
        %v1747 = vsel %vm1652, %v1595, 0
        %v1750 = vsel %vm1652, %v1596, 0
        %v1753 = vsel %vm1652, %v1597, 0
        %v1756 = vsel %vm1652, %v1598, 0
        %v1759 = vsel %vm1652, %v1599, 0
        %v1762 = vsel %vm1652, %v1600, 0
        %v1765 = vsel %vm1652, %v1601, 0
        %v1768 = vsel %vm1652, %v1602, 0
        %v1771 = vsel %vm1652, %v1603, 0
        %v1774 = vsel %vm1652, %v1604, 0
        %v1777 = vsel %vm1652, %v1605, 0
        %v1780 = vsel %vm1652, %v1606, 0
        %v1783 = vsel %vm1652, %v1607, 0
        %v1786 = vsel %vm1652, %v1608, 0
        %v1789 = vsel %vm1652, %v1609, 0
        %v1792 = vsel %vm1652, %v1610, 0
        %v1795 = vsel %vm1652, %v1611, 0
        %v1798 = vsel %vm1652, %v1612, 0
        %v1801 = vsel %vm1652, %v1613, 0
        %v1804 = vsel %vm1652, %v1614, 0
        %v1807 = vsel %vm1652, %v1615, 0
        %v1810 = vsel %vm1652, %v1616, 0
        %v1813 = vsel %vm1652, %v1617, 0
        %v1816 = vsel %vm1652, %v1618, 0
        %v1819 = vsel %vm1652, %v1619, 0
        %v1822 = vsel %vm1652, %v1620, 0
        %v1825 = vsel %vm1652, %v1621, 0
        %v1828 = vsel %vm1652, %v1622, 0
        %v1831 = vsel %vm1652, %v1623, 0
        %v1834 = vsel %vm1652, %v1624, 0
        %v1837 = vsel %vm1652, %v1625, 0
        %v1840 = vsel %vm1652, %v1626, 0
        %v1843 = vsel %vm1652, %v1627, 0
        %1845 = vmatprep.subr.bf16.mxu0 0
        %1846 = vmatpush1.bf16.msra.mxu0 0
        %1847 = vmatprep.subr.bf16.mxu0 0
        %1848 = vmatpush1.bf16.msra.mxu0 0
        %1849 = vmatprep.subr.bf16.mxu0 0
        %1850 = vmatpush1.bf16.msra.mxu0 0
        %1851 = vmatprep.subr.bf16.mxu0 0
        %1852 = vmatpush1.bf16.msra.mxu0 0
        %1853 = vmatprep.subr.bf16.mxu0 0
        %1854 = vmatpush1.bf16.msra.mxu0 %v1647
        %1855 = vmatprep.subr.bf16.mxu0 0
        %1856 = vmatpush1.bf16.msra.mxu0 %v1646
        %1857 = vmatprep.subr.bf16.mxu0 0
        %1858 = vmatpush1.bf16.msra.mxu0 %v1645
        %1859 = vmatprep.subr.bf16.mxu0 0
        %1860 = vmatpush1.bf16.msra.mxu0 %v1644
        %1861 = vmatprep.subr.bf16.mxu0 0
        %1862 = vmatpush2.bf16.msra.mxu0 0
        %1863 = vmatprep.subr.bf16.mxu0 0
        %1864 = vmatpush2.bf16.msra.mxu0 0
        %1865 = vmatprep.subr.bf16.mxu0 0
        %1866 = vmatpush2.bf16.msra.mxu0 0
        %1867 = vmatprep.subr.bf16.mxu0 0
        %1868 = vmatpush2.bf16.msra.mxu0 0
        %1869 = vmatprep.subr.bf16.mxu0 0
        %1870 = vmatpush2.bf16.msra.mxu0 0
        %1871 = vmatprep.subr.bf16.mxu0 0
        %1872 = vmatpush2.bf16.msra.mxu0 0
        %1873 = vmatprep.subr.bf16.mxu0 0
        %1874 = vmatpush2.bf16.msra.mxu0 0
        %1875 = vmatprep.subr.bf16.mxu0 0
        %1876 = vmatpush2.bf16.msra.mxu0 0
        %1877 = vmatprep.mubr.bf16.mxu0 0
        %1878 = vmatmul.mubr.bf16.gmra.mxu0 %v1654
        %v1879 = vpop.f32.mrf.mxu0
        %v1880 = vadd.f32 %v671, %v1879
        %v1881 = vpop.f32.mrf.mxu0
        %v1882 = vpop.f32.mrf.mxu0
        %v1883 = vadd.f32 %v676, %v1882
        %v1884 = vpop.f32.mrf.mxu0
        %1885 = vmatprep.mubr.bf16.mxu0 0
        %1886 = vmatmul.mubr.bf16.gmra.mxu0 %v1657
        %v1887 = vpop.f32.mrf.mxu0
        %v1888 = vadd.f32 %v681, %v1887
        %v1889 = vpop.f32.mrf.mxu0
        %v1890 = vpop.f32.mrf.mxu0
        %v1891 = vadd.f32 %v686, %v1890
        %v1892 = vpop.f32.mrf.mxu0
        %1893 = vmatprep.mubr.bf16.mxu0 0
        %1894 = vmatmul.mubr.bf16.gmra.mxu0 %v1660
        %v1895 = vpop.f32.mrf.mxu0
        %v1896 = vadd.f32 %v691, %v1895
        %v1897 = vpop.f32.mrf.mxu0
        %v1898 = vpop.f32.mrf.mxu0
        %v1899 = vadd.f32 %v696, %v1898
        %v1900 = vpop.f32.mrf.mxu0
        %1901 = vmatprep.mubr.bf16.mxu0 0
        %1902 = vmatmul.mubr.bf16.gmra.mxu0 %v1663
        %v1903 = vpop.f32.mrf.mxu0
        %v1904 = vadd.f32 %v701, %v1903
        %v1905 = vpop.f32.mrf.mxu0
        %v1906 = vpop.f32.mrf.mxu0
        %v1907 = vadd.f32 %v706, %v1906
        %v1908 = vpop.f32.mrf.mxu0
        %1909 = vmatprep.mubr.bf16.mxu0 0
        %1910 = vmatmul.mubr.bf16.gmra.mxu0 %v1666
        %v1911 = vpop.f32.mrf.mxu0
        %v1912 = vadd.f32 %v711, %v1911
        %v1913 = vpop.f32.mrf.mxu0
        %v1914 = vpop.f32.mrf.mxu0
        %v1915 = vadd.f32 %v716, %v1914
        %v1916 = vpop.f32.mrf.mxu0
        %1917 = vmatprep.mubr.bf16.mxu0 0
        %1918 = vmatmul.mubr.bf16.gmra.mxu0 %v1669
        %v1919 = vpop.f32.mrf.mxu0
        %v1920 = vadd.f32 %v721, %v1919
        %v1921 = vpop.f32.mrf.mxu0
        %v1922 = vpop.f32.mrf.mxu0
        %v1923 = vadd.f32 %v726, %v1922
        %v1924 = vpop.f32.mrf.mxu0
        %1925 = vmatprep.mubr.bf16.mxu0 0
        %1926 = vmatmul.mubr.bf16.gmra.mxu0 %v1672
        %v1927 = vpop.f32.mrf.mxu0
        %v1928 = vadd.f32 %v731, %v1927
        %v1929 = vpop.f32.mrf.mxu0
        %v1930 = vpop.f32.mrf.mxu0
        %v1931 = vadd.f32 %v736, %v1930
        %v1932 = vpop.f32.mrf.mxu0
        %1933 = vmatprep.mubr.bf16.mxu0 0
        %1934 = vmatmul.mubr.bf16.gmra.mxu0 %v1675
        %v1935 = vpop.f32.mrf.mxu0
        %v1936 = vadd.f32 %v741, %v1935
        %v1937 = vpop.f32.mrf.mxu0
        %v1938 = vpop.f32.mrf.mxu0
        %v1939 = vadd.f32 %v746, %v1938
        %v1940 = vpop.f32.mrf.mxu0
        %1941 = vmatprep.mubr.bf16.mxu0 0
        %1942 = vmatmul.mubr.bf16.gmra.mxu0 %v1678
        %v1943 = vpop.f32.mrf.mxu0
        %v1944 = vadd.f32 %v751, %v1943
        %v1945 = vpop.f32.mrf.mxu0
        %v1946 = vpop.f32.mrf.mxu0
        %v1947 = vadd.f32 %v756, %v1946
        %v1948 = vpop.f32.mrf.mxu0
        %1949 = vmatprep.mubr.bf16.mxu0 0
        %1950 = vmatmul.mubr.bf16.gmra.mxu0 %v1681
        %v1951 = vpop.f32.mrf.mxu0
        %v1952 = vadd.f32 %v761, %v1951
        %v1953 = vpop.f32.mrf.mxu0
        %v1954 = vpop.f32.mrf.mxu0
        %v1955 = vadd.f32 %v766, %v1954
        %v1956 = vpop.f32.mrf.mxu0
        %1957 = vmatprep.mubr.bf16.mxu0 0
        %1958 = vmatmul.mubr.bf16.gmra.mxu0 %v1684
        %v1959 = vpop.f32.mrf.mxu0
        %v1960 = vadd.f32 %v771, %v1959
        %v1961 = vpop.f32.mrf.mxu0
        %v1962 = vpop.f32.mrf.mxu0
        %v1963 = vadd.f32 %v776, %v1962
        %v1964 = vpop.f32.mrf.mxu0
        %1965 = vmatprep.mubr.bf16.mxu0 0
        %1966 = vmatmul.mubr.bf16.gmra.mxu0 %v1687
        %v1967 = vpop.f32.mrf.mxu0
        %v1968 = vadd.f32 %v781, %v1967
        %v1969 = vpop.f32.mrf.mxu0
        %v1970 = vpop.f32.mrf.mxu0
        %v1971 = vadd.f32 %v786, %v1970
        %v1972 = vpop.f32.mrf.mxu0
        %1973 = vmatprep.mubr.bf16.mxu0 0
        %1974 = vmatmul.mubr.bf16.gmra.mxu0 %v1690
        %v1975 = vpop.f32.mrf.mxu0
        %v1976 = vadd.f32 %v791, %v1975
        %v1977 = vpop.f32.mrf.mxu0
        %v1978 = vpop.f32.mrf.mxu0
        %v1979 = vadd.f32 %v796, %v1978
        %v1980 = vpop.f32.mrf.mxu0
        %1981 = vmatprep.mubr.bf16.mxu0 0
        %1982 = vmatmul.mubr.bf16.gmra.mxu0 %v1693
        %v1983 = vpop.f32.mrf.mxu0
        %v1984 = vadd.f32 %v801, %v1983
        %v1985 = vpop.f32.mrf.mxu0
        %v1986 = vpop.f32.mrf.mxu0
        %v1987 = vadd.f32 %v806, %v1986
        %v1988 = vpop.f32.mrf.mxu0
        %1989 = vmatprep.mubr.bf16.mxu0 0
        %1990 = vmatmul.mubr.bf16.gmra.mxu0 %v1696
        %v1991 = vpop.f32.mrf.mxu0
        %v1992 = vadd.f32 %v811, %v1991
        %v1993 = vpop.f32.mrf.mxu0
        %v1994 = vpop.f32.mrf.mxu0
        %v1995 = vadd.f32 %v816, %v1994
        %v1996 = vpop.f32.mrf.mxu0
        %1997 = vmatprep.mubr.bf16.mxu0 0
        %1998 = vmatmul.mubr.bf16.gmra.mxu0 %v1699
        %v1999 = vpop.f32.mrf.mxu0
        %v2000 = vadd.f32 %v821, %v1999
        %v2001 = vpop.f32.mrf.mxu0
        %v2002 = vpop.f32.mrf.mxu0
        %v2003 = vadd.f32 %v826, %v2002
        %v2004 = vpop.f32.mrf.mxu0
        %2005 = vmatprep.mubr.bf16.mxu0 0
        %2006 = vmatmul.mubr.bf16.gmra.mxu0 %v1702
        %v2007 = vpop.f32.mrf.mxu0
        %v2008 = vadd.f32 %v831, %v2007
        %v2009 = vpop.f32.mrf.mxu0
        %v2010 = vpop.f32.mrf.mxu0
        %v2011 = vadd.f32 %v836, %v2010
        %v2012 = vpop.f32.mrf.mxu0
        %2013 = vmatprep.mubr.bf16.mxu0 0
        %2014 = vmatmul.mubr.bf16.gmra.mxu0 %v1705
        %v2015 = vpop.f32.mrf.mxu0
        %v2016 = vadd.f32 %v841, %v2015
        %v2017 = vpop.f32.mrf.mxu0
        %v2018 = vpop.f32.mrf.mxu0
        %v2019 = vadd.f32 %v846, %v2018
        %v2020 = vpop.f32.mrf.mxu0
        %2021 = vmatprep.mubr.bf16.mxu0 0
        %2022 = vmatmul.mubr.bf16.gmra.mxu0 %v1708
        %v2023 = vpop.f32.mrf.mxu0
        %v2024 = vadd.f32 %v851, %v2023
        %v2025 = vpop.f32.mrf.mxu0
        %v2026 = vpop.f32.mrf.mxu0
        %v2027 = vadd.f32 %v856, %v2026
        %v2028 = vpop.f32.mrf.mxu0
        %2029 = vmatprep.mubr.bf16.mxu0 0
        %2030 = vmatmul.mubr.bf16.gmra.mxu0 %v1711
        %v2031 = vpop.f32.mrf.mxu0
        %v2032 = vadd.f32 %v861, %v2031
        %v2033 = vpop.f32.mrf.mxu0
        %v2034 = vpop.f32.mrf.mxu0
        %v2035 = vadd.f32 %v866, %v2034
        %v2036 = vpop.f32.mrf.mxu0
        %2037 = vmatprep.mubr.bf16.mxu0 0
        %2038 = vmatmul.mubr.bf16.gmra.mxu0 %v1714
        %v2039 = vpop.f32.mrf.mxu0
        %v2040 = vadd.f32 %v871, %v2039
        %v2041 = vpop.f32.mrf.mxu0
        %v2042 = vpop.f32.mrf.mxu0
        %v2043 = vadd.f32 %v876, %v2042
        %v2044 = vpop.f32.mrf.mxu0
        %2045 = vmatprep.mubr.bf16.mxu0 0
        %2046 = vmatmul.mubr.bf16.gmra.mxu0 %v1717
        %v2047 = vpop.f32.mrf.mxu0
        %v2048 = vadd.f32 %v881, %v2047
        %v2049 = vpop.f32.mrf.mxu0
        %v2050 = vpop.f32.mrf.mxu0
        %v2051 = vadd.f32 %v886, %v2050
        %v2052 = vpop.f32.mrf.mxu0
        %2053 = vmatprep.mubr.bf16.mxu0 0
        %2054 = vmatmul.mubr.bf16.gmra.mxu0 %v1720
        %v2055 = vpop.f32.mrf.mxu0
        %v2056 = vadd.f32 %v891, %v2055
        %v2057 = vpop.f32.mrf.mxu0
        %v2058 = vpop.f32.mrf.mxu0
        %v2059 = vadd.f32 %v896, %v2058
        %v2060 = vpop.f32.mrf.mxu0
        %2061 = vmatprep.mubr.bf16.mxu0 0
        %2062 = vmatmul.mubr.bf16.gmra.mxu0 %v1723
        %v2063 = vpop.f32.mrf.mxu0
        %v2064 = vadd.f32 %v901, %v2063
        %v2065 = vpop.f32.mrf.mxu0
        %v2066 = vpop.f32.mrf.mxu0
        %v2067 = vadd.f32 %v906, %v2066
        %v2068 = vpop.f32.mrf.mxu0
        %2069 = vmatprep.mubr.bf16.mxu0 0
        %2070 = vmatmul.mubr.bf16.gmra.mxu0 %v1726
        %v2071 = vpop.f32.mrf.mxu0
        %v2072 = vadd.f32 %v911, %v2071
        %v2073 = vpop.f32.mrf.mxu0
        %v2074 = vpop.f32.mrf.mxu0
        %v2075 = vadd.f32 %v916, %v2074
        %v2076 = vpop.f32.mrf.mxu0
        %2077 = vmatprep.mubr.bf16.mxu0 0
        %2078 = vmatmul.mubr.bf16.gmra.mxu0 %v1729
        %v2079 = vpop.f32.mrf.mxu0
        %v2080 = vadd.f32 %v921, %v2079
        %v2081 = vpop.f32.mrf.mxu0
        %v2082 = vpop.f32.mrf.mxu0
        %v2083 = vadd.f32 %v926, %v2082
        %v2084 = vpop.f32.mrf.mxu0
        %2085 = vmatprep.mubr.bf16.mxu0 0
        %2086 = vmatmul.mubr.bf16.gmra.mxu0 %v1732
        %v2087 = vpop.f32.mrf.mxu0
        %v2088 = vadd.f32 %v931, %v2087
        %v2089 = vpop.f32.mrf.mxu0
        %v2090 = vpop.f32.mrf.mxu0
        %v2091 = vadd.f32 %v936, %v2090
        %v2092 = vpop.f32.mrf.mxu0
        %2093 = vmatprep.mubr.bf16.mxu0 0
        %2094 = vmatmul.mubr.bf16.gmra.mxu0 %v1735
        %v2095 = vpop.f32.mrf.mxu0
        %v2096 = vadd.f32 %v941, %v2095
        %v2097 = vpop.f32.mrf.mxu0
        %v2098 = vpop.f32.mrf.mxu0
        %v2099 = vadd.f32 %v946, %v2098
        %v2100 = vpop.f32.mrf.mxu0
        %2101 = vmatprep.mubr.bf16.mxu0 0
        %2102 = vmatmul.mubr.bf16.gmra.mxu0 %v1738
        %v2103 = vpop.f32.mrf.mxu0
        %v2104 = vadd.f32 %v951, %v2103
        %v2105 = vpop.f32.mrf.mxu0
        %v2106 = vpop.f32.mrf.mxu0
        %v2107 = vadd.f32 %v956, %v2106
        %v2108 = vpop.f32.mrf.mxu0
        %2109 = vmatprep.mubr.bf16.mxu0 0
        %2110 = vmatmul.mubr.bf16.gmra.mxu0 %v1741
        %v2111 = vpop.f32.mrf.mxu0
        %v2112 = vadd.f32 %v961, %v2111
        %v2113 = vpop.f32.mrf.mxu0
        %v2114 = vpop.f32.mrf.mxu0
        %v2115 = vadd.f32 %v966, %v2114
        %v2116 = vpop.f32.mrf.mxu0
        %2117 = vmatprep.mubr.bf16.mxu0 0
        %2118 = vmatmul.mubr.bf16.gmra.mxu0 %v1744
        %v2119 = vpop.f32.mrf.mxu0
        %v2120 = vadd.f32 %v971, %v2119
        %v2121 = vpop.f32.mrf.mxu0
        %v2122 = vpop.f32.mrf.mxu0
        %v2123 = vadd.f32 %v976, %v2122
        %v2124 = vpop.f32.mrf.mxu0
        %2125 = vmatprep.mubr.bf16.mxu0 0
        %2126 = vmatmul.mubr.bf16.gmra.mxu0 %v1747
        %v2127 = vpop.f32.mrf.mxu0
        %v2128 = vadd.f32 %v981, %v2127
        %v2129 = vpop.f32.mrf.mxu0
        %v2130 = vpop.f32.mrf.mxu0
        %v2131 = vadd.f32 %v986, %v2130
        %v2132 = vpop.f32.mrf.mxu0
        %2133 = vmatprep.mubr.bf16.mxu0 0
        %2134 = vmatmul.mubr.bf16.gmra.mxu0 %v1750
        %v2135 = vpop.f32.mrf.mxu0
        %v2136 = vadd.f32 %v991, %v2135
        %v2137 = vpop.f32.mrf.mxu0
        %v2138 = vpop.f32.mrf.mxu0
        %v2139 = vadd.f32 %v996, %v2138
        %v2140 = vpop.f32.mrf.mxu0
        %2141 = vmatprep.mubr.bf16.mxu0 0
        %2142 = vmatmul.mubr.bf16.gmra.mxu0 %v1753
        %v2143 = vpop.f32.mrf.mxu0
        %v2144 = vadd.f32 %v1001, %v2143
        %v2145 = vpop.f32.mrf.mxu0
        %v2146 = vpop.f32.mrf.mxu0
        %v2147 = vadd.f32 %v1006, %v2146
        %v2148 = vpop.f32.mrf.mxu0
        %2149 = vmatprep.mubr.bf16.mxu0 0
        %2150 = vmatmul.mubr.bf16.gmra.mxu0 %v1756
        %v2151 = vpop.f32.mrf.mxu0
        %v2152 = vadd.f32 %v1011, %v2151
        %v2153 = vpop.f32.mrf.mxu0
        %v2154 = vpop.f32.mrf.mxu0
        %v2155 = vadd.f32 %v1016, %v2154
        %v2156 = vpop.f32.mrf.mxu0
        %2157 = vmatprep.mubr.bf16.mxu0 0
        %2158 = vmatmul.mubr.bf16.gmra.mxu0 %v1759
        %v2159 = vpop.f32.mrf.mxu0
        %v2160 = vadd.f32 %v1021, %v2159
        %v2161 = vpop.f32.mrf.mxu0
        %v2162 = vpop.f32.mrf.mxu0
        %v2163 = vadd.f32 %v1026, %v2162
        %v2164 = vpop.f32.mrf.mxu0
        %2165 = vmatprep.mubr.bf16.mxu0 0
        %2166 = vmatmul.mubr.bf16.gmra.mxu0 %v1762
        %v2167 = vpop.f32.mrf.mxu0
        %v2168 = vadd.f32 %v1031, %v2167
        %v2169 = vpop.f32.mrf.mxu0
        %v2170 = vpop.f32.mrf.mxu0
        %v2171 = vadd.f32 %v1036, %v2170
        %v2172 = vpop.f32.mrf.mxu0
        %2173 = vmatprep.mubr.bf16.mxu0 0
        %2174 = vmatmul.mubr.bf16.gmra.mxu0 %v1765
        %v2175 = vpop.f32.mrf.mxu0
        %v2176 = vadd.f32 %v1041, %v2175
        %v2177 = vpop.f32.mrf.mxu0
        %v2178 = vpop.f32.mrf.mxu0
        %v2179 = vadd.f32 %v1046, %v2178
        %v2180 = vpop.f32.mrf.mxu0
        %2181 = vmatprep.mubr.bf16.mxu0 0
        %2182 = vmatmul.mubr.bf16.gmra.mxu0 %v1768
        %v2183 = vpop.f32.mrf.mxu0
        %v2184 = vadd.f32 %v1051, %v2183
        %v2185 = vpop.f32.mrf.mxu0
        %v2186 = vpop.f32.mrf.mxu0
        %v2187 = vadd.f32 %v1056, %v2186
        %v2188 = vpop.f32.mrf.mxu0
        %2189 = vmatprep.mubr.bf16.mxu0 0
        %2190 = vmatmul.mubr.bf16.gmra.mxu0 %v1771
        %v2191 = vpop.f32.mrf.mxu0
        %v2192 = vadd.f32 %v1061, %v2191
        %v2193 = vpop.f32.mrf.mxu0
        %v2194 = vpop.f32.mrf.mxu0
        %v2195 = vadd.f32 %v1066, %v2194
        %v2196 = vpop.f32.mrf.mxu0
        %2197 = vmatprep.mubr.bf16.mxu0 0
        %2198 = vmatmul.mubr.bf16.gmra.mxu0 %v1774
        %v2199 = vpop.f32.mrf.mxu0
        %v2200 = vadd.f32 %v1071, %v2199
        %v2201 = vpop.f32.mrf.mxu0
        %v2202 = vpop.f32.mrf.mxu0
        %v2203 = vadd.f32 %v1076, %v2202
        %v2204 = vpop.f32.mrf.mxu0
        %2205 = vmatprep.mubr.bf16.mxu0 0
        %2206 = vmatmul.mubr.bf16.gmra.mxu0 %v1777
        %v2207 = vpop.f32.mrf.mxu0
        %v2208 = vadd.f32 %v1081, %v2207
        %v2209 = vpop.f32.mrf.mxu0
        %v2210 = vpop.f32.mrf.mxu0
        %v2211 = vadd.f32 %v1086, %v2210
        %v2212 = vpop.f32.mrf.mxu0
        %2213 = vmatprep.mubr.bf16.mxu0 0
        %2214 = vmatmul.mubr.bf16.gmra.mxu0 %v1780
        %v2215 = vpop.f32.mrf.mxu0
        %v2216 = vadd.f32 %v1091, %v2215
        %v2217 = vpop.f32.mrf.mxu0
        %v2218 = vpop.f32.mrf.mxu0
        %v2219 = vadd.f32 %v1096, %v2218
        %v2220 = vpop.f32.mrf.mxu0
        %2221 = vmatprep.mubr.bf16.mxu0 0
        %2222 = vmatmul.mubr.bf16.gmra.mxu0 %v1783
        %v2223 = vpop.f32.mrf.mxu0
        %v2224 = vadd.f32 %v1101, %v2223
        %v2225 = vpop.f32.mrf.mxu0
        %v2226 = vpop.f32.mrf.mxu0
        %v2227 = vadd.f32 %v1106, %v2226
        %v2228 = vpop.f32.mrf.mxu0
        %2229 = vmatprep.mubr.bf16.mxu0 0
        %2230 = vmatmul.mubr.bf16.gmra.mxu0 %v1786
        %v2231 = vpop.f32.mrf.mxu0
        %v2232 = vadd.f32 %v1111, %v2231
        %v2233 = vpop.f32.mrf.mxu0
        %v2234 = vpop.f32.mrf.mxu0
        %v2235 = vadd.f32 %v1116, %v2234
        %v2236 = vpop.f32.mrf.mxu0
        %2237 = vmatprep.mubr.bf16.mxu0 0
        %2238 = vmatmul.mubr.bf16.gmra.mxu0 %v1789
        %v2239 = vpop.f32.mrf.mxu0
        %v2240 = vadd.f32 %v1121, %v2239
        %v2241 = vpop.f32.mrf.mxu0
        %v2242 = vpop.f32.mrf.mxu0
        %v2243 = vadd.f32 %v1126, %v2242
        %v2244 = vpop.f32.mrf.mxu0
        %2245 = vmatprep.mubr.bf16.mxu0 0
        %2246 = vmatmul.mubr.bf16.gmra.mxu0 %v1792
        %v2247 = vpop.f32.mrf.mxu0
        %v2248 = vadd.f32 %v1131, %v2247
        %v2249 = vpop.f32.mrf.mxu0
        %v2250 = vpop.f32.mrf.mxu0
        %v2251 = vadd.f32 %v1136, %v2250
        %v2252 = vpop.f32.mrf.mxu0
        %2253 = vmatprep.mubr.bf16.mxu0 0
        %2254 = vmatmul.mubr.bf16.gmra.mxu0 %v1795
        %v2255 = vpop.f32.mrf.mxu0
        %v2256 = vadd.f32 %v1141, %v2255
        %v2257 = vpop.f32.mrf.mxu0
        %v2258 = vpop.f32.mrf.mxu0
        %v2259 = vadd.f32 %v1146, %v2258
        %v2260 = vpop.f32.mrf.mxu0
        %2261 = vmatprep.mubr.bf16.mxu0 0
        %2262 = vmatmul.mubr.bf16.gmra.mxu0 %v1798
        %v2263 = vpop.f32.mrf.mxu0
        %v2264 = vadd.f32 %v1151, %v2263
        %v2265 = vpop.f32.mrf.mxu0
        %v2266 = vpop.f32.mrf.mxu0
        %v2267 = vadd.f32 %v1156, %v2266
        %v2268 = vpop.f32.mrf.mxu0
        %2269 = vmatprep.mubr.bf16.mxu0 0
        %2270 = vmatmul.mubr.bf16.gmra.mxu0 %v1801
        %v2271 = vpop.f32.mrf.mxu0
        %v2272 = vadd.f32 %v1161, %v2271
        %v2273 = vpop.f32.mrf.mxu0
        %v2274 = vpop.f32.mrf.mxu0
        %v2275 = vadd.f32 %v1166, %v2274
        %v2276 = vpop.f32.mrf.mxu0
        %2277 = vmatprep.mubr.bf16.mxu0 0
        %2278 = vmatmul.mubr.bf16.gmra.mxu0 %v1804
        %v2279 = vpop.f32.mrf.mxu0
        %v2280 = vadd.f32 %v1171, %v2279
        %v2281 = vpop.f32.mrf.mxu0
        %v2282 = vpop.f32.mrf.mxu0
        %v2283 = vadd.f32 %v1176, %v2282
        %v2284 = vpop.f32.mrf.mxu0
        %2285 = vmatprep.mubr.bf16.mxu0 0
        %2286 = vmatmul.mubr.bf16.gmra.mxu0 %v1807
        %v2287 = vpop.f32.mrf.mxu0
        %v2288 = vadd.f32 %v1181, %v2287
        %v2289 = vpop.f32.mrf.mxu0
        %v2290 = vpop.f32.mrf.mxu0
        %v2291 = vadd.f32 %v1186, %v2290
        %v2292 = vpop.f32.mrf.mxu0
        %2293 = vmatprep.mubr.bf16.mxu0 0
        %2294 = vmatmul.mubr.bf16.gmra.mxu0 %v1810
        %v2295 = vpop.f32.mrf.mxu0
        %v2296 = vadd.f32 %v1191, %v2295
        %v2297 = vpop.f32.mrf.mxu0
        %v2298 = vpop.f32.mrf.mxu0
        %v2299 = vadd.f32 %v1196, %v2298
        %v2300 = vpop.f32.mrf.mxu0
        %2301 = vmatprep.mubr.bf16.mxu0 0
        %2302 = vmatmul.mubr.bf16.gmra.mxu0 %v1813
        %v2303 = vpop.f32.mrf.mxu0
        %v2304 = vadd.f32 %v1201, %v2303
        %v2305 = vpop.f32.mrf.mxu0
        %v2306 = vpop.f32.mrf.mxu0
        %v2307 = vadd.f32 %v1206, %v2306
        %v2308 = vpop.f32.mrf.mxu0
        %2309 = vmatprep.mubr.bf16.mxu0 0
        %2310 = vmatmul.mubr.bf16.gmra.mxu0 %v1816
        %v2311 = vpop.f32.mrf.mxu0
        %v2312 = vadd.f32 %v1211, %v2311
        %v2313 = vpop.f32.mrf.mxu0
        %v2314 = vpop.f32.mrf.mxu0
        %v2315 = vadd.f32 %v1216, %v2314
        %v2316 = vpop.f32.mrf.mxu0
        %2317 = vmatprep.mubr.bf16.mxu0 0
        %2318 = vmatmul.mubr.bf16.gmra.mxu0 %v1819
        %v2319 = vpop.f32.mrf.mxu0
        %v2320 = vadd.f32 %v1221, %v2319
        %v2321 = vpop.f32.mrf.mxu0
        %v2322 = vpop.f32.mrf.mxu0
        %v2323 = vadd.f32 %v1226, %v2322
        %v2324 = vpop.f32.mrf.mxu0
        %2325 = vmatprep.mubr.bf16.mxu0 0
        %2326 = vmatmul.mubr.bf16.gmra.mxu0 %v1822
        %v2327 = vpop.f32.mrf.mxu0
        %v2328 = vadd.f32 %v1231, %v2327
        %v2329 = vpop.f32.mrf.mxu0
        %v2330 = vpop.f32.mrf.mxu0
        %v2331 = vadd.f32 %v1236, %v2330
        %v2332 = vpop.f32.mrf.mxu0
        %2333 = vmatprep.mubr.bf16.mxu0 0
        %2334 = vmatmul.mubr.bf16.gmra.mxu0 %v1825
        %v2335 = vpop.f32.mrf.mxu0
        %v2336 = vadd.f32 %v1241, %v2335
        %v2337 = vpop.f32.mrf.mxu0
        %v2338 = vpop.f32.mrf.mxu0
        %v2339 = vadd.f32 %v1246, %v2338
        %v2340 = vpop.f32.mrf.mxu0
        %2341 = vmatprep.mubr.bf16.mxu0 0
        %2342 = vmatmul.mubr.bf16.gmra.mxu0 %v1828
        %v2343 = vpop.f32.mrf.mxu0
        %v2344 = vadd.f32 %v1251, %v2343
        %v2345 = vpop.f32.mrf.mxu0
        %v2346 = vpop.f32.mrf.mxu0
        %v2347 = vadd.f32 %v1256, %v2346
        %v2348 = vpop.f32.mrf.mxu0
        %2349 = vmatprep.mubr.bf16.mxu0 0
        %2350 = vmatmul.mubr.bf16.gmra.mxu0 %v1831
        %v2351 = vpop.f32.mrf.mxu0
        %v2352 = vadd.f32 %v1261, %v2351
        %v2353 = vpop.f32.mrf.mxu0
        %v2354 = vpop.f32.mrf.mxu0
        %v2355 = vadd.f32 %v1266, %v2354
        %v2356 = vpop.f32.mrf.mxu0
        %2357 = vmatprep.mubr.bf16.mxu0 0
        %2358 = vmatmul.mubr.bf16.gmra.mxu0 %v1834
        %v2359 = vpop.f32.mrf.mxu0
        %v2360 = vadd.f32 %v1271, %v2359
        %v2361 = vpop.f32.mrf.mxu0
        %v2362 = vpop.f32.mrf.mxu0
        %v2363 = vadd.f32 %v1276, %v2362
        %v2364 = vpop.f32.mrf.mxu0
        %2365 = vmatprep.mubr.bf16.mxu0 0
        %2366 = vmatmul.mubr.bf16.gmra.mxu0 %v1837
        %v2367 = vpop.f32.mrf.mxu0
        %v2368 = vadd.f32 %v1281, %v2367
        %v2369 = vpop.f32.mrf.mxu0
        %v2370 = vpop.f32.mrf.mxu0
        %v2371 = vadd.f32 %v1286, %v2370
        %v2372 = vpop.f32.mrf.mxu0
        %2373 = vmatprep.mubr.bf16.mxu0 0
        %2374 = vmatmul.mubr.bf16.gmra.mxu0 %v1840
        %v2375 = vpop.f32.mrf.mxu0
        %v2376 = vadd.f32 %v1291, %v2375
        %v2377 = vpop.f32.mrf.mxu0
        %v2378 = vpop.f32.mrf.mxu0
        %v2379 = vadd.f32 %v1296, %v2378
        %v2380 = vpop.f32.mrf.mxu0
        %2381 = vmatprep.mubr.bf16.mxu0 0
        %2382 = vmatmul.mubr.bf16.gmra.mxu0 %v1843
        %v2383 = vpop.f32.mrf.mxu0
        %v2384 = vadd.f32 %v1301, %v2383
        %v2385 = vpop.f32.mrf.mxu0
        %v2386 = vpop.f32.mrf.mxu0
        %v2387 = vadd.f32 %v1306, %v2386
        %v2388 = vpop.f32.mrf.mxu0
        %2389 = vdwg.mxu0
        %vm2390 = vcmp.gt.f32.partialorder %v1880, 0.0
        %vm2391 = vcmp.gt.f32.partialorder %v1883, 0.0
        %vm2392 = vcmp.gt.f32.partialorder %v1888, 0.0
        %vm2393 = vcmp.gt.f32.partialorder %v1891, 0.0
        %vm2394 = vcmp.gt.f32.partialorder %v1896, 0.0
        %vm2395 = vcmp.gt.f32.partialorder %v1899, 0.0
        %vm2396 = vcmp.gt.f32.partialorder %v1904, 0.0
        %vm2397 = vcmp.gt.f32.partialorder %v1907, 0.0
        %vm2398 = vcmp.gt.f32.partialorder %v1912, 0.0
        %vm2399 = vcmp.gt.f32.partialorder %v1915, 0.0
        %vm2400 = vcmp.gt.f32.partialorder %v1920, 0.0
        %vm2401 = vcmp.gt.f32.partialorder %v1923, 0.0
        %vm2402 = vcmp.gt.f32.partialorder %v1928, 0.0
        %vm2403 = vcmp.gt.f32.partialorder %v1931, 0.0
        %vm2404 = vcmp.gt.f32.partialorder %v1936, 0.0
        %vm2405 = vcmp.gt.f32.partialorder %v1939, 0.0
        %vm2406 = vcmp.gt.f32.partialorder %v1944, 0.0
        %vm2407 = vcmp.gt.f32.partialorder %v1947, 0.0
        %vm2408 = vcmp.gt.f32.partialorder %v1952, 0.0
        %vm2409 = vcmp.gt.f32.partialorder %v1955, 0.0
        %vm2410 = vcmp.gt.f32.partialorder %v1960, 0.0
        %vm2411 = vcmp.gt.f32.partialorder %v1963, 0.0
        %vm2412 = vcmp.gt.f32.partialorder %v1968, 0.0
        %vm2413 = vcmp.gt.f32.partialorder %v1971, 0.0
        %vm2414 = vcmp.gt.f32.partialorder %v1976, 0.0
        %vm2415 = vcmp.gt.f32.partialorder %v1979, 0.0
        %vm2416 = vcmp.gt.f32.partialorder %v1984, 0.0
        %vm2417 = vcmp.gt.f32.partialorder %v1987, 0.0
        %vm2418 = vcmp.gt.f32.partialorder %v1992, 0.0
        %vm2419 = vcmp.gt.f32.partialorder %v1995, 0.0
        %vm2420 = vcmp.gt.f32.partialorder %v2000, 0.0
        %vm2421 = vcmp.gt.f32.partialorder %v2003, 0.0
        %vm2422 = vcmp.gt.f32.partialorder %v2008, 0.0
        %vm2423 = vcmp.gt.f32.partialorder %v2011, 0.0
        %vm2424 = vcmp.gt.f32.partialorder %v2016, 0.0
        %vm2425 = vcmp.gt.f32.partialorder %v2019, 0.0
        %vm2426 = vcmp.gt.f32.partialorder %v2024, 0.0
        %vm2427 = vcmp.gt.f32.partialorder %v2027, 0.0
        %vm2428 = vcmp.gt.f32.partialorder %v2032, 0.0
        %vm2429 = vcmp.gt.f32.partialorder %v2035, 0.0
        %vm2430 = vcmp.gt.f32.partialorder %v2040, 0.0
        %vm2431 = vcmp.gt.f32.partialorder %v2043, 0.0
        %vm2432 = vcmp.gt.f32.partialorder %v2048, 0.0
        %vm2433 = vcmp.gt.f32.partialorder %v2051, 0.0
        %vm2434 = vcmp.gt.f32.partialorder %v2056, 0.0
        %vm2435 = vcmp.gt.f32.partialorder %v2059, 0.0
        %vm2436 = vcmp.gt.f32.partialorder %v2064, 0.0
        %vm2437 = vcmp.gt.f32.partialorder %v2067, 0.0
        %vm2438 = vcmp.gt.f32.partialorder %v2072, 0.0
        %vm2439 = vcmp.gt.f32.partialorder %v2075, 0.0
        %vm2440 = vcmp.gt.f32.partialorder %v2080, 0.0
        %vm2441 = vcmp.gt.f32.partialorder %v2083, 0.0
        %vm2442 = vcmp.gt.f32.partialorder %v2088, 0.0
        %vm2443 = vcmp.gt.f32.partialorder %v2091, 0.0
        %vm2444 = vcmp.gt.f32.partialorder %v2096, 0.0
        %vm2445 = vcmp.gt.f32.partialorder %v2099, 0.0
        %vm2446 = vcmp.gt.f32.partialorder %v2104, 0.0
        %vm2447 = vcmp.gt.f32.partialorder %v2107, 0.0
        %vm2448 = vcmp.gt.f32.partialorder %v2112, 0.0
        %vm2449 = vcmp.gt.f32.partialorder %v2115, 0.0
        %vm2450 = vcmp.gt.f32.partialorder %v2120, 0.0
        %vm2451 = vcmp.gt.f32.partialorder %v2123, 0.0
        %vm2452 = vcmp.gt.f32.partialorder %v2128, 0.0
        %vm2453 = vcmp.gt.f32.partialorder %v2131, 0.0
        %vm2454 = vcmp.gt.f32.partialorder %v2136, 0.0
        %vm2455 = vcmp.gt.f32.partialorder %v2139, 0.0
        %vm2456 = vcmp.gt.f32.partialorder %v2144, 0.0
        %vm2457 = vcmp.gt.f32.partialorder %v2147, 0.0
        %vm2458 = vcmp.gt.f32.partialorder %v2152, 0.0
        %vm2459 = vcmp.gt.f32.partialorder %v2155, 0.0
        %vm2460 = vcmp.gt.f32.partialorder %v2160, 0.0
        %vm2461 = vcmp.gt.f32.partialorder %v2163, 0.0
        %vm2462 = vcmp.gt.f32.partialorder %v2168, 0.0
        %vm2463 = vcmp.gt.f32.partialorder %v2171, 0.0
        %vm2464 = vcmp.gt.f32.partialorder %v2176, 0.0
        %vm2465 = vcmp.gt.f32.partialorder %v2179, 0.0
        %vm2466 = vcmp.gt.f32.partialorder %v2184, 0.0
        %vm2467 = vcmp.gt.f32.partialorder %v2187, 0.0
        %vm2468 = vcmp.gt.f32.partialorder %v2192, 0.0
        %vm2469 = vcmp.gt.f32.partialorder %v2195, 0.0
        %vm2470 = vcmp.gt.f32.partialorder %v2200, 0.0
        %vm2471 = vcmp.gt.f32.partialorder %v2203, 0.0
        %vm2472 = vcmp.gt.f32.partialorder %v2208, 0.0
        %vm2473 = vcmp.gt.f32.partialorder %v2211, 0.0
        %vm2474 = vcmp.gt.f32.partialorder %v2216, 0.0
        %vm2475 = vcmp.gt.f32.partialorder %v2219, 0.0
        %vm2476 = vcmp.gt.f32.partialorder %v2224, 0.0
        %vm2477 = vcmp.gt.f32.partialorder %v2227, 0.0
        %vm2478 = vcmp.gt.f32.partialorder %v2232, 0.0
        %vm2479 = vcmp.gt.f32.partialorder %v2235, 0.0
        %vm2480 = vcmp.gt.f32.partialorder %v2240, 0.0
        %vm2481 = vcmp.gt.f32.partialorder %v2243, 0.0
        %vm2482 = vcmp.gt.f32.partialorder %v2248, 0.0
        %vm2483 = vcmp.gt.f32.partialorder %v2251, 0.0
        %vm2484 = vcmp.gt.f32.partialorder %v2256, 0.0
        %vm2485 = vcmp.gt.f32.partialorder %v2259, 0.0
        %vm2486 = vcmp.gt.f32.partialorder %v2264, 0.0
        %vm2487 = vcmp.gt.f32.partialorder %v2267, 0.0
        %vm2488 = vcmp.gt.f32.partialorder %v2272, 0.0
        %vm2489 = vcmp.gt.f32.partialorder %v2275, 0.0
        %vm2490 = vcmp.gt.f32.partialorder %v2280, 0.0
        %vm2491 = vcmp.gt.f32.partialorder %v2283, 0.0
        %vm2492 = vcmp.gt.f32.partialorder %v2288, 0.0
        %vm2493 = vcmp.gt.f32.partialorder %v2291, 0.0
        %vm2494 = vcmp.gt.f32.partialorder %v2296, 0.0
        %vm2495 = vcmp.gt.f32.partialorder %v2299, 0.0
        %vm2496 = vcmp.gt.f32.partialorder %v2304, 0.0
        %vm2497 = vcmp.gt.f32.partialorder %v2307, 0.0
        %vm2498 = vcmp.gt.f32.partialorder %v2312, 0.0
        %vm2499 = vcmp.gt.f32.partialorder %v2315, 0.0
        %vm2500 = vcmp.gt.f32.partialorder %v2320, 0.0
        %vm2501 = vcmp.gt.f32.partialorder %v2323, 0.0
        %vm2502 = vcmp.gt.f32.partialorder %v2328, 0.0
        %vm2503 = vcmp.gt.f32.partialorder %v2331, 0.0
        %vm2504 = vcmp.gt.f32.partialorder %v2336, 0.0
        %vm2505 = vcmp.gt.f32.partialorder %v2339, 0.0
        %vm2506 = vcmp.gt.f32.partialorder %v2344, 0.0
        %vm2507 = vcmp.gt.f32.partialorder %v2347, 0.0
        %vm2508 = vcmp.gt.f32.partialorder %v2352, 0.0
        %vm2509 = vcmp.gt.f32.partialorder %v2355, 0.0
        %vm2510 = vcmp.gt.f32.partialorder %v2360, 0.0
        %vm2511 = vcmp.gt.f32.partialorder %v2363, 0.0
        %vm2512 = vcmp.gt.f32.partialorder %v2368, 0.0
        %vm2513 = vcmp.gt.f32.partialorder %v2371, 0.0
        %vm2514 = vcmp.gt.f32.partialorder %v2376, 0.0
        %vm2515 = vcmp.gt.f32.partialorder %v2379, 0.0
        %vm2516 = vcmp.gt.f32.partialorder %v2384, 0.0
        %vm2517 = vcmp.gt.f32.partialorder %v2387, 0.0
        %v2518 = vmul.f32 %v1880, 0.2
        %v2519 = vmul.f32 %v1883, 0.2
        %v2520 = vmul.f32 %v1888, 0.2
        %v2521 = vmul.f32 %v1891, 0.2
        %v2522 = vmul.f32 %v1896, 0.2
        %v2523 = vmul.f32 %v1899, 0.2
        %v2524 = vmul.f32 %v1904, 0.2
        %v2525 = vmul.f32 %v1907, 0.2
        %v2526 = vmul.f32 %v1912, 0.2
        %v2527 = vmul.f32 %v1915, 0.2
        %v2528 = vmul.f32 %v1920, 0.2
        %v2529 = vmul.f32 %v1923, 0.2
        %v2530 = vmul.f32 %v1928, 0.2
        %v2531 = vmul.f32 %v1931, 0.2
        %v2532 = vmul.f32 %v1936, 0.2
        %v2533 = vmul.f32 %v1939, 0.2
        %v2534 = vmul.f32 %v1944, 0.2
        %v2535 = vmul.f32 %v1947, 0.2
        %v2536 = vmul.f32 %v1952, 0.2
        %v2537 = vmul.f32 %v1955, 0.2
        %v2538 = vmul.f32 %v1960, 0.2
        %v2539 = vmul.f32 %v1963, 0.2
        %v2540 = vmul.f32 %v1968, 0.2
        %v2541 = vmul.f32 %v1971, 0.2
        %v2542 = vmul.f32 %v1976, 0.2
        %v2543 = vmul.f32 %v1979, 0.2
        %v2544 = vmul.f32 %v1984, 0.2
        %v2545 = vmul.f32 %v1987, 0.2
        %v2546 = vmul.f32 %v1992, 0.2
        %v2547 = vmul.f32 %v1995, 0.2
        %v2548 = vmul.f32 %v2000, 0.2
        %v2549 = vmul.f32 %v2003, 0.2
        %v2550 = vmul.f32 %v2008, 0.2
        %v2551 = vmul.f32 %v2011, 0.2
        %v2552 = vmul.f32 %v2016, 0.2
        %v2553 = vmul.f32 %v2019, 0.2
        %v2554 = vmul.f32 %v2024, 0.2
        %v2555 = vmul.f32 %v2027, 0.2
        %v2556 = vmul.f32 %v2032, 0.2
        %v2557 = vmul.f32 %v2035, 0.2
        %v2558 = vmul.f32 %v2040, 0.2
        %v2559 = vmul.f32 %v2043, 0.2
        %v2560 = vmul.f32 %v2048, 0.2
        %v2561 = vmul.f32 %v2051, 0.2
        %v2562 = vmul.f32 %v2056, 0.2
        %v2563 = vmul.f32 %v2059, 0.2
        %v2564 = vmul.f32 %v2064, 0.2
        %v2565 = vmul.f32 %v2067, 0.2
        %v2566 = vmul.f32 %v2072, 0.2
        %v2567 = vmul.f32 %v2075, 0.2
        %v2568 = vmul.f32 %v2080, 0.2
        %v2569 = vmul.f32 %v2083, 0.2
        %v2570 = vmul.f32 %v2088, 0.2
        %v2571 = vmul.f32 %v2091, 0.2
        %v2572 = vmul.f32 %v2096, 0.2
        %v2573 = vmul.f32 %v2099, 0.2
        %v2574 = vmul.f32 %v2104, 0.2
        %v2575 = vmul.f32 %v2107, 0.2
        %v2576 = vmul.f32 %v2112, 0.2
        %v2577 = vmul.f32 %v2115, 0.2
        %v2578 = vmul.f32 %v2120, 0.2
        %v2579 = vmul.f32 %v2123, 0.2
        %v2580 = vmul.f32 %v2128, 0.2
        %v2581 = vmul.f32 %v2131, 0.2
        %v2582 = vmul.f32 %v2136, 0.2
        %v2583 = vmul.f32 %v2139, 0.2
        %v2584 = vmul.f32 %v2144, 0.2
        %v2585 = vmul.f32 %v2147, 0.2
        %v2586 = vmul.f32 %v2152, 0.2
        %v2587 = vmul.f32 %v2155, 0.2
        %v2588 = vmul.f32 %v2160, 0.2
        %v2589 = vmul.f32 %v2163, 0.2
        %v2590 = vmul.f32 %v2168, 0.2
        %v2591 = vmul.f32 %v2171, 0.2
        %v2592 = vmul.f32 %v2176, 0.2
        %v2593 = vmul.f32 %v2179, 0.2
        %v2594 = vmul.f32 %v2184, 0.2
        %v2595 = vmul.f32 %v2187, 0.2
        %v2596 = vmul.f32 %v2192, 0.2
        %v2597 = vmul.f32 %v2195, 0.2
        %v2598 = vmul.f32 %v2200, 0.2
        %v2599 = vmul.f32 %v2203, 0.2
        %v2600 = vmul.f32 %v2208, 0.2
        %v2601 = vmul.f32 %v2211, 0.2
        %v2602 = vmul.f32 %v2216, 0.2
        %v2603 = vmul.f32 %v2219, 0.2
        %v2604 = vmul.f32 %v2224, 0.2
        %v2605 = vmul.f32 %v2227, 0.2
        %v2606 = vmul.f32 %v2232, 0.2
        %v2607 = vmul.f32 %v2235, 0.2
        %v2608 = vmul.f32 %v2240, 0.2
        %v2609 = vmul.f32 %v2243, 0.2
        %v2610 = vmul.f32 %v2248, 0.2
        %v2611 = vmul.f32 %v2251, 0.2
        %v2612 = vmul.f32 %v2256, 0.2
        %v2613 = vmul.f32 %v2259, 0.2
        %v2614 = vmul.f32 %v2264, 0.2
        %v2615 = vmul.f32 %v2267, 0.2
        %v2616 = vmul.f32 %v2272, 0.2
        %v2617 = vmul.f32 %v2275, 0.2
        %v2618 = vmul.f32 %v2280, 0.2
        %v2619 = vmul.f32 %v2283, 0.2
        %v2620 = vmul.f32 %v2288, 0.2
        %v2621 = vmul.f32 %v2291, 0.2
        %v2622 = vmul.f32 %v2296, 0.2
        %v2623 = vmul.f32 %v2299, 0.2
        %v2624 = vmul.f32 %v2304, 0.2
        %v2625 = vmul.f32 %v2307, 0.2
        %v2626 = vmul.f32 %v2312, 0.2
        %v2627 = vmul.f32 %v2315, 0.2
        %v2628 = vmul.f32 %v2320, 0.2
        %v2629 = vmul.f32 %v2323, 0.2
        %v2630 = vmul.f32 %v2328, 0.2
        %v2631 = vmul.f32 %v2331, 0.2
        %v2632 = vmul.f32 %v2336, 0.2
        %v2633 = vmul.f32 %v2339, 0.2
        %v2634 = vmul.f32 %v2344, 0.2
        %v2635 = vmul.f32 %v2347, 0.2
        %v2636 = vmul.f32 %v2352, 0.2
        %v2637 = vmul.f32 %v2355, 0.2
        %v2638 = vmul.f32 %v2360, 0.2
        %v2639 = vmul.f32 %v2363, 0.2
        %v2640 = vmul.f32 %v2368, 0.2
        %v2641 = vmul.f32 %v2371, 0.2
        %v2642 = vmul.f32 %v2376, 0.2
        %v2643 = vmul.f32 %v2379, 0.2
        %v2644 = vmul.f32 %v2384, 0.2
        %v2645 = vmul.f32 %v2387, 0.2
        %v2646 = vsel %vm2390, %v1880, %v2518
        %v2647 = vsel %vm2391, %v1883, %v2519
        %v2648 = vsel %vm2392, %v1888, %v2520
        %v2649 = vsel %vm2393, %v1891, %v2521
        %v2650 = vsel %vm2394, %v1896, %v2522
        %v2651 = vsel %vm2395, %v1899, %v2523
        %v2652 = vsel %vm2396, %v1904, %v2524
        %v2653 = vsel %vm2397, %v1907, %v2525
        %v2654 = vsel %vm2398, %v1912, %v2526
        %v2655 = vsel %vm2399, %v1915, %v2527
        %v2656 = vsel %vm2400, %v1920, %v2528
        %v2657 = vsel %vm2401, %v1923, %v2529
        %v2658 = vsel %vm2402, %v1928, %v2530
        %v2659 = vsel %vm2403, %v1931, %v2531
        %v2660 = vsel %vm2404, %v1936, %v2532
        %v2661 = vsel %vm2405, %v1939, %v2533
        %v2662 = vsel %vm2406, %v1944, %v2534
        %v2663 = vsel %vm2407, %v1947, %v2535
        %v2664 = vsel %vm2408, %v1952, %v2536
        %v2665 = vsel %vm2409, %v1955, %v2537
        %v2666 = vsel %vm2410, %v1960, %v2538
        %v2667 = vsel %vm2411, %v1963, %v2539
        %v2668 = vsel %vm2412, %v1968, %v2540
        %v2669 = vsel %vm2413, %v1971, %v2541
        %v2670 = vsel %vm2414, %v1976, %v2542
        %v2671 = vsel %vm2415, %v1979, %v2543
        %v2672 = vsel %vm2416, %v1984, %v2544
        %v2673 = vsel %vm2417, %v1987, %v2545
        %v2674 = vsel %vm2418, %v1992, %v2546
        %v2675 = vsel %vm2419, %v1995, %v2547
        %v2676 = vsel %vm2420, %v2000, %v2548
        %v2677 = vsel %vm2421, %v2003, %v2549
        %v2678 = vsel %vm2422, %v2008, %v2550
        %v2679 = vsel %vm2423, %v2011, %v2551
        %v2680 = vsel %vm2424, %v2016, %v2552
        %v2681 = vsel %vm2425, %v2019, %v2553
        %v2682 = vsel %vm2426, %v2024, %v2554
        %v2683 = vsel %vm2427, %v2027, %v2555
        %v2684 = vsel %vm2428, %v2032, %v2556
        %v2685 = vsel %vm2429, %v2035, %v2557
        %v2686 = vsel %vm2430, %v2040, %v2558
        %v2687 = vsel %vm2431, %v2043, %v2559
        %v2688 = vsel %vm2432, %v2048, %v2560
        %v2689 = vsel %vm2433, %v2051, %v2561
        %v2690 = vsel %vm2434, %v2056, %v2562
        %v2691 = vsel %vm2435, %v2059, %v2563
        %v2692 = vsel %vm2436, %v2064, %v2564
        %v2693 = vsel %vm2437, %v2067, %v2565
        %v2694 = vsel %vm2438, %v2072, %v2566
        %v2695 = vsel %vm2439, %v2075, %v2567
        %v2696 = vsel %vm2440, %v2080, %v2568
        %v2697 = vsel %vm2441, %v2083, %v2569
        %v2698 = vsel %vm2442, %v2088, %v2570
        %v2699 = vsel %vm2443, %v2091, %v2571
        %v2700 = vsel %vm2444, %v2096, %v2572
        %v2701 = vsel %vm2445, %v2099, %v2573
        %v2702 = vsel %vm2446, %v2104, %v2574
        %v2703 = vsel %vm2447, %v2107, %v2575
        %v2704 = vsel %vm2448, %v2112, %v2576
        %v2705 = vsel %vm2449, %v2115, %v2577
        %v2706 = vsel %vm2450, %v2120, %v2578
        %v2707 = vsel %vm2451, %v2123, %v2579
        %v2708 = vsel %vm2452, %v2128, %v2580
        %v2709 = vsel %vm2453, %v2131, %v2581
        %v2710 = vsel %vm2454, %v2136, %v2582
        %v2711 = vsel %vm2455, %v2139, %v2583
        %v2712 = vsel %vm2456, %v2144, %v2584
        %v2713 = vsel %vm2457, %v2147, %v2585
        %v2714 = vsel %vm2458, %v2152, %v2586
        %v2715 = vsel %vm2459, %v2155, %v2587
        %v2716 = vsel %vm2460, %v2160, %v2588
        %v2717 = vsel %vm2461, %v2163, %v2589
        %v2718 = vsel %vm2462, %v2168, %v2590
        %v2719 = vsel %vm2463, %v2171, %v2591
        %v2720 = vsel %vm2464, %v2176, %v2592
        %v2721 = vsel %vm2465, %v2179, %v2593
        %v2722 = vsel %vm2466, %v2184, %v2594
        %v2723 = vsel %vm2467, %v2187, %v2595
        %v2724 = vsel %vm2468, %v2192, %v2596
        %v2725 = vsel %vm2469, %v2195, %v2597
        %v2726 = vsel %vm2470, %v2200, %v2598
        %v2727 = vsel %vm2471, %v2203, %v2599
        %v2728 = vsel %vm2472, %v2208, %v2600
        %v2729 = vsel %vm2473, %v2211, %v2601
        %v2730 = vsel %vm2474, %v2216, %v2602
        %v2731 = vsel %vm2475, %v2219, %v2603
        %v2732 = vsel %vm2476, %v2224, %v2604
        %v2733 = vsel %vm2477, %v2227, %v2605
        %v2734 = vsel %vm2478, %v2232, %v2606
        %v2735 = vsel %vm2479, %v2235, %v2607
        %v2736 = vsel %vm2480, %v2240, %v2608
        %v2737 = vsel %vm2481, %v2243, %v2609
        %v2738 = vsel %vm2482, %v2248, %v2610
        %v2739 = vsel %vm2483, %v2251, %v2611
        %v2740 = vsel %vm2484, %v2256, %v2612
        %v2741 = vsel %vm2485, %v2259, %v2613
        %v2742 = vsel %vm2486, %v2264, %v2614
        %v2743 = vsel %vm2487, %v2267, %v2615
        %v2744 = vsel %vm2488, %v2272, %v2616
        %v2745 = vsel %vm2489, %v2275, %v2617
        %v2746 = vsel %vm2490, %v2280, %v2618
        %v2747 = vsel %vm2491, %v2283, %v2619
        %v2748 = vsel %vm2492, %v2288, %v2620
        %v2749 = vsel %vm2493, %v2291, %v2621
        %v2750 = vsel %vm2494, %v2296, %v2622
        %v2751 = vsel %vm2495, %v2299, %v2623
        %v2752 = vsel %vm2496, %v2304, %v2624
        %v2753 = vsel %vm2497, %v2307, %v2625
        %v2754 = vsel %vm2498, %v2312, %v2626
        %v2755 = vsel %vm2499, %v2315, %v2627
        %v2756 = vsel %vm2500, %v2320, %v2628
        %v2757 = vsel %vm2501, %v2323, %v2629
        %v2758 = vsel %vm2502, %v2328, %v2630
        %v2759 = vsel %vm2503, %v2331, %v2631
        %v2760 = vsel %vm2504, %v2336, %v2632
        %v2761 = vsel %vm2505, %v2339, %v2633
        %v2762 = vsel %vm2506, %v2344, %v2634
        %v2763 = vsel %vm2507, %v2347, %v2635
        %v2764 = vsel %vm2508, %v2352, %v2636
        %v2765 = vsel %vm2509, %v2355, %v2637
        %v2766 = vsel %vm2510, %v2360, %v2638
        %v2767 = vsel %vm2511, %v2363, %v2639
        %v2768 = vsel %vm2512, %v2368, %v2640
        %v2769 = vsel %vm2513, %v2371, %v2641
        %v2770 = vsel %vm2514, %v2376, %v2642
        %v2771 = vsel %vm2515, %v2379, %v2643
        %v2772 = vsel %vm2516, %v2384, %v2644
        %v2773 = vsel %vm2517, %v2387, %v2645
        %v2774 = vld [vmem:[%s3] sm:$0xff]
        %v2775 = vld [vmem:[%s3 + $0x8] sm:$0xff]
        %v2776 = vld [vmem:[%s3 + $0x10] sm:$0xff]
        %v2777 = vld [vmem:[%s3 + $0x18] sm:$0xff]
        %v2778 = vld [vmem:[%s3 + $0x20] sm:$0xff]
        %v2779 = vld [vmem:[%s3 + $0x28] sm:$0xff]
        %v2780 = vld [vmem:[%s3 + $0x30] sm:$0xff]
        %v2781 = vld [vmem:[%s3 + $0x38] sm:$0xff]
        %v2782 = vld [vmem:[%s3 + $0x40] sm:$0xff]
        %v2783 = vld [vmem:[%s3 + $0x48] sm:$0xff]
        %v2784 = vld [vmem:[%s3 + $0x50] sm:$0xff]
        %v2785 = vld [vmem:[%s3 + $0x58] sm:$0xff]
        %v2786 = vld [vmem:[%s3 + $0x60] sm:$0xff]
        %v2787 = vld [vmem:[%s3 + $0x68] sm:$0xff]
        %v2788 = vld [vmem:[%s3 + $0x70] sm:$0xff]
        %v2789 = vld [vmem:[%s3 + $0x78] sm:$0xff]
        %v2790 = vld [vmem:[%s3 + $0x80] sm:$0xff]
        %v2791 = vld [vmem:[%s3 + $0x88] sm:$0xff]
        %v2792 = vld [vmem:[%s3 + $0x90] sm:$0xff]
        %v2793 = vld [vmem:[%s3 + $0x98] sm:$0xff]
        %v2794 = vld [vmem:[%s3 + $0xa0] sm:$0xff]
        %v2795 = vld [vmem:[%s3 + $0xa8] sm:$0xff]
        %v2796 = vld [vmem:[%s3 + $0xb0] sm:$0xff]
        %v2797 = vld [vmem:[%s3 + $0xb8] sm:$0xff]
        %v2798 = vld [vmem:[%s3 + $0xc0] sm:$0xff]
        %v2799 = vld [vmem:[%s3 + $0xc8] sm:$0xff]
        %v2800 = vld [vmem:[%s3 + $0xd0] sm:$0xff]
        %v2801 = vld [vmem:[%s3 + $0xd8] sm:$0xff]
        %v2802 = vld [vmem:[%s3 + $0xe0] sm:$0xff]
        %v2803 = vld [vmem:[%s3 + $0xe8] sm:$0xff]
        %v2804 = vld [vmem:[%s3 + $0xf0] sm:$0xff]
        %v2805 = vld [vmem:[%s3 + $0xf8] sm:$0xff]
        %v2806 = vld [vmem:[%s3 + $0x100] sm:$0xff]
        %v2807 = vld [vmem:[%s3 + $0x108] sm:$0xff]
        %v2808 = vld [vmem:[%s3 + $0x110] sm:$0xff]
        %v2809 = vld [vmem:[%s3 + $0x118] sm:$0xff]
        %v2810 = vld [vmem:[%s3 + $0x120] sm:$0xff]
        %v2811 = vld [vmem:[%s3 + $0x128] sm:$0xff]
        %v2812 = vld [vmem:[%s3 + $0x130] sm:$0xff]
        %v2813 = vld [vmem:[%s3 + $0x138] sm:$0xff]
        %v2814 = vld [vmem:[%s3 + $0x140] sm:$0xff]
        %v2815 = vld [vmem:[%s3 + $0x148] sm:$0xff]
        %v2816 = vld [vmem:[%s3 + $0x150] sm:$0xff]
        %v2817 = vld [vmem:[%s3 + $0x158] sm:$0xff]
        %v2818 = vld [vmem:[%s3 + $0x160] sm:$0xff]
        %v2819 = vld [vmem:[%s3 + $0x168] sm:$0xff]
        %v2820 = vld [vmem:[%s3 + $0x170] sm:$0xff]
        %v2821 = vld [vmem:[%s3 + $0x178] sm:$0xff]
        %v2822 = vld [vmem:[%s3 + $0x180] sm:$0xff]
        %v2823 = vld [vmem:[%s3 + $0x188] sm:$0xff]
        %v2824 = vld [vmem:[%s3 + $0x190] sm:$0xff]
        %v2825 = vld [vmem:[%s3 + $0x198] sm:$0xff]
        %v2826 = vld [vmem:[%s3 + $0x1a0] sm:$0xff]
        %v2827 = vld [vmem:[%s3 + $0x1a8] sm:$0xff]
        %v2828 = vld [vmem:[%s3 + $0x1b0] sm:$0xff]
        %v2829 = vld [vmem:[%s3 + $0x1b8] sm:$0xff]
        %v2830 = vld [vmem:[%s3 + $0x1c0] sm:$0xff]
        %v2831 = vld [vmem:[%s3 + $0x1c8] sm:$0xff]
        %v2832 = vld [vmem:[%s3 + $0x1d0] sm:$0xff]
        %v2833 = vld [vmem:[%s3 + $0x1d8] sm:$0xff]
        %v2834 = vld [vmem:[%s3 + $0x1e0] sm:$0xff]
        %v2835 = vld [vmem:[%s3 + $0x1e8] sm:$0xff]
        %v2836 = vld [vmem:[%s3 + $0x1f0] sm:$0xff]
        %v2837 = vld [vmem:[%s3 + $0x1f8] sm:$0xff]
        %v2838 = vld [vmem:[%s3 + $0x200] sm:$0xff]
        %v2839 = vld [vmem:[%s3 + $0x208] sm:$0xff]
        %v2840 = vld [vmem:[%s3 + $0x210] sm:$0xff]
        %v2841 = vld [vmem:[%s3 + $0x218] sm:$0xff]
        %v2842 = vld [vmem:[%s3 + $0x220] sm:$0xff]
        %v2843 = vld [vmem:[%s3 + $0x228] sm:$0xff]
        %v2844 = vld [vmem:[%s3 + $0x230] sm:$0xff]
        %v2845 = vld [vmem:[%s3 + $0x238] sm:$0xff]
        %v2846 = vld [vmem:[%s3 + $0x240] sm:$0xff]
        %v2847 = vld [vmem:[%s3 + $0x248] sm:$0xff]
        %v2848 = vld [vmem:[%s3 + $0x250] sm:$0xff]
        %v2849 = vld [vmem:[%s3 + $0x258] sm:$0xff]
        %v2850 = vld [vmem:[%s3 + $0x260] sm:$0xff]
        %v2851 = vld [vmem:[%s3 + $0x268] sm:$0xff]
        %v2852 = vld [vmem:[%s3 + $0x270] sm:$0xff]
        %v2853 = vld [vmem:[%s3 + $0x278] sm:$0xff]
        %v2854 = vld [vmem:[%s3 + $0x280] sm:$0xff]
        %v2855 = vld [vmem:[%s3 + $0x288] sm:$0xff]
        %v2856 = vld [vmem:[%s3 + $0x290] sm:$0xff]
        %v2857 = vld [vmem:[%s3 + $0x298] sm:$0xff]
        %v2858 = vld [vmem:[%s3 + $0x2a0] sm:$0xff]
        %v2859 = vld [vmem:[%s3 + $0x2a8] sm:$0xff]
        %v2860 = vld [vmem:[%s3 + $0x2b0] sm:$0xff]
        %v2861 = vld [vmem:[%s3 + $0x2b8] sm:$0xff]
        %v2862 = vld [vmem:[%s3 + $0x2c0] sm:$0xff]
        %v2863 = vld [vmem:[%s3 + $0x2c8] sm:$0xff]
        %v2864 = vld [vmem:[%s3 + $0x2d0] sm:$0xff]
        %v2865 = vld [vmem:[%s3 + $0x2d8] sm:$0xff]
        %v2866 = vld [vmem:[%s3 + $0x2e0] sm:$0xff]
        %v2867 = vld [vmem:[%s3 + $0x2e8] sm:$0xff]
        %v2868 = vld [vmem:[%s3 + $0x2f0] sm:$0xff]
        %v2869 = vld [vmem:[%s3 + $0x2f8] sm:$0xff]
        %v2870 = vld [vmem:[%s3 + $0x300] sm:$0xff]
        %v2871 = vld [vmem:[%s3 + $0x308] sm:$0xff]
        %v2872 = vld [vmem:[%s3 + $0x310] sm:$0xff]
        %v2873 = vld [vmem:[%s3 + $0x318] sm:$0xff]
        %v2874 = vld [vmem:[%s3 + $0x320] sm:$0xff]
        %v2875 = vld [vmem:[%s3 + $0x328] sm:$0xff]
        %v2876 = vld [vmem:[%s3 + $0x330] sm:$0xff]
        %v2877 = vld [vmem:[%s3 + $0x338] sm:$0xff]
        %v2878 = vld [vmem:[%s3 + $0x340] sm:$0xff]
        %v2879 = vld [vmem:[%s3 + $0x348] sm:$0xff]
        %v2880 = vld [vmem:[%s3 + $0x350] sm:$0xff]
        %v2881 = vld [vmem:[%s3 + $0x358] sm:$0xff]
        %v2882 = vld [vmem:[%s3 + $0x360] sm:$0xff]
        %v2883 = vld [vmem:[%s3 + $0x368] sm:$0xff]
        %v2884 = vld [vmem:[%s3 + $0x370] sm:$0xff]
        %v2885 = vld [vmem:[%s3 + $0x378] sm:$0xff]
        %v2886 = vld [vmem:[%s3 + $0x380] sm:$0xff]
        %v2887 = vld [vmem:[%s3 + $0x388] sm:$0xff]
        %v2888 = vld [vmem:[%s3 + $0x390] sm:$0xff]
        %v2889 = vld [vmem:[%s3 + $0x398] sm:$0xff]
        %v2890 = vld [vmem:[%s3 + $0x3a0] sm:$0xff]
        %v2891 = vld [vmem:[%s3 + $0x3a8] sm:$0xff]
        %v2892 = vld [vmem:[%s3 + $0x3b0] sm:$0xff]
        %v2893 = vld [vmem:[%s3 + $0x3b8] sm:$0xff]
        %v2894 = vld [vmem:[%s3 + $0x3c0] sm:$0xff]
        %v2895 = vld [vmem:[%s3 + $0x3c8] sm:$0xff]
        %v2896 = vld [vmem:[%s3 + $0x3d0] sm:$0xff]
        %v2897 = vld [vmem:[%s3 + $0x3d8] sm:$0xff]
        %v2898 = vld [vmem:[%s3 + $0x3e0] sm:$0xff]
        %v2899 = vld [vmem:[%s3 + $0x3e8] sm:$0xff]
        %v2900 = vld [vmem:[%s3 + $0x3f0] sm:$0xff]
        %v2901 = vld [vmem:[%s3 + $0x3f8] sm:$0xff]
        %v2902 = vld [vmem:[%s3 + $0x400] sm:$0xff]
        %v2903 = vld [vmem:[%s3 + $0x408] sm:$0xff]
        %v2904 = vld [vmem:[%s3 + $0x410] sm:$0xff]
        %v2905 = vld [vmem:[%s3 + $0x418] sm:$0xff]
        %v2906 = vld [vmem:[%s3 + $0x420] sm:$0xff]
        %v2907 = vld [vmem:[%s3 + $0x428] sm:$0xff]
        %v2908 = vld [vmem:[%s3 + $0x430] sm:$0xff]
        %v2909 = vld [vmem:[%s3 + $0x438] sm:$0xff]
        %v2910 = vld [vmem:[%s3 + $0x440] sm:$0xff]
        %v2911 = vld [vmem:[%s3 + $0x448] sm:$0xff]
        %v2912 = vld [vmem:[%s3 + $0x450] sm:$0xff]
        %v2913 = vld [vmem:[%s3 + $0x458] sm:$0xff]
        %v2914 = vld [vmem:[%s3 + $0x460] sm:$0xff]
        %v2915 = vld [vmem:[%s3 + $0x468] sm:$0xff]
        %v2916 = vld [vmem:[%s3 + $0x470] sm:$0xff]
        %v2917 = vld [vmem:[%s3 + $0x478] sm:$0xff]
        %v2918 = vld [vmem:[%s3 + $0x480] sm:$0xff]
        %v2919 = vld [vmem:[%s3 + $0x488] sm:$0xff]
        %v2920 = vld [vmem:[%s3 + $0x490] sm:$0xff]
        %v2921 = vld [vmem:[%s3 + $0x498] sm:$0xff]
        %v2922 = vld [vmem:[%s3 + $0x4a0] sm:$0xff]
        %v2923 = vld [vmem:[%s3 + $0x4a8] sm:$0xff]
        %v2924 = vld [vmem:[%s3 + $0x4b0] sm:$0xff]
        %v2925 = vld [vmem:[%s3 + $0x4b8] sm:$0xff]
        %v2926 = vld [vmem:[%s3 + $0x4c0] sm:$0xff]
        %v2927 = vld [vmem:[%s3 + $0x4c8] sm:$0xff]
        %v2928 = vld [vmem:[%s3 + $0x4d0] sm:$0xff]
        %v2929 = vld [vmem:[%s3 + $0x4d8] sm:$0xff]
        %v2930 = vld [vmem:[%s3 + $0x4e0] sm:$0xff]
        %v2931 = vld [vmem:[%s3 + $0x4e8] sm:$0xff]
        %v2932 = vld [vmem:[%s3 + $0x4f0] sm:$0xff]
        %v2933 = vld [vmem:[%s3 + $0x4f8] sm:$0xff]
        %v2934 = vld [vmem:[%s3 + $0x500] sm:$0xff]
        %v2935 = vld [vmem:[%s3 + $0x508] sm:$0xff]
        %v2936 = vld [vmem:[%s3 + $0x510] sm:$0xff]
        %v2937 = vld [vmem:[%s3 + $0x518] sm:$0xff]
        %v2938 = vld [vmem:[%s3 + $0x520] sm:$0xff]
        %v2939 = vld [vmem:[%s3 + $0x528] sm:$0xff]
        %v2940 = vld [vmem:[%s3 + $0x530] sm:$0xff]
        %v2941 = vld [vmem:[%s3 + $0x538] sm:$0xff]
        %v2942 = vld [vmem:[%s3 + $0x540] sm:$0xff]
        %v2943 = vld [vmem:[%s3 + $0x548] sm:$0xff]
        %v2944 = vld [vmem:[%s3 + $0x550] sm:$0xff]
        %v2945 = vld [vmem:[%s3 + $0x558] sm:$0xff]
        %v2946 = vld [vmem:[%s3 + $0x560] sm:$0xff]
        %v2947 = vld [vmem:[%s3 + $0x568] sm:$0xff]
        %v2948 = vld [vmem:[%s3 + $0x570] sm:$0xff]
        %v2949 = vld [vmem:[%s3 + $0x578] sm:$0xff]
        %v2950 = vld [vmem:[%s3 + $0x580] sm:$0xff]
        %v2951 = vld [vmem:[%s3 + $0x588] sm:$0xff]
        %v2952 = vld [vmem:[%s3 + $0x590] sm:$0xff]
        %v2953 = vld [vmem:[%s3 + $0x598] sm:$0xff]
        %v2954 = vld [vmem:[%s3 + $0x5a0] sm:$0xff]
        %v2955 = vld [vmem:[%s3 + $0x5a8] sm:$0xff]
        %v2956 = vld [vmem:[%s3 + $0x5b0] sm:$0xff]
        %v2957 = vld [vmem:[%s3 + $0x5b8] sm:$0xff]
        %v2958 = vld [vmem:[%s3 + $0x5c0] sm:$0xff]
        %v2959 = vld [vmem:[%s3 + $0x5c8] sm:$0xff]
        %v2960 = vld [vmem:[%s3 + $0x5d0] sm:$0xff]
        %v2961 = vld [vmem:[%s3 + $0x5d8] sm:$0xff]
        %v2962 = vld [vmem:[%s3 + $0x5e0] sm:$0xff]
        %v2963 = vld [vmem:[%s3 + $0x5e8] sm:$0xff]
        %v2964 = vld [vmem:[%s3 + $0x5f0] sm:$0xff]
        %v2965 = vld [vmem:[%s3 + $0x5f8] sm:$0xff]
        %v2966 = vld [vmem:[%s3 + $0x600] sm:$0xff]
        %v2967 = vld [vmem:[%s3 + $0x608] sm:$0xff]
        %v2968 = vld [vmem:[%s3 + $0x610] sm:$0xff]
        %v2969 = vld [vmem:[%s3 + $0x618] sm:$0xff]
        %v2970 = vld [vmem:[%s3 + $0x620] sm:$0xff]
        %v2971 = vld [vmem:[%s3 + $0x628] sm:$0xff]
        %v2972 = vld [vmem:[%s3 + $0x630] sm:$0xff]
        %v2973 = vld [vmem:[%s3 + $0x638] sm:$0xff]
        %v2974 = vld [vmem:[%s3 + $0x640] sm:$0xff]
        %v2975 = vld [vmem:[%s3 + $0x648] sm:$0xff]
        %v2976 = vld [vmem:[%s3 + $0x650] sm:$0xff]
        %v2977 = vld [vmem:[%s3 + $0x658] sm:$0xff]
        %v2978 = vld [vmem:[%s3 + $0x660] sm:$0xff]
        %v2979 = vld [vmem:[%s3 + $0x668] sm:$0xff]
        %v2980 = vld [vmem:[%s3 + $0x670] sm:$0xff]
        %v2981 = vld [vmem:[%s3 + $0x678] sm:$0xff]
        %v2982 = vld [vmem:[%s3 + $0x680] sm:$0xff]
        %v2983 = vld [vmem:[%s3 + $0x688] sm:$0xff]
        %v2984 = vld [vmem:[%s3 + $0x690] sm:$0xff]
        %v2985 = vld [vmem:[%s3 + $0x698] sm:$0xff]
        %v2986 = vld [vmem:[%s3 + $0x6a0] sm:$0xff]
        %v2987 = vld [vmem:[%s3 + $0x6a8] sm:$0xff]
        %v2988 = vld [vmem:[%s3 + $0x6b0] sm:$0xff]
        %v2989 = vld [vmem:[%s3 + $0x6b8] sm:$0xff]
        %v2990 = vld [vmem:[%s3 + $0x6c0] sm:$0xff]
        %v2991 = vld [vmem:[%s3 + $0x6c8] sm:$0xff]
        %v2992 = vld [vmem:[%s3 + $0x6d0] sm:$0xff]
        %v2993 = vld [vmem:[%s3 + $0x6d8] sm:$0xff]
        %v2994 = vld [vmem:[%s3 + $0x6e0] sm:$0xff]
        %v2995 = vld [vmem:[%s3 + $0x6e8] sm:$0xff]
        %v2996 = vld [vmem:[%s3 + $0x6f0] sm:$0xff]
        %v2997 = vld [vmem:[%s3 + $0x6f8] sm:$0xff]
        %v2998 = vld [vmem:[%s3 + $0x700] sm:$0xff]
        %v2999 = vld [vmem:[%s3 + $0x708] sm:$0xff]
        %v3000 = vld [vmem:[%s3 + $0x710] sm:$0xff]
        %v3001 = vld [vmem:[%s3 + $0x718] sm:$0xff]
        %v3002 = vld [vmem:[%s3 + $0x720] sm:$0xff]
        %v3003 = vld [vmem:[%s3 + $0x728] sm:$0xff]
        %v3004 = vld [vmem:[%s3 + $0x730] sm:$0xff]
        %v3005 = vld [vmem:[%s3 + $0x738] sm:$0xff]
        %v3006 = vld [vmem:[%s3 + $0x740] sm:$0xff]
        %v3007 = vld [vmem:[%s3 + $0x748] sm:$0xff]
        %v3008 = vld [vmem:[%s3 + $0x750] sm:$0xff]
        %v3009 = vld [vmem:[%s3 + $0x758] sm:$0xff]
        %v3010 = vld [vmem:[%s3 + $0x760] sm:$0xff]
        %v3011 = vld [vmem:[%s3 + $0x768] sm:$0xff]
        %v3012 = vld [vmem:[%s3 + $0x770] sm:$0xff]
        %v3013 = vld [vmem:[%s3 + $0x778] sm:$0xff]
        %v3014 = vld [vmem:[%s3 + $0x780] sm:$0xff]
        %v3015 = vld [vmem:[%s3 + $0x788] sm:$0xff]
        %v3016 = vld [vmem:[%s3 + $0x790] sm:$0xff]
        %v3017 = vld [vmem:[%s3 + $0x798] sm:$0xff]
        %v3018 = vld [vmem:[%s3 + $0x7a0] sm:$0xff]
        %v3019 = vld [vmem:[%s3 + $0x7a8] sm:$0xff]
        %v3020 = vld [vmem:[%s3 + $0x7b0] sm:$0xff]
        %v3021 = vld [vmem:[%s3 + $0x7b8] sm:$0xff]
        %v3022 = vld [vmem:[%s3 + $0x7c0] sm:$0xff]
        %v3023 = vld [vmem:[%s3 + $0x7c8] sm:$0xff]
        %v3024 = vld [vmem:[%s3 + $0x7d0] sm:$0xff]
        %v3025 = vld [vmem:[%s3 + $0x7d8] sm:$0xff]
        %v3026 = vld [vmem:[%s3 + $0x7e0] sm:$0xff]
        %v3027 = vld [vmem:[%s3 + $0x7e8] sm:$0xff]
        %v3028 = vld [vmem:[%s3 + $0x7f0] sm:$0xff]
        %v3029 = vld [vmem:[%s3 + $0x7f8] sm:$0xff]
        %v3030 = vpack.c.bf16 %v2647, %v2646
        %v3031 = vpack.c.bf16 %v2649, %v2648
        %v3032 = vpack.c.bf16 %v2651, %v2650
        %v3033 = vpack.c.bf16 %v2653, %v2652
        %v3034 = vpack.c.bf16 %v2655, %v2654
        %v3035 = vpack.c.bf16 %v2657, %v2656
        %v3036 = vpack.c.bf16 %v2659, %v2658
        %v3037 = vpack.c.bf16 %v2661, %v2660
        %v3038 = vpack.c.bf16 %v2663, %v2662
        %v3039 = vpack.c.bf16 %v2665, %v2664
        %v3040 = vpack.c.bf16 %v2667, %v2666
        %v3041 = vpack.c.bf16 %v2669, %v2668
        %v3042 = vpack.c.bf16 %v2671, %v2670
        %v3043 = vpack.c.bf16 %v2673, %v2672
        %v3044 = vpack.c.bf16 %v2675, %v2674
        %v3045 = vpack.c.bf16 %v2677, %v2676
        %v3046 = vpack.c.bf16 %v2679, %v2678
        %v3047 = vpack.c.bf16 %v2681, %v2680
        %v3048 = vpack.c.bf16 %v2683, %v2682
        %v3049 = vpack.c.bf16 %v2685, %v2684
        %v3050 = vpack.c.bf16 %v2687, %v2686
        %v3051 = vpack.c.bf16 %v2689, %v2688
        %v3052 = vpack.c.bf16 %v2691, %v2690
        %v3053 = vpack.c.bf16 %v2693, %v2692
        %v3054 = vpack.c.bf16 %v2695, %v2694
        %v3055 = vpack.c.bf16 %v2697, %v2696
        %v3056 = vpack.c.bf16 %v2699, %v2698
        %v3057 = vpack.c.bf16 %v2701, %v2700
        %v3058 = vpack.c.bf16 %v2703, %v2702
        %v3059 = vpack.c.bf16 %v2705, %v2704
        %v3060 = vpack.c.bf16 %v2707, %v2706
        %v3061 = vpack.c.bf16 %v2709, %v2708
        %v3062 = vpack.c.bf16 %v2711, %v2710
        %v3063 = vpack.c.bf16 %v2713, %v2712
        %v3064 = vpack.c.bf16 %v2715, %v2714
        %v3065 = vpack.c.bf16 %v2717, %v2716
        %v3066 = vpack.c.bf16 %v2719, %v2718
        %v3067 = vpack.c.bf16 %v2721, %v2720
        %v3068 = vpack.c.bf16 %v2723, %v2722
        %v3069 = vpack.c.bf16 %v2725, %v2724
        %v3070 = vpack.c.bf16 %v2727, %v2726
        %v3071 = vpack.c.bf16 %v2729, %v2728
        %v3072 = vpack.c.bf16 %v2731, %v2730
        %v3073 = vpack.c.bf16 %v2733, %v2732
        %v3074 = vpack.c.bf16 %v2735, %v2734
        %v3075 = vpack.c.bf16 %v2737, %v2736
        %v3076 = vpack.c.bf16 %v2739, %v2738
        %v3077 = vpack.c.bf16 %v2741, %v2740
        %v3078 = vpack.c.bf16 %v2743, %v2742
        %v3079 = vpack.c.bf16 %v2745, %v2744
        %v3080 = vpack.c.bf16 %v2747, %v2746
        %v3081 = vpack.c.bf16 %v2749, %v2748
        %v3082 = vpack.c.bf16 %v2751, %v2750
        %v3083 = vpack.c.bf16 %v2753, %v2752
        %v3084 = vpack.c.bf16 %v2755, %v2754
        %v3085 = vpack.c.bf16 %v2757, %v2756
        %v3086 = vpack.c.bf16 %v2759, %v2758
        %v3087 = vpack.c.bf16 %v2761, %v2760
        %v3088 = vpack.c.bf16 %v2763, %v2762
        %v3089 = vpack.c.bf16 %v2765, %v2764
        %v3090 = vpack.c.bf16 %v2767, %v2766
        %v3091 = vpack.c.bf16 %v2769, %v2768
        %v3092 = vpack.c.bf16 %v2771, %v2770
        %v3093 = vpack.c.bf16 %v2773, %v2772
        %v3094 = vld [vmem:[%s4] sm:$0xff]
        %v3095 = vld [vmem:[%s4 + $0x8] sm:$0xff]
        %v3096 = vld [vmem:[%s4 + $0x10] sm:$0xff]
        %v3097 = vld [vmem:[%s4 + $0x18] sm:$0xff]
        %v3098 = vld [vmem:[%s4 + $0x20] sm:$0xff]
        %v3099 = vld [vmem:[%s4 + $0x28] sm:$0xff]
        %v3100 = vld [vmem:[%s4 + $0x30] sm:$0xff]
        %v3101 = vld [vmem:[%s4 + $0x38] sm:$0xff]
        %v3102 = vld [vmem:[%s4 + $0x40] sm:$0xff]
        %v3103 = vld [vmem:[%s4 + $0x48] sm:$0xff]
        %v3104 = vld [vmem:[%s4 + $0x50] sm:$0xff]
        %v3105 = vld [vmem:[%s4 + $0x58] sm:$0xff]
        %v3106 = vld [vmem:[%s4 + $0x60] sm:$0xff]
        %v3107 = vld [vmem:[%s4 + $0x68] sm:$0xff]
        %v3108 = vld [vmem:[%s4 + $0x70] sm:$0xff]
        %v3109 = vld [vmem:[%s4 + $0x78] sm:$0xff]
        %v3110 = vld [vmem:[%s4 + $0x80] sm:$0xff]
        %v3111 = vld [vmem:[%s4 + $0x88] sm:$0xff]
        %v3112 = vld [vmem:[%s4 + $0x90] sm:$0xff]
        %v3113 = vld [vmem:[%s4 + $0x98] sm:$0xff]
        %v3114 = vld [vmem:[%s4 + $0xa0] sm:$0xff]
        %v3115 = vld [vmem:[%s4 + $0xa8] sm:$0xff]
        %v3116 = vld [vmem:[%s4 + $0xb0] sm:$0xff]
        %v3117 = vld [vmem:[%s4 + $0xb8] sm:$0xff]
        %v3118 = vld [vmem:[%s4 + $0xc0] sm:$0xff]
        %v3119 = vld [vmem:[%s4 + $0xc8] sm:$0xff]
        %v3120 = vld [vmem:[%s4 + $0xd0] sm:$0xff]
        %v3121 = vld [vmem:[%s4 + $0xd8] sm:$0xff]
        %v3122 = vld [vmem:[%s4 + $0xe0] sm:$0xff]
        %v3123 = vld [vmem:[%s4 + $0xe8] sm:$0xff]
        %v3124 = vld [vmem:[%s4 + $0xf0] sm:$0xff]
        %v3125 = vld [vmem:[%s4 + $0xf8] sm:$0xff]
        %v3126 = vld [vmem:[%s4 + $0x100] sm:$0xff]
        %v3127 = vld [vmem:[%s4 + $0x108] sm:$0xff]
        %v3128 = vld [vmem:[%s4 + $0x110] sm:$0xff]
        %v3129 = vld [vmem:[%s4 + $0x118] sm:$0xff]
        %v3130 = vld [vmem:[%s4 + $0x120] sm:$0xff]
        %v3131 = vld [vmem:[%s4 + $0x128] sm:$0xff]
        %v3132 = vld [vmem:[%s4 + $0x130] sm:$0xff]
        %v3133 = vld [vmem:[%s4 + $0x138] sm:$0xff]
        %v3134 = vld [vmem:[%s4 + $0x140] sm:$0xff]
        %v3135 = vld [vmem:[%s4 + $0x148] sm:$0xff]
        %v3136 = vld [vmem:[%s4 + $0x150] sm:$0xff]
        %v3137 = vld [vmem:[%s4 + $0x158] sm:$0xff]
        %v3138 = vld [vmem:[%s4 + $0x160] sm:$0xff]
        %v3139 = vld [vmem:[%s4 + $0x168] sm:$0xff]
        %v3140 = vld [vmem:[%s4 + $0x170] sm:$0xff]
        %v3141 = vld [vmem:[%s4 + $0x178] sm:$0xff]
        %v3142 = vld [vmem:[%s4 + $0x180] sm:$0xff]
        %v3143 = vld [vmem:[%s4 + $0x188] sm:$0xff]
        %v3144 = vld [vmem:[%s4 + $0x190] sm:$0xff]
        %v3145 = vld [vmem:[%s4 + $0x198] sm:$0xff]
        %v3146 = vld [vmem:[%s4 + $0x1a0] sm:$0xff]
        %v3147 = vld [vmem:[%s4 + $0x1a8] sm:$0xff]
        %v3148 = vld [vmem:[%s4 + $0x1b0] sm:$0xff]
        %v3149 = vld [vmem:[%s4 + $0x1b8] sm:$0xff]
        %v3150 = vld [vmem:[%s4 + $0x1c0] sm:$0xff]
        %v3151 = vld [vmem:[%s4 + $0x1c8] sm:$0xff]
        %v3152 = vld [vmem:[%s4 + $0x1d0] sm:$0xff]
        %v3153 = vld [vmem:[%s4 + $0x1d8] sm:$0xff]
        %v3154 = vld [vmem:[%s4 + $0x1e0] sm:$0xff]
        %v3155 = vld [vmem:[%s4 + $0x1e8] sm:$0xff]
        %v3156 = vld [vmem:[%s4 + $0x1f0] sm:$0xff]
        %v3157 = vld [vmem:[%s4 + $0x1f8] sm:$0xff]
        %3159 = vset.pattern.permute.xlu0 0
        %3160 = vperm.xlu0 %3159, %v3094
        %v3161 = vpop.permute.xlu0 %3160
        %3164 = vset.pattern.permute.xlu0 0
        %3165 = vperm.xlu0 %3164, %v3095
        %v3166 = vpop.permute.xlu0 %3165
        %3169 = vset.pattern.permute.xlu0 0
        %3170 = vperm.xlu0 %3169, %v3096
        %v3171 = vpop.permute.xlu0 %3170
        %3174 = vset.pattern.permute.xlu0 0
        %3175 = vperm.xlu0 %3174, %v3097
        %v3176 = vpop.permute.xlu0 %3175
        %3179 = vset.pattern.permute.xlu0 0
        %3180 = vperm.xlu0 %3179, %v3098
        %v3181 = vpop.permute.xlu0 %3180
        %3184 = vset.pattern.permute.xlu0 0
        %3185 = vperm.xlu0 %3184, %v3099
        %v3186 = vpop.permute.xlu0 %3185
        %3189 = vset.pattern.permute.xlu0 0
        %3190 = vperm.xlu0 %3189, %v3100
        %v3191 = vpop.permute.xlu0 %3190
        %3194 = vset.pattern.permute.xlu0 0
        %3195 = vperm.xlu0 %3194, %v3101
        %v3196 = vpop.permute.xlu0 %3195
        %3199 = vset.pattern.permute.xlu0 0
        %3200 = vperm.xlu0 %3199, %v3102
        %v3201 = vpop.permute.xlu0 %3200
        %3204 = vset.pattern.permute.xlu0 0
        %3205 = vperm.xlu0 %3204, %v3103
        %v3206 = vpop.permute.xlu0 %3205
        %3209 = vset.pattern.permute.xlu0 0
        %3210 = vperm.xlu0 %3209, %v3104
        %v3211 = vpop.permute.xlu0 %3210
        %3214 = vset.pattern.permute.xlu0 0
        %3215 = vperm.xlu0 %3214, %v3105
        %v3216 = vpop.permute.xlu0 %3215
        %3219 = vset.pattern.permute.xlu0 0
        %3220 = vperm.xlu0 %3219, %v3106
        %v3221 = vpop.permute.xlu0 %3220
        %3224 = vset.pattern.permute.xlu0 0
        %3225 = vperm.xlu0 %3224, %v3107
        %v3226 = vpop.permute.xlu0 %3225
        %3229 = vset.pattern.permute.xlu0 0
        %3230 = vperm.xlu0 %3229, %v3108
        %v3231 = vpop.permute.xlu0 %3230
        %3234 = vset.pattern.permute.xlu0 0
        %3235 = vperm.xlu0 %3234, %v3109
        %v3236 = vpop.permute.xlu0 %3235
        %3239 = vset.pattern.permute.xlu0 0
        %3240 = vperm.xlu0 %3239, %v3110
        %v3241 = vpop.permute.xlu0 %3240
        %3244 = vset.pattern.permute.xlu0 0
        %3245 = vperm.xlu0 %3244, %v3111
        %v3246 = vpop.permute.xlu0 %3245
        %3249 = vset.pattern.permute.xlu0 0
        %3250 = vperm.xlu0 %3249, %v3112
        %v3251 = vpop.permute.xlu0 %3250
        %3254 = vset.pattern.permute.xlu0 0
        %3255 = vperm.xlu0 %3254, %v3113
        %v3256 = vpop.permute.xlu0 %3255
        %3259 = vset.pattern.permute.xlu0 0
        %3260 = vperm.xlu0 %3259, %v3114
        %v3261 = vpop.permute.xlu0 %3260
        %3264 = vset.pattern.permute.xlu0 0
        %3265 = vperm.xlu0 %3264, %v3115
        %v3266 = vpop.permute.xlu0 %3265
        %3269 = vset.pattern.permute.xlu0 0
        %3270 = vperm.xlu0 %3269, %v3116
        %v3271 = vpop.permute.xlu0 %3270
        %3274 = vset.pattern.permute.xlu0 0
        %3275 = vperm.xlu0 %3274, %v3117
        %v3276 = vpop.permute.xlu0 %3275
        %3279 = vset.pattern.permute.xlu0 0
        %3280 = vperm.xlu0 %3279, %v3118
        %v3281 = vpop.permute.xlu0 %3280
        %3284 = vset.pattern.permute.xlu0 0
        %3285 = vperm.xlu0 %3284, %v3119
        %v3286 = vpop.permute.xlu0 %3285
        %3289 = vset.pattern.permute.xlu0 0
        %3290 = vperm.xlu0 %3289, %v3120
        %v3291 = vpop.permute.xlu0 %3290
        %3294 = vset.pattern.permute.xlu0 0
        %3295 = vperm.xlu0 %3294, %v3121
        %v3296 = vpop.permute.xlu0 %3295
        %3299 = vset.pattern.permute.xlu0 0
        %3300 = vperm.xlu0 %3299, %v3122
        %v3301 = vpop.permute.xlu0 %3300
        %3304 = vset.pattern.permute.xlu0 0
        %3305 = vperm.xlu0 %3304, %v3123
        %v3306 = vpop.permute.xlu0 %3305
        %3309 = vset.pattern.permute.xlu0 0
        %3310 = vperm.xlu0 %3309, %v3124
        %v3311 = vpop.permute.xlu0 %3310
        %3314 = vset.pattern.permute.xlu0 0
        %3315 = vperm.xlu0 %3314, %v3125
        %v3316 = vpop.permute.xlu0 %3315
        %3319 = vset.pattern.permute.xlu0 0
        %3320 = vperm.xlu0 %3319, %v3126
        %v3321 = vpop.permute.xlu0 %3320
        %3324 = vset.pattern.permute.xlu0 0
        %3325 = vperm.xlu0 %3324, %v3127
        %v3326 = vpop.permute.xlu0 %3325
        %3329 = vset.pattern.permute.xlu0 0
        %3330 = vperm.xlu0 %3329, %v3128
        %v3331 = vpop.permute.xlu0 %3330
        %3334 = vset.pattern.permute.xlu0 0
        %3335 = vperm.xlu0 %3334, %v3129
        %v3336 = vpop.permute.xlu0 %3335
        %3339 = vset.pattern.permute.xlu0 0
        %3340 = vperm.xlu0 %3339, %v3130
        %v3341 = vpop.permute.xlu0 %3340
        %3344 = vset.pattern.permute.xlu0 0
        %3345 = vperm.xlu0 %3344, %v3131
        %v3346 = vpop.permute.xlu0 %3345
        %3349 = vset.pattern.permute.xlu0 0
        %3350 = vperm.xlu0 %3349, %v3132
        %v3351 = vpop.permute.xlu0 %3350
        %3354 = vset.pattern.permute.xlu0 0
        %3355 = vperm.xlu0 %3354, %v3133
        %v3356 = vpop.permute.xlu0 %3355
        %3359 = vset.pattern.permute.xlu0 0
        %3360 = vperm.xlu0 %3359, %v3134
        %v3361 = vpop.permute.xlu0 %3360
        %3364 = vset.pattern.permute.xlu0 0
        %3365 = vperm.xlu0 %3364, %v3135
        %v3366 = vpop.permute.xlu0 %3365
        %3369 = vset.pattern.permute.xlu0 0
        %3370 = vperm.xlu0 %3369, %v3136
        %v3371 = vpop.permute.xlu0 %3370
        %3374 = vset.pattern.permute.xlu0 0
        %3375 = vperm.xlu0 %3374, %v3137
        %v3376 = vpop.permute.xlu0 %3375
        %3379 = vset.pattern.permute.xlu0 0
        %3380 = vperm.xlu0 %3379, %v3138
        %v3381 = vpop.permute.xlu0 %3380
        %3384 = vset.pattern.permute.xlu0 0
        %3385 = vperm.xlu0 %3384, %v3139
        %v3386 = vpop.permute.xlu0 %3385
        %3389 = vset.pattern.permute.xlu0 0
        %3390 = vperm.xlu0 %3389, %v3140
        %v3391 = vpop.permute.xlu0 %3390
        %3394 = vset.pattern.permute.xlu0 0
        %3395 = vperm.xlu0 %3394, %v3141
        %v3396 = vpop.permute.xlu0 %3395
        %3399 = vset.pattern.permute.xlu0 0
        %3400 = vperm.xlu0 %3399, %v3142
        %v3401 = vpop.permute.xlu0 %3400
        %3404 = vset.pattern.permute.xlu0 0
        %3405 = vperm.xlu0 %3404, %v3143
        %v3406 = vpop.permute.xlu0 %3405
        %3409 = vset.pattern.permute.xlu0 0
        %3410 = vperm.xlu0 %3409, %v3144
        %v3411 = vpop.permute.xlu0 %3410
        %3414 = vset.pattern.permute.xlu0 0
        %3415 = vperm.xlu0 %3414, %v3145
        %v3416 = vpop.permute.xlu0 %3415
        %3419 = vset.pattern.permute.xlu0 0
        %3420 = vperm.xlu0 %3419, %v3146
        %v3421 = vpop.permute.xlu0 %3420
        %3424 = vset.pattern.permute.xlu0 0
        %3425 = vperm.xlu0 %3424, %v3147
        %v3426 = vpop.permute.xlu0 %3425
        %3429 = vset.pattern.permute.xlu0 0
        %3430 = vperm.xlu0 %3429, %v3148
        %v3431 = vpop.permute.xlu0 %3430
        %3434 = vset.pattern.permute.xlu0 0
        %3435 = vperm.xlu0 %3434, %v3149
        %v3436 = vpop.permute.xlu0 %3435
        %3439 = vset.pattern.permute.xlu0 0
        %3440 = vperm.xlu0 %3439, %v3150
        %v3441 = vpop.permute.xlu0 %3440
        %3444 = vset.pattern.permute.xlu0 0
        %3445 = vperm.xlu0 %3444, %v3151
        %v3446 = vpop.permute.xlu0 %3445
        %3449 = vset.pattern.permute.xlu0 0
        %3450 = vperm.xlu0 %3449, %v3152
        %v3451 = vpop.permute.xlu0 %3450
        %3454 = vset.pattern.permute.xlu0 0
        %3455 = vperm.xlu0 %3454, %v3153
        %v3456 = vpop.permute.xlu0 %3455
        %3459 = vset.pattern.permute.xlu0 0
        %3460 = vperm.xlu0 %3459, %v3154
        %v3461 = vpop.permute.xlu0 %3460
        %3464 = vset.pattern.permute.xlu0 0
        %3465 = vperm.xlu0 %3464, %v3155
        %v3466 = vpop.permute.xlu0 %3465
        %3469 = vset.pattern.permute.xlu0 0
        %3470 = vperm.xlu0 %3469, %v3156
        %v3471 = vpop.permute.xlu0 %3470
        %3474 = vset.pattern.permute.xlu0 0
        %3475 = vperm.xlu0 %3474, %v3157
        %v3476 = vpop.permute.xlu0 %3475
        %v3734 = vunpack.c.l.b16 %v2774
        %v3735 = vunpack.c.h.b16 %v2774
        %v3736 = vunpack.c.l.b16 %v2775
        %v3737 = vunpack.c.h.b16 %v2775
        %v3738 = vunpack.c.l.b16 %v2776
        %v3739 = vunpack.c.h.b16 %v2776
        %v3740 = vunpack.c.l.b16 %v2777
        %v3741 = vunpack.c.h.b16 %v2777
        %v3742 = vunpack.c.l.b16 %v2778
        %v3743 = vunpack.c.h.b16 %v2778
        %v3744 = vunpack.c.l.b16 %v2779
        %v3745 = vunpack.c.h.b16 %v2779
        %v3746 = vunpack.c.l.b16 %v2780
        %v3747 = vunpack.c.h.b16 %v2780
        %v3748 = vunpack.c.l.b16 %v2781
        %v3749 = vunpack.c.h.b16 %v2781
        %v3750 = vunpack.c.l.b16 %v2782
        %v3751 = vunpack.c.h.b16 %v2782
        %v3752 = vunpack.c.l.b16 %v2783
        %v3753 = vunpack.c.h.b16 %v2783
        %v3754 = vunpack.c.l.b16 %v2784
        %v3755 = vunpack.c.h.b16 %v2784
        %v3756 = vunpack.c.l.b16 %v2785
        %v3757 = vunpack.c.h.b16 %v2785
        %v3758 = vunpack.c.l.b16 %v2786
        %v3759 = vunpack.c.h.b16 %v2786
        %v3760 = vunpack.c.l.b16 %v2787
        %v3761 = vunpack.c.h.b16 %v2787
        %v3762 = vunpack.c.l.b16 %v2788
        %v3763 = vunpack.c.h.b16 %v2788
        %v3764 = vunpack.c.l.b16 %v2789
        %v3765 = vunpack.c.h.b16 %v2789
        %v3766 = vunpack.c.l.b16 %v2790
        %v3767 = vunpack.c.h.b16 %v2790
        %v3768 = vunpack.c.l.b16 %v2791
        %v3769 = vunpack.c.h.b16 %v2791
        %v3770 = vunpack.c.l.b16 %v2792
        %v3771 = vunpack.c.h.b16 %v2792
        %v3772 = vunpack.c.l.b16 %v2793
        %v3773 = vunpack.c.h.b16 %v2793
        %v3774 = vunpack.c.l.b16 %v2794
        %v3775 = vunpack.c.h.b16 %v2794
        %v3776 = vunpack.c.l.b16 %v2795
        %v3777 = vunpack.c.h.b16 %v2795
        %v3778 = vunpack.c.l.b16 %v2796
        %v3779 = vunpack.c.h.b16 %v2796
        %v3780 = vunpack.c.l.b16 %v2797
        %v3781 = vunpack.c.h.b16 %v2797
        %v3782 = vunpack.c.l.b16 %v2798
        %v3783 = vunpack.c.h.b16 %v2798
        %v3784 = vunpack.c.l.b16 %v2799
        %v3785 = vunpack.c.h.b16 %v2799
        %v3786 = vunpack.c.l.b16 %v2800
        %v3787 = vunpack.c.h.b16 %v2800
        %v3788 = vunpack.c.l.b16 %v2801
        %v3789 = vunpack.c.h.b16 %v2801
        %v3790 = vunpack.c.l.b16 %v2802
        %v3791 = vunpack.c.h.b16 %v2802
        %v3792 = vunpack.c.l.b16 %v2803
        %v3793 = vunpack.c.h.b16 %v2803
        %v3794 = vunpack.c.l.b16 %v2804
        %v3795 = vunpack.c.h.b16 %v2804
        %v3796 = vunpack.c.l.b16 %v2805
        %v3797 = vunpack.c.h.b16 %v2805
        %v3798 = vunpack.c.l.b16 %v2806
        %v3799 = vunpack.c.h.b16 %v2806
        %v3800 = vunpack.c.l.b16 %v2807
        %v3801 = vunpack.c.h.b16 %v2807
        %v3802 = vunpack.c.l.b16 %v2808
        %v3803 = vunpack.c.h.b16 %v2808
        %v3804 = vunpack.c.l.b16 %v2809
        %v3805 = vunpack.c.h.b16 %v2809
        %v3806 = vunpack.c.l.b16 %v2810
        %v3807 = vunpack.c.h.b16 %v2810
        %v3808 = vunpack.c.l.b16 %v2811
        %v3809 = vunpack.c.h.b16 %v2811
        %v3810 = vunpack.c.l.b16 %v2812
        %v3811 = vunpack.c.h.b16 %v2812
        %v3812 = vunpack.c.l.b16 %v2813
        %v3813 = vunpack.c.h.b16 %v2813
        %v3814 = vunpack.c.l.b16 %v2814
        %v3815 = vunpack.c.h.b16 %v2814
        %v3816 = vunpack.c.l.b16 %v2815
        %v3817 = vunpack.c.h.b16 %v2815
        %v3818 = vunpack.c.l.b16 %v2816
        %v3819 = vunpack.c.h.b16 %v2816
        %v3820 = vunpack.c.l.b16 %v2817
        %v3821 = vunpack.c.h.b16 %v2817
        %v3822 = vunpack.c.l.b16 %v2818
        %v3823 = vunpack.c.h.b16 %v2818
        %v3824 = vunpack.c.l.b16 %v2819
        %v3825 = vunpack.c.h.b16 %v2819
        %v3826 = vunpack.c.l.b16 %v2820
        %v3827 = vunpack.c.h.b16 %v2820
        %v3828 = vunpack.c.l.b16 %v2821
        %v3829 = vunpack.c.h.b16 %v2821
        %v3830 = vunpack.c.l.b16 %v2822
        %v3831 = vunpack.c.h.b16 %v2822
        %v3832 = vunpack.c.l.b16 %v2823
        %v3833 = vunpack.c.h.b16 %v2823
        %v3834 = vunpack.c.l.b16 %v2824
        %v3835 = vunpack.c.h.b16 %v2824
        %v3836 = vunpack.c.l.b16 %v2825
        %v3837 = vunpack.c.h.b16 %v2825
        %v3838 = vunpack.c.l.b16 %v2826
        %v3839 = vunpack.c.h.b16 %v2826
        %v3840 = vunpack.c.l.b16 %v2827
        %v3841 = vunpack.c.h.b16 %v2827
        %v3842 = vunpack.c.l.b16 %v2828
        %v3843 = vunpack.c.h.b16 %v2828
        %v3844 = vunpack.c.l.b16 %v2829
        %v3845 = vunpack.c.h.b16 %v2829
        %v3846 = vunpack.c.l.b16 %v2830
        %v3847 = vunpack.c.h.b16 %v2830
        %v3848 = vunpack.c.l.b16 %v2831
        %v3849 = vunpack.c.h.b16 %v2831
        %v3850 = vunpack.c.l.b16 %v2832
        %v3851 = vunpack.c.h.b16 %v2832
        %v3852 = vunpack.c.l.b16 %v2833
        %v3853 = vunpack.c.h.b16 %v2833
        %v3854 = vunpack.c.l.b16 %v2834
        %v3855 = vunpack.c.h.b16 %v2834
        %v3856 = vunpack.c.l.b16 %v2835
        %v3857 = vunpack.c.h.b16 %v2835
        %v3858 = vunpack.c.l.b16 %v2836
        %v3859 = vunpack.c.h.b16 %v2836
        %v3860 = vunpack.c.l.b16 %v2837
        %v3861 = vunpack.c.h.b16 %v2837
        %v3862 = vunpack.c.l.b16 %v2838
        %v3863 = vunpack.c.h.b16 %v2838
        %v3864 = vunpack.c.l.b16 %v2839
        %v3865 = vunpack.c.h.b16 %v2839
        %v3866 = vunpack.c.l.b16 %v2840
        %v3867 = vunpack.c.h.b16 %v2840
        %v3868 = vunpack.c.l.b16 %v2841
        %v3869 = vunpack.c.h.b16 %v2841
        %v3870 = vunpack.c.l.b16 %v2842
        %v3871 = vunpack.c.h.b16 %v2842
        %v3872 = vunpack.c.l.b16 %v2843
        %v3873 = vunpack.c.h.b16 %v2843
        %v3874 = vunpack.c.l.b16 %v2844
        %v3875 = vunpack.c.h.b16 %v2844
        %v3876 = vunpack.c.l.b16 %v2845
        %v3877 = vunpack.c.h.b16 %v2845
        %v3878 = vunpack.c.l.b16 %v2846
        %v3879 = vunpack.c.h.b16 %v2846
        %v3880 = vunpack.c.l.b16 %v2847
        %v3881 = vunpack.c.h.b16 %v2847
        %v3882 = vunpack.c.l.b16 %v2848
        %v3883 = vunpack.c.h.b16 %v2848
        %v3884 = vunpack.c.l.b16 %v2849
        %v3885 = vunpack.c.h.b16 %v2849
        %v3886 = vunpack.c.l.b16 %v2850
        %v3887 = vunpack.c.h.b16 %v2850
        %v3888 = vunpack.c.l.b16 %v2851
        %v3889 = vunpack.c.h.b16 %v2851
        %v3890 = vunpack.c.l.b16 %v2852
        %v3891 = vunpack.c.h.b16 %v2852
        %v3892 = vunpack.c.l.b16 %v2853
        %v3893 = vunpack.c.h.b16 %v2853
        %v3894 = vunpack.c.l.b16 %v2854
        %v3895 = vunpack.c.h.b16 %v2854
        %v3896 = vunpack.c.l.b16 %v2855
        %v3897 = vunpack.c.h.b16 %v2855
        %v3898 = vunpack.c.l.b16 %v2856
        %v3899 = vunpack.c.h.b16 %v2856
        %v3900 = vunpack.c.l.b16 %v2857
        %v3901 = vunpack.c.h.b16 %v2857
        %v3902 = vunpack.c.l.b16 %v2858
        %v3903 = vunpack.c.h.b16 %v2858
        %v3904 = vunpack.c.l.b16 %v2859
        %v3905 = vunpack.c.h.b16 %v2859
        %v3906 = vunpack.c.l.b16 %v2860
        %v3907 = vunpack.c.h.b16 %v2860
        %v3908 = vunpack.c.l.b16 %v2861
        %v3909 = vunpack.c.h.b16 %v2861
        %v3910 = vunpack.c.l.b16 %v2862
        %v3911 = vunpack.c.h.b16 %v2862
        %v3912 = vunpack.c.l.b16 %v2863
        %v3913 = vunpack.c.h.b16 %v2863
        %v3914 = vunpack.c.l.b16 %v2864
        %v3915 = vunpack.c.h.b16 %v2864
        %v3916 = vunpack.c.l.b16 %v2865
        %v3917 = vunpack.c.h.b16 %v2865
        %v3918 = vunpack.c.l.b16 %v2866
        %v3919 = vunpack.c.h.b16 %v2866
        %v3920 = vunpack.c.l.b16 %v2867
        %v3921 = vunpack.c.h.b16 %v2867
        %v3922 = vunpack.c.l.b16 %v2868
        %v3923 = vunpack.c.h.b16 %v2868
        %v3924 = vunpack.c.l.b16 %v2869
        %v3925 = vunpack.c.h.b16 %v2869
        %v3926 = vunpack.c.l.b16 %v2870
        %v3927 = vunpack.c.h.b16 %v2870
        %v3928 = vunpack.c.l.b16 %v2871
        %v3929 = vunpack.c.h.b16 %v2871
        %v3930 = vunpack.c.l.b16 %v2872
        %v3931 = vunpack.c.h.b16 %v2872
        %v3932 = vunpack.c.l.b16 %v2873
        %v3933 = vunpack.c.h.b16 %v2873
        %v3934 = vunpack.c.l.b16 %v2874
        %v3935 = vunpack.c.h.b16 %v2874
        %v3936 = vunpack.c.l.b16 %v2875
        %v3937 = vunpack.c.h.b16 %v2875
        %v3938 = vunpack.c.l.b16 %v2876
        %v3939 = vunpack.c.h.b16 %v2876
        %v3940 = vunpack.c.l.b16 %v2877
        %v3941 = vunpack.c.h.b16 %v2877
        %v3942 = vunpack.c.l.b16 %v2878
        %v3943 = vunpack.c.h.b16 %v2878
        %v3944 = vunpack.c.l.b16 %v2879
        %v3945 = vunpack.c.h.b16 %v2879
        %v3946 = vunpack.c.l.b16 %v2880
        %v3947 = vunpack.c.h.b16 %v2880
        %v3948 = vunpack.c.l.b16 %v2881
        %v3949 = vunpack.c.h.b16 %v2881
        %v3950 = vunpack.c.l.b16 %v2882
        %v3951 = vunpack.c.h.b16 %v2882
        %v3952 = vunpack.c.l.b16 %v2883
        %v3953 = vunpack.c.h.b16 %v2883
        %v3954 = vunpack.c.l.b16 %v2884
        %v3955 = vunpack.c.h.b16 %v2884
        %v3956 = vunpack.c.l.b16 %v2885
        %v3957 = vunpack.c.h.b16 %v2885
        %v3958 = vunpack.c.l.b16 %v2886
        %v3959 = vunpack.c.h.b16 %v2886
        %v3960 = vunpack.c.l.b16 %v2887
        %v3961 = vunpack.c.h.b16 %v2887
        %v3962 = vunpack.c.l.b16 %v2888
        %v3963 = vunpack.c.h.b16 %v2888
        %v3964 = vunpack.c.l.b16 %v2889
        %v3965 = vunpack.c.h.b16 %v2889
        %v3966 = vunpack.c.l.b16 %v2890
        %v3967 = vunpack.c.h.b16 %v2890
        %v3968 = vunpack.c.l.b16 %v2891
        %v3969 = vunpack.c.h.b16 %v2891
        %v3970 = vunpack.c.l.b16 %v2892
        %v3971 = vunpack.c.h.b16 %v2892
        %v3972 = vunpack.c.l.b16 %v2893
        %v3973 = vunpack.c.h.b16 %v2893
        %v3974 = vunpack.c.l.b16 %v2894
        %v3975 = vunpack.c.h.b16 %v2894
        %v3976 = vunpack.c.l.b16 %v2895
        %v3977 = vunpack.c.h.b16 %v2895
        %v3978 = vunpack.c.l.b16 %v2896
        %v3979 = vunpack.c.h.b16 %v2896
        %v3980 = vunpack.c.l.b16 %v2897
        %v3981 = vunpack.c.h.b16 %v2897
        %v3982 = vunpack.c.l.b16 %v2898
        %v3983 = vunpack.c.h.b16 %v2898
        %v3984 = vunpack.c.l.b16 %v2899
        %v3985 = vunpack.c.h.b16 %v2899
        %v3986 = vunpack.c.l.b16 %v2900
        %v3987 = vunpack.c.h.b16 %v2900
        %v3988 = vunpack.c.l.b16 %v2901
        %v3989 = vunpack.c.h.b16 %v2901
        %v3990 = vunpack.c.l.b16 %v2902
        %v3991 = vunpack.c.h.b16 %v2902
        %v3992 = vunpack.c.l.b16 %v2903
        %v3993 = vunpack.c.h.b16 %v2903
        %v3994 = vunpack.c.l.b16 %v2904
        %v3995 = vunpack.c.h.b16 %v2904
        %v3996 = vunpack.c.l.b16 %v2905
        %v3997 = vunpack.c.h.b16 %v2905
        %v3998 = vunpack.c.l.b16 %v2906
        %v3999 = vunpack.c.h.b16 %v2906
        %v4000 = vunpack.c.l.b16 %v2907
        %v4001 = vunpack.c.h.b16 %v2907
        %v4002 = vunpack.c.l.b16 %v2908
        %v4003 = vunpack.c.h.b16 %v2908
        %v4004 = vunpack.c.l.b16 %v2909
        %v4005 = vunpack.c.h.b16 %v2909
        %v4006 = vunpack.c.l.b16 %v2910
        %v4007 = vunpack.c.h.b16 %v2910
        %v4008 = vunpack.c.l.b16 %v2911
        %v4009 = vunpack.c.h.b16 %v2911
        %v4010 = vunpack.c.l.b16 %v2912
        %v4011 = vunpack.c.h.b16 %v2912
        %v4012 = vunpack.c.l.b16 %v2913
        %v4013 = vunpack.c.h.b16 %v2913
        %v4014 = vunpack.c.l.b16 %v2914
        %v4015 = vunpack.c.h.b16 %v2914
        %v4016 = vunpack.c.l.b16 %v2915
        %v4017 = vunpack.c.h.b16 %v2915
        %v4018 = vunpack.c.l.b16 %v2916
        %v4019 = vunpack.c.h.b16 %v2916
        %v4020 = vunpack.c.l.b16 %v2917
        %v4021 = vunpack.c.h.b16 %v2917
        %v4022 = vunpack.c.l.b16 %v2918
        %v4023 = vunpack.c.h.b16 %v2918
        %v4024 = vunpack.c.l.b16 %v2919
        %v4025 = vunpack.c.h.b16 %v2919
        %v4026 = vunpack.c.l.b16 %v2920
        %v4027 = vunpack.c.h.b16 %v2920
        %v4028 = vunpack.c.l.b16 %v2921
        %v4029 = vunpack.c.h.b16 %v2921
        %v4030 = vunpack.c.l.b16 %v2922
        %v4031 = vunpack.c.h.b16 %v2922
        %v4032 = vunpack.c.l.b16 %v2923
        %v4033 = vunpack.c.h.b16 %v2923
        %v4034 = vunpack.c.l.b16 %v2924
        %v4035 = vunpack.c.h.b16 %v2924
        %v4036 = vunpack.c.l.b16 %v2925
        %v4037 = vunpack.c.h.b16 %v2925
        %v4038 = vunpack.c.l.b16 %v2926
        %v4039 = vunpack.c.h.b16 %v2926
        %v4040 = vunpack.c.l.b16 %v2927
        %v4041 = vunpack.c.h.b16 %v2927
        %v4042 = vunpack.c.l.b16 %v2928
        %v4043 = vunpack.c.h.b16 %v2928
        %v4044 = vunpack.c.l.b16 %v2929
        %v4045 = vunpack.c.h.b16 %v2929
        %v4046 = vunpack.c.l.b16 %v2930
        %v4047 = vunpack.c.h.b16 %v2930
        %v4048 = vunpack.c.l.b16 %v2931
        %v4049 = vunpack.c.h.b16 %v2931
        %v4050 = vunpack.c.l.b16 %v2932
        %v4051 = vunpack.c.h.b16 %v2932
        %v4052 = vunpack.c.l.b16 %v2933
        %v4053 = vunpack.c.h.b16 %v2933
        %v4054 = vunpack.c.l.b16 %v2934
        %v4055 = vunpack.c.h.b16 %v2934
        %v4056 = vunpack.c.l.b16 %v2935
        %v4057 = vunpack.c.h.b16 %v2935
        %v4058 = vunpack.c.l.b16 %v2936
        %v4059 = vunpack.c.h.b16 %v2936
        %v4060 = vunpack.c.l.b16 %v2937
        %v4061 = vunpack.c.h.b16 %v2937
        %v4062 = vunpack.c.l.b16 %v2938
        %v4063 = vunpack.c.h.b16 %v2938
        %v4064 = vunpack.c.l.b16 %v2939
        %v4065 = vunpack.c.h.b16 %v2939
        %v4066 = vunpack.c.l.b16 %v2940
        %v4067 = vunpack.c.h.b16 %v2940
        %v4068 = vunpack.c.l.b16 %v2941
        %v4069 = vunpack.c.h.b16 %v2941
        %v4070 = vunpack.c.l.b16 %v2942
        %v4071 = vunpack.c.h.b16 %v2942
        %v4072 = vunpack.c.l.b16 %v2943
        %v4073 = vunpack.c.h.b16 %v2943
        %v4074 = vunpack.c.l.b16 %v2944
        %v4075 = vunpack.c.h.b16 %v2944
        %v4076 = vunpack.c.l.b16 %v2945
        %v4077 = vunpack.c.h.b16 %v2945
        %v4078 = vunpack.c.l.b16 %v2946
        %v4079 = vunpack.c.h.b16 %v2946
        %v4080 = vunpack.c.l.b16 %v2947
        %v4081 = vunpack.c.h.b16 %v2947
        %v4082 = vunpack.c.l.b16 %v2948
        %v4083 = vunpack.c.h.b16 %v2948
        %v4084 = vunpack.c.l.b16 %v2949
        %v4085 = vunpack.c.h.b16 %v2949
        %v4086 = vunpack.c.l.b16 %v2950
        %v4087 = vunpack.c.h.b16 %v2950
        %v4088 = vunpack.c.l.b16 %v2951
        %v4089 = vunpack.c.h.b16 %v2951
        %v4090 = vunpack.c.l.b16 %v2952
        %v4091 = vunpack.c.h.b16 %v2952
        %v4092 = vunpack.c.l.b16 %v2953
        %v4093 = vunpack.c.h.b16 %v2953
        %v4094 = vunpack.c.l.b16 %v2954
        %v4095 = vunpack.c.h.b16 %v2954
        %v4096 = vunpack.c.l.b16 %v2955
        %v4097 = vunpack.c.h.b16 %v2955
        %v4098 = vunpack.c.l.b16 %v2956
        %v4099 = vunpack.c.h.b16 %v2956
        %v4100 = vunpack.c.l.b16 %v2957
        %v4101 = vunpack.c.h.b16 %v2957
        %v4102 = vunpack.c.l.b16 %v2958
        %v4103 = vunpack.c.h.b16 %v2958
        %v4104 = vunpack.c.l.b16 %v2959
        %v4105 = vunpack.c.h.b16 %v2959
        %v4106 = vunpack.c.l.b16 %v2960
        %v4107 = vunpack.c.h.b16 %v2960
        %v4108 = vunpack.c.l.b16 %v2961
        %v4109 = vunpack.c.h.b16 %v2961
        %v4110 = vunpack.c.l.b16 %v2962
        %v4111 = vunpack.c.h.b16 %v2962
        %v4112 = vunpack.c.l.b16 %v2963
        %v4113 = vunpack.c.h.b16 %v2963
        %v4114 = vunpack.c.l.b16 %v2964
        %v4115 = vunpack.c.h.b16 %v2964
        %v4116 = vunpack.c.l.b16 %v2965
        %v4117 = vunpack.c.h.b16 %v2965
        %v4118 = vunpack.c.l.b16 %v2966
        %v4119 = vunpack.c.h.b16 %v2966
        %v4120 = vunpack.c.l.b16 %v2967
        %v4121 = vunpack.c.h.b16 %v2967
        %v4122 = vunpack.c.l.b16 %v2968
        %v4123 = vunpack.c.h.b16 %v2968
        %v4124 = vunpack.c.l.b16 %v2969
        %v4125 = vunpack.c.h.b16 %v2969
        %v4126 = vunpack.c.l.b16 %v2970
        %v4127 = vunpack.c.h.b16 %v2970
        %v4128 = vunpack.c.l.b16 %v2971
        %v4129 = vunpack.c.h.b16 %v2971
        %v4130 = vunpack.c.l.b16 %v2972
        %v4131 = vunpack.c.h.b16 %v2972
        %v4132 = vunpack.c.l.b16 %v2973
        %v4133 = vunpack.c.h.b16 %v2973
        %v4134 = vunpack.c.l.b16 %v2974
        %v4135 = vunpack.c.h.b16 %v2974
        %v4136 = vunpack.c.l.b16 %v2975
        %v4137 = vunpack.c.h.b16 %v2975
        %v4138 = vunpack.c.l.b16 %v2976
        %v4139 = vunpack.c.h.b16 %v2976
        %v4140 = vunpack.c.l.b16 %v2977
        %v4141 = vunpack.c.h.b16 %v2977
        %v4142 = vunpack.c.l.b16 %v2978
        %v4143 = vunpack.c.h.b16 %v2978
        %v4144 = vunpack.c.l.b16 %v2979
        %v4145 = vunpack.c.h.b16 %v2979
        %v4146 = vunpack.c.l.b16 %v2980
        %v4147 = vunpack.c.h.b16 %v2980
        %v4148 = vunpack.c.l.b16 %v2981
        %v4149 = vunpack.c.h.b16 %v2981
        %v4150 = vunpack.c.l.b16 %v2982
        %v4151 = vunpack.c.h.b16 %v2982
        %v4152 = vunpack.c.l.b16 %v2983
        %v4153 = vunpack.c.h.b16 %v2983
        %v4154 = vunpack.c.l.b16 %v2984
        %v4155 = vunpack.c.h.b16 %v2984
        %v4156 = vunpack.c.l.b16 %v2985
        %v4157 = vunpack.c.h.b16 %v2985
        %v4158 = vunpack.c.l.b16 %v2986
        %v4159 = vunpack.c.h.b16 %v2986
        %v4160 = vunpack.c.l.b16 %v2987
        %v4161 = vunpack.c.h.b16 %v2987
        %v4162 = vunpack.c.l.b16 %v2988
        %v4163 = vunpack.c.h.b16 %v2988
        %v4164 = vunpack.c.l.b16 %v2989
        %v4165 = vunpack.c.h.b16 %v2989
        %v4166 = vunpack.c.l.b16 %v2990
        %v4167 = vunpack.c.h.b16 %v2990
        %v4168 = vunpack.c.l.b16 %v2991
        %v4169 = vunpack.c.h.b16 %v2991
        %v4170 = vunpack.c.l.b16 %v2992
        %v4171 = vunpack.c.h.b16 %v2992
        %v4172 = vunpack.c.l.b16 %v2993
        %v4173 = vunpack.c.h.b16 %v2993
        %v4174 = vunpack.c.l.b16 %v2994
        %v4175 = vunpack.c.h.b16 %v2994
        %v4176 = vunpack.c.l.b16 %v2995
        %v4177 = vunpack.c.h.b16 %v2995
        %v4178 = vunpack.c.l.b16 %v2996
        %v4179 = vunpack.c.h.b16 %v2996
        %v4180 = vunpack.c.l.b16 %v2997
        %v4181 = vunpack.c.h.b16 %v2997
        %v4182 = vunpack.c.l.b16 %v2998
        %v4183 = vunpack.c.h.b16 %v2998
        %v4184 = vunpack.c.l.b16 %v2999
        %v4185 = vunpack.c.h.b16 %v2999
        %v4186 = vunpack.c.l.b16 %v3000
        %v4187 = vunpack.c.h.b16 %v3000
        %v4188 = vunpack.c.l.b16 %v3001
        %v4189 = vunpack.c.h.b16 %v3001
        %v4190 = vunpack.c.l.b16 %v3002
        %v4191 = vunpack.c.h.b16 %v3002
        %v4192 = vunpack.c.l.b16 %v3003
        %v4193 = vunpack.c.h.b16 %v3003
        %v4194 = vunpack.c.l.b16 %v3004
        %v4195 = vunpack.c.h.b16 %v3004
        %v4196 = vunpack.c.l.b16 %v3005
        %v4197 = vunpack.c.h.b16 %v3005
        %v4198 = vunpack.c.l.b16 %v3006
        %v4199 = vunpack.c.h.b16 %v3006
        %v4200 = vunpack.c.l.b16 %v3007
        %v4201 = vunpack.c.h.b16 %v3007
        %v4202 = vunpack.c.l.b16 %v3008
        %v4203 = vunpack.c.h.b16 %v3008
        %v4204 = vunpack.c.l.b16 %v3009
        %v4205 = vunpack.c.h.b16 %v3009
        %v4206 = vunpack.c.l.b16 %v3010
        %v4207 = vunpack.c.h.b16 %v3010
        %v4208 = vunpack.c.l.b16 %v3011
        %v4209 = vunpack.c.h.b16 %v3011
        %v4210 = vunpack.c.l.b16 %v3012
        %v4211 = vunpack.c.h.b16 %v3012
        %v4212 = vunpack.c.l.b16 %v3013
        %v4213 = vunpack.c.h.b16 %v3013
        %v4214 = vunpack.c.l.b16 %v3014
        %v4215 = vunpack.c.h.b16 %v3014
        %v4216 = vunpack.c.l.b16 %v3015
        %v4217 = vunpack.c.h.b16 %v3015
        %v4218 = vunpack.c.l.b16 %v3016
        %v4219 = vunpack.c.h.b16 %v3016
        %v4220 = vunpack.c.l.b16 %v3017
        %v4221 = vunpack.c.h.b16 %v3017
        %v4222 = vunpack.c.l.b16 %v3018
        %v4223 = vunpack.c.h.b16 %v3018
        %v4224 = vunpack.c.l.b16 %v3019
        %v4225 = vunpack.c.h.b16 %v3019
        %v4226 = vunpack.c.l.b16 %v3020
        %v4227 = vunpack.c.h.b16 %v3020
        %v4228 = vunpack.c.l.b16 %v3021
        %v4229 = vunpack.c.h.b16 %v3021
        %v4230 = vunpack.c.l.b16 %v3022
        %v4231 = vunpack.c.h.b16 %v3022
        %v4232 = vunpack.c.l.b16 %v3023
        %v4233 = vunpack.c.h.b16 %v3023
        %v4234 = vunpack.c.l.b16 %v3024
        %v4235 = vunpack.c.h.b16 %v3024
        %v4236 = vunpack.c.l.b16 %v3025
        %v4237 = vunpack.c.h.b16 %v3025
        %v4238 = vunpack.c.l.b16 %v3026
        %v4239 = vunpack.c.h.b16 %v3026
        %v4240 = vunpack.c.l.b16 %v3027
        %v4241 = vunpack.c.h.b16 %v3027
        %v4242 = vunpack.c.l.b16 %v3028
        %v4243 = vunpack.c.h.b16 %v3028
        %v4244 = vunpack.c.l.b16 %v3029
        %v4245 = vunpack.c.h.b16 %v3029
        %v4246 = vpack.c.b16 %v3742, %v3734
        %v4247 = vpack.c.b16 %v3743, %v3735
        %v4248 = vpack.c.b16 %v3744, %v3736
        %v4249 = vpack.c.b16 %v3745, %v3737
        %v4250 = vpack.c.b16 %v3746, %v3738
        %v4251 = vpack.c.b16 %v3747, %v3739
        %v4252 = vpack.c.b16 %v3748, %v3740
        %v4253 = vpack.c.b16 %v3749, %v3741
        %v4254 = vpack.c.b16 %v3758, %v3750
        %v4255 = vpack.c.b16 %v3759, %v3751
        %v4256 = vpack.c.b16 %v3760, %v3752
        %v4257 = vpack.c.b16 %v3761, %v3753
        %v4258 = vpack.c.b16 %v3762, %v3754
        %v4259 = vpack.c.b16 %v3763, %v3755
        %v4260 = vpack.c.b16 %v3764, %v3756
        %v4261 = vpack.c.b16 %v3765, %v3757
        %v4262 = vpack.c.b16 %v3774, %v3766
        %v4263 = vpack.c.b16 %v3775, %v3767
        %v4264 = vpack.c.b16 %v3776, %v3768
        %v4265 = vpack.c.b16 %v3777, %v3769
        %v4266 = vpack.c.b16 %v3778, %v3770
        %v4267 = vpack.c.b16 %v3779, %v3771
        %v4268 = vpack.c.b16 %v3780, %v3772
        %v4269 = vpack.c.b16 %v3781, %v3773
        %v4270 = vpack.c.b16 %v3790, %v3782
        %v4271 = vpack.c.b16 %v3791, %v3783
        %v4272 = vpack.c.b16 %v3792, %v3784
        %v4273 = vpack.c.b16 %v3793, %v3785
        %v4274 = vpack.c.b16 %v3794, %v3786
        %v4275 = vpack.c.b16 %v3795, %v3787
        %v4276 = vpack.c.b16 %v3796, %v3788
        %v4277 = vpack.c.b16 %v3797, %v3789
        %v4278 = vpack.c.b16 %v3806, %v3798
        %v4279 = vpack.c.b16 %v3807, %v3799
        %v4280 = vpack.c.b16 %v3808, %v3800
        %v4281 = vpack.c.b16 %v3809, %v3801
        %v4282 = vpack.c.b16 %v3810, %v3802
        %v4283 = vpack.c.b16 %v3811, %v3803
        %v4284 = vpack.c.b16 %v3812, %v3804
        %v4285 = vpack.c.b16 %v3813, %v3805
        %v4286 = vpack.c.b16 %v3822, %v3814
        %v4287 = vpack.c.b16 %v3823, %v3815
        %v4288 = vpack.c.b16 %v3824, %v3816
        %v4289 = vpack.c.b16 %v3825, %v3817
        %v4290 = vpack.c.b16 %v3826, %v3818
        %v4291 = vpack.c.b16 %v3827, %v3819
        %v4292 = vpack.c.b16 %v3828, %v3820
        %v4293 = vpack.c.b16 %v3829, %v3821
        %v4294 = vpack.c.b16 %v3838, %v3830
        %v4295 = vpack.c.b16 %v3839, %v3831
        %v4296 = vpack.c.b16 %v3840, %v3832
        %v4297 = vpack.c.b16 %v3841, %v3833
        %v4298 = vpack.c.b16 %v3842, %v3834
        %v4299 = vpack.c.b16 %v3843, %v3835
        %v4300 = vpack.c.b16 %v3844, %v3836
        %v4301 = vpack.c.b16 %v3845, %v3837
        %v4302 = vpack.c.b16 %v3854, %v3846
        %v4303 = vpack.c.b16 %v3855, %v3847
        %v4304 = vpack.c.b16 %v3856, %v3848
        %v4305 = vpack.c.b16 %v3857, %v3849
        %v4306 = vpack.c.b16 %v3858, %v3850
        %v4307 = vpack.c.b16 %v3859, %v3851
        %v4308 = vpack.c.b16 %v3860, %v3852
        %v4309 = vpack.c.b16 %v3861, %v3853
        %v4310 = vpack.c.b16 %v3870, %v3862
        %v4311 = vpack.c.b16 %v3871, %v3863
        %v4312 = vpack.c.b16 %v3872, %v3864
        %v4313 = vpack.c.b16 %v3873, %v3865
        %v4314 = vpack.c.b16 %v3874, %v3866
        %v4315 = vpack.c.b16 %v3875, %v3867
        %v4316 = vpack.c.b16 %v3876, %v3868
        %v4317 = vpack.c.b16 %v3877, %v3869
        %v4318 = vpack.c.b16 %v3886, %v3878
        %v4319 = vpack.c.b16 %v3887, %v3879
        %v4320 = vpack.c.b16 %v3888, %v3880
        %v4321 = vpack.c.b16 %v3889, %v3881
        %v4322 = vpack.c.b16 %v3890, %v3882
        %v4323 = vpack.c.b16 %v3891, %v3883
        %v4324 = vpack.c.b16 %v3892, %v3884
        %v4325 = vpack.c.b16 %v3893, %v3885
        %v4326 = vpack.c.b16 %v3902, %v3894
        %v4327 = vpack.c.b16 %v3903, %v3895
        %v4328 = vpack.c.b16 %v3904, %v3896
        %v4329 = vpack.c.b16 %v3905, %v3897
        %v4330 = vpack.c.b16 %v3906, %v3898
        %v4331 = vpack.c.b16 %v3907, %v3899
        %v4332 = vpack.c.b16 %v3908, %v3900
        %v4333 = vpack.c.b16 %v3909, %v3901
        %v4334 = vpack.c.b16 %v3918, %v3910
        %v4335 = vpack.c.b16 %v3919, %v3911
        %v4336 = vpack.c.b16 %v3920, %v3912
        %v4337 = vpack.c.b16 %v3921, %v3913
        %v4338 = vpack.c.b16 %v3922, %v3914
        %v4339 = vpack.c.b16 %v3923, %v3915
        %v4340 = vpack.c.b16 %v3924, %v3916
        %v4341 = vpack.c.b16 %v3925, %v3917
        %v4342 = vpack.c.b16 %v3934, %v3926
        %v4343 = vpack.c.b16 %v3935, %v3927
        %v4344 = vpack.c.b16 %v3936, %v3928
        %v4345 = vpack.c.b16 %v3937, %v3929
        %v4346 = vpack.c.b16 %v3938, %v3930
        %v4347 = vpack.c.b16 %v3939, %v3931
        %v4348 = vpack.c.b16 %v3940, %v3932
        %v4349 = vpack.c.b16 %v3941, %v3933
        %v4350 = vpack.c.b16 %v3950, %v3942
        %v4351 = vpack.c.b16 %v3951, %v3943
        %v4352 = vpack.c.b16 %v3952, %v3944
        %v4353 = vpack.c.b16 %v3953, %v3945
        %v4354 = vpack.c.b16 %v3954, %v3946
        %v4355 = vpack.c.b16 %v3955, %v3947
        %v4356 = vpack.c.b16 %v3956, %v3948
        %v4357 = vpack.c.b16 %v3957, %v3949
        %v4358 = vpack.c.b16 %v3966, %v3958
        %v4359 = vpack.c.b16 %v3967, %v3959
        %v4360 = vpack.c.b16 %v3968, %v3960
        %v4361 = vpack.c.b16 %v3969, %v3961
        %v4362 = vpack.c.b16 %v3970, %v3962
        %v4363 = vpack.c.b16 %v3971, %v3963
        %v4364 = vpack.c.b16 %v3972, %v3964
        %v4365 = vpack.c.b16 %v3973, %v3965
        %v4366 = vpack.c.b16 %v3982, %v3974
        %v4367 = vpack.c.b16 %v3983, %v3975
        %v4368 = vpack.c.b16 %v3984, %v3976
        %v4369 = vpack.c.b16 %v3985, %v3977
        %v4370 = vpack.c.b16 %v3986, %v3978
        %v4371 = vpack.c.b16 %v3987, %v3979
        %v4372 = vpack.c.b16 %v3988, %v3980
        %v4373 = vpack.c.b16 %v3989, %v3981
        %v4374 = vpack.c.b16 %v3998, %v3990
        %v4375 = vpack.c.b16 %v3999, %v3991
        %v4376 = vpack.c.b16 %v4000, %v3992
        %v4377 = vpack.c.b16 %v4001, %v3993
        %v4378 = vpack.c.b16 %v4002, %v3994
        %v4379 = vpack.c.b16 %v4003, %v3995
        %v4380 = vpack.c.b16 %v4004, %v3996
        %v4381 = vpack.c.b16 %v4005, %v3997
        %v4382 = vpack.c.b16 %v4014, %v4006
        %v4383 = vpack.c.b16 %v4015, %v4007
        %v4384 = vpack.c.b16 %v4016, %v4008
        %v4385 = vpack.c.b16 %v4017, %v4009
        %v4386 = vpack.c.b16 %v4018, %v4010
        %v4387 = vpack.c.b16 %v4019, %v4011
        %v4388 = vpack.c.b16 %v4020, %v4012
        %v4389 = vpack.c.b16 %v4021, %v4013
        %v4390 = vpack.c.b16 %v4030, %v4022
        %v4391 = vpack.c.b16 %v4031, %v4023
        %v4392 = vpack.c.b16 %v4032, %v4024
        %v4393 = vpack.c.b16 %v4033, %v4025
        %v4394 = vpack.c.b16 %v4034, %v4026
        %v4395 = vpack.c.b16 %v4035, %v4027
        %v4396 = vpack.c.b16 %v4036, %v4028
        %v4397 = vpack.c.b16 %v4037, %v4029
        %v4398 = vpack.c.b16 %v4046, %v4038
        %v4399 = vpack.c.b16 %v4047, %v4039
        %v4400 = vpack.c.b16 %v4048, %v4040
        %v4401 = vpack.c.b16 %v4049, %v4041
        %v4402 = vpack.c.b16 %v4050, %v4042
        %v4403 = vpack.c.b16 %v4051, %v4043
        %v4404 = vpack.c.b16 %v4052, %v4044
        %v4405 = vpack.c.b16 %v4053, %v4045
        %v4406 = vpack.c.b16 %v4062, %v4054
        %v4407 = vpack.c.b16 %v4063, %v4055
        %v4408 = vpack.c.b16 %v4064, %v4056
        %v4409 = vpack.c.b16 %v4065, %v4057
        %v4410 = vpack.c.b16 %v4066, %v4058
        %v4411 = vpack.c.b16 %v4067, %v4059
        %v4412 = vpack.c.b16 %v4068, %v4060
        %v4413 = vpack.c.b16 %v4069, %v4061
        %v4414 = vpack.c.b16 %v4078, %v4070
        %v4415 = vpack.c.b16 %v4079, %v4071
        %v4416 = vpack.c.b16 %v4080, %v4072
        %v4417 = vpack.c.b16 %v4081, %v4073
        %v4418 = vpack.c.b16 %v4082, %v4074
        %v4419 = vpack.c.b16 %v4083, %v4075
        %v4420 = vpack.c.b16 %v4084, %v4076
        %v4421 = vpack.c.b16 %v4085, %v4077
        %v4422 = vpack.c.b16 %v4094, %v4086
        %v4423 = vpack.c.b16 %v4095, %v4087
        %v4424 = vpack.c.b16 %v4096, %v4088
        %v4425 = vpack.c.b16 %v4097, %v4089
        %v4426 = vpack.c.b16 %v4098, %v4090
        %v4427 = vpack.c.b16 %v4099, %v4091
        %v4428 = vpack.c.b16 %v4100, %v4092
        %v4429 = vpack.c.b16 %v4101, %v4093
        %v4430 = vpack.c.b16 %v4110, %v4102
        %v4431 = vpack.c.b16 %v4111, %v4103
        %v4432 = vpack.c.b16 %v4112, %v4104
        %v4433 = vpack.c.b16 %v4113, %v4105
        %v4434 = vpack.c.b16 %v4114, %v4106
        %v4435 = vpack.c.b16 %v4115, %v4107
        %v4436 = vpack.c.b16 %v4116, %v4108
        %v4437 = vpack.c.b16 %v4117, %v4109
        %v4438 = vpack.c.b16 %v4126, %v4118
        %v4439 = vpack.c.b16 %v4127, %v4119
        %v4440 = vpack.c.b16 %v4128, %v4120
        %v4441 = vpack.c.b16 %v4129, %v4121
        %v4442 = vpack.c.b16 %v4130, %v4122
        %v4443 = vpack.c.b16 %v4131, %v4123
        %v4444 = vpack.c.b16 %v4132, %v4124
        %v4445 = vpack.c.b16 %v4133, %v4125
        %v4446 = vpack.c.b16 %v4142, %v4134
        %v4447 = vpack.c.b16 %v4143, %v4135
        %v4448 = vpack.c.b16 %v4144, %v4136
        %v4449 = vpack.c.b16 %v4145, %v4137
        %v4450 = vpack.c.b16 %v4146, %v4138
        %v4451 = vpack.c.b16 %v4147, %v4139
        %v4452 = vpack.c.b16 %v4148, %v4140
        %v4453 = vpack.c.b16 %v4149, %v4141
        %v4454 = vpack.c.b16 %v4158, %v4150
        %v4455 = vpack.c.b16 %v4159, %v4151
        %v4456 = vpack.c.b16 %v4160, %v4152
        %v4457 = vpack.c.b16 %v4161, %v4153
        %v4458 = vpack.c.b16 %v4162, %v4154
        %v4459 = vpack.c.b16 %v4163, %v4155
        %v4460 = vpack.c.b16 %v4164, %v4156
        %v4461 = vpack.c.b16 %v4165, %v4157
        %v4462 = vpack.c.b16 %v4174, %v4166
        %v4463 = vpack.c.b16 %v4175, %v4167
        %v4464 = vpack.c.b16 %v4176, %v4168
        %v4465 = vpack.c.b16 %v4177, %v4169
        %v4466 = vpack.c.b16 %v4178, %v4170
        %v4467 = vpack.c.b16 %v4179, %v4171
        %v4468 = vpack.c.b16 %v4180, %v4172
        %v4469 = vpack.c.b16 %v4181, %v4173
        %v4470 = vpack.c.b16 %v4190, %v4182
        %v4471 = vpack.c.b16 %v4191, %v4183
        %v4472 = vpack.c.b16 %v4192, %v4184
        %v4473 = vpack.c.b16 %v4193, %v4185
        %v4474 = vpack.c.b16 %v4194, %v4186
        %v4475 = vpack.c.b16 %v4195, %v4187
        %v4476 = vpack.c.b16 %v4196, %v4188
        %v4477 = vpack.c.b16 %v4197, %v4189
        %v4478 = vpack.c.b16 %v4206, %v4198
        %v4479 = vpack.c.b16 %v4207, %v4199
        %v4480 = vpack.c.b16 %v4208, %v4200
        %v4481 = vpack.c.b16 %v4209, %v4201
        %v4482 = vpack.c.b16 %v4210, %v4202
        %v4483 = vpack.c.b16 %v4211, %v4203
        %v4484 = vpack.c.b16 %v4212, %v4204
        %v4485 = vpack.c.b16 %v4213, %v4205
        %v4486 = vpack.c.b16 %v4222, %v4214
        %v4487 = vpack.c.b16 %v4223, %v4215
        %v4488 = vpack.c.b16 %v4224, %v4216
        %v4489 = vpack.c.b16 %v4225, %v4217
        %v4490 = vpack.c.b16 %v4226, %v4218
        %v4491 = vpack.c.b16 %v4227, %v4219
        %v4492 = vpack.c.b16 %v4228, %v4220
        %v4493 = vpack.c.b16 %v4229, %v4221
        %v4494 = vpack.c.b16 %v4238, %v4230
        %v4495 = vpack.c.b16 %v4239, %v4231
        %v4496 = vpack.c.b16 %v4240, %v4232
        %v4497 = vpack.c.b16 %v4241, %v4233
        %v4498 = vpack.c.b16 %v4242, %v4234
        %v4499 = vpack.c.b16 %v4243, %v4235
        %v4500 = vpack.c.b16 %v4244, %v4236
        %v4501 = vpack.c.b16 %v4245, %v4237
        %4758 = vmatprep.subr.bf16.mxu0 0
        %4759 = vmatpush1.bf16.msra.mxu0 %v3037
        %4760 = vmatprep.subr.bf16.mxu0 0
        %4761 = vmatpush1.bf16.msra.mxu0 %v3036
        %4762 = vmatprep.subr.bf16.mxu0 0
        %4763 = vmatpush1.bf16.msra.mxu0 %v3035
        %4764 = vmatprep.subr.bf16.mxu0 0
        %4765 = vmatpush1.bf16.msra.mxu0 %v3034
        %4766 = vmatprep.subr.bf16.mxu0 0
        %4767 = vmatpush1.bf16.msra.mxu0 %v3033
        %4768 = vmatprep.subr.bf16.mxu0 0
        %4769 = vmatpush1.bf16.msra.mxu0 %v3032
        %4770 = vmatprep.subr.bf16.mxu0 0
        %4771 = vmatpush1.bf16.msra.mxu0 %v3031
        %4772 = vmatprep.subr.bf16.mxu0 0
        %4773 = vmatpush1.bf16.msra.mxu0 %v3030
        %4774 = vmatprep.subr.bf16.mxu0 0
        %4775 = vmatpush2.bf16.msra.mxu0 %v3045
        %4776 = vmatprep.subr.bf16.mxu0 0
        %4777 = vmatpush2.bf16.msra.mxu0 %v3044
        %4778 = vmatprep.subr.bf16.mxu0 0
        %4779 = vmatpush2.bf16.msra.mxu0 %v3043
        %4780 = vmatprep.subr.bf16.mxu0 0
        %4781 = vmatpush2.bf16.msra.mxu0 %v3042
        %4782 = vmatprep.subr.bf16.mxu0 0
        %4783 = vmatpush2.bf16.msra.mxu0 %v3041
        %4784 = vmatprep.subr.bf16.mxu0 0
        %4785 = vmatpush2.bf16.msra.mxu0 %v3040
        %4786 = vmatprep.subr.bf16.mxu0 0
        %4787 = vmatpush2.bf16.msra.mxu0 %v3039
        %4788 = vmatprep.subr.bf16.mxu0 0
        %4789 = vmatpush2.bf16.msra.mxu0 %v3038
        %4790 = vmatprep.mubr.bf16.mxu0 %v4247
        %4791 = vmatmul.mubr.bf16.gmra.mxu0 %v4246
        %v4792 = vpop.f32.mrf.mxu0
        %v4793 = vadd.f32 %v3161, %v4792
        %v4794 = vpop.f32.mrf.mxu0
        %v4795 = vpop.f32.mrf.mxu0
        %v4796 = vadd.f32 %v3166, %v4795
        %v4797 = vpop.f32.mrf.mxu0
        %4798 = vmatprep.mubr.bf16.mxu0 %v4255
        %4799 = vmatmul.mubr.bf16.gmra.mxu0 %v4254
        %v4800 = vpop.f32.mrf.mxu0
        %v4801 = vadd.f32 %v3171, %v4800
        %v4802 = vpop.f32.mrf.mxu0
        %v4803 = vpop.f32.mrf.mxu0
        %v4804 = vadd.f32 %v3176, %v4803
        %v4805 = vpop.f32.mrf.mxu0
        %4806 = vmatprep.mubr.bf16.mxu0 %v4263
        %4807 = vmatmul.mubr.bf16.gmra.mxu0 %v4262
        %v4808 = vpop.f32.mrf.mxu0
        %v4809 = vadd.f32 %v3181, %v4808
        %v4810 = vpop.f32.mrf.mxu0
        %v4811 = vpop.f32.mrf.mxu0
        %v4812 = vadd.f32 %v3186, %v4811
        %v4813 = vpop.f32.mrf.mxu0
        %4814 = vmatprep.mubr.bf16.mxu0 %v4271
        %4815 = vmatmul.mubr.bf16.gmra.mxu0 %v4270
        %v4816 = vpop.f32.mrf.mxu0
        %v4817 = vadd.f32 %v3191, %v4816
        %v4818 = vpop.f32.mrf.mxu0
        %v4819 = vpop.f32.mrf.mxu0
        %v4820 = vadd.f32 %v3196, %v4819
        %v4821 = vpop.f32.mrf.mxu0
        %4822 = vmatprep.mubr.bf16.mxu0 %v4279
        %4823 = vmatmul.mubr.bf16.gmra.mxu0 %v4278
        %v4824 = vpop.f32.mrf.mxu0
        %v4825 = vadd.f32 %v3201, %v4824
        %v4826 = vpop.f32.mrf.mxu0
        %v4827 = vpop.f32.mrf.mxu0
        %v4828 = vadd.f32 %v3206, %v4827
        %v4829 = vpop.f32.mrf.mxu0
        %4830 = vmatprep.mubr.bf16.mxu0 %v4287
        %4831 = vmatmul.mubr.bf16.gmra.mxu0 %v4286
        %v4832 = vpop.f32.mrf.mxu0
        %v4833 = vadd.f32 %v3211, %v4832
        %v4834 = vpop.f32.mrf.mxu0
        %v4835 = vpop.f32.mrf.mxu0
        %v4836 = vadd.f32 %v3216, %v4835
        %v4837 = vpop.f32.mrf.mxu0
        %4838 = vmatprep.mubr.bf16.mxu0 %v4295
        %4839 = vmatmul.mubr.bf16.gmra.mxu0 %v4294
        %v4840 = vpop.f32.mrf.mxu0
        %v4841 = vadd.f32 %v3221, %v4840
        %v4842 = vpop.f32.mrf.mxu0
        %v4843 = vpop.f32.mrf.mxu0
        %v4844 = vadd.f32 %v3226, %v4843
        %v4845 = vpop.f32.mrf.mxu0
        %4846 = vmatprep.mubr.bf16.mxu0 %v4303
        %4847 = vmatmul.mubr.bf16.gmra.mxu0 %v4302
        %v4848 = vpop.f32.mrf.mxu0
        %v4849 = vadd.f32 %v3231, %v4848
        %v4850 = vpop.f32.mrf.mxu0
        %v4851 = vpop.f32.mrf.mxu0
        %v4852 = vadd.f32 %v3236, %v4851
        %v4853 = vpop.f32.mrf.mxu0
        %4854 = vmatprep.mubr.bf16.mxu0 %v4311
        %4855 = vmatmul.mubr.bf16.gmra.mxu0 %v4310
        %v4856 = vpop.f32.mrf.mxu0
        %v4857 = vadd.f32 %v3241, %v4856
        %v4858 = vpop.f32.mrf.mxu0
        %v4859 = vpop.f32.mrf.mxu0
        %v4860 = vadd.f32 %v3246, %v4859
        %v4861 = vpop.f32.mrf.mxu0
        %4862 = vmatprep.mubr.bf16.mxu0 %v4319
        %4863 = vmatmul.mubr.bf16.gmra.mxu0 %v4318
        %v4864 = vpop.f32.mrf.mxu0
        %v4865 = vadd.f32 %v3251, %v4864
        %v4866 = vpop.f32.mrf.mxu0
        %v4867 = vpop.f32.mrf.mxu0
        %v4868 = vadd.f32 %v3256, %v4867
        %v4869 = vpop.f32.mrf.mxu0
        %4870 = vmatprep.mubr.bf16.mxu0 %v4327
        %4871 = vmatmul.mubr.bf16.gmra.mxu0 %v4326
        %v4872 = vpop.f32.mrf.mxu0
        %v4873 = vadd.f32 %v3261, %v4872
        %v4874 = vpop.f32.mrf.mxu0
        %v4875 = vpop.f32.mrf.mxu0
        %v4876 = vadd.f32 %v3266, %v4875
        %v4877 = vpop.f32.mrf.mxu0
        %4878 = vmatprep.mubr.bf16.mxu0 %v4335
        %4879 = vmatmul.mubr.bf16.gmra.mxu0 %v4334
        %v4880 = vpop.f32.mrf.mxu0
        %v4881 = vadd.f32 %v3271, %v4880
        %v4882 = vpop.f32.mrf.mxu0
        %v4883 = vpop.f32.mrf.mxu0
        %v4884 = vadd.f32 %v3276, %v4883
        %v4885 = vpop.f32.mrf.mxu0
        %4886 = vmatprep.mubr.bf16.mxu0 %v4343
        %4887 = vmatmul.mubr.bf16.gmra.mxu0 %v4342
        %v4888 = vpop.f32.mrf.mxu0
        %v4889 = vadd.f32 %v3281, %v4888
        %v4890 = vpop.f32.mrf.mxu0
        %v4891 = vpop.f32.mrf.mxu0
        %v4892 = vadd.f32 %v3286, %v4891
        %v4893 = vpop.f32.mrf.mxu0
        %4894 = vmatprep.mubr.bf16.mxu0 %v4351
        %4895 = vmatmul.mubr.bf16.gmra.mxu0 %v4350
        %v4896 = vpop.f32.mrf.mxu0
        %v4897 = vadd.f32 %v3291, %v4896
        %v4898 = vpop.f32.mrf.mxu0
        %v4899 = vpop.f32.mrf.mxu0
        %v4900 = vadd.f32 %v3296, %v4899
        %v4901 = vpop.f32.mrf.mxu0
        %4902 = vmatprep.mubr.bf16.mxu0 %v4359
        %4903 = vmatmul.mubr.bf16.gmra.mxu0 %v4358
        %v4904 = vpop.f32.mrf.mxu0
        %v4905 = vadd.f32 %v3301, %v4904
        %v4906 = vpop.f32.mrf.mxu0
        %v4907 = vpop.f32.mrf.mxu0
        %v4908 = vadd.f32 %v3306, %v4907
        %v4909 = vpop.f32.mrf.mxu0
        %4910 = vmatprep.mubr.bf16.mxu0 %v4367
        %4911 = vmatmul.mubr.bf16.gmra.mxu0 %v4366
        %v4912 = vpop.f32.mrf.mxu0
        %v4913 = vadd.f32 %v3311, %v4912
        %v4914 = vpop.f32.mrf.mxu0
        %v4915 = vpop.f32.mrf.mxu0
        %v4916 = vadd.f32 %v3316, %v4915
        %v4917 = vpop.f32.mrf.mxu0
        %4918 = vmatprep.mubr.bf16.mxu0 %v4375
        %4919 = vmatmul.mubr.bf16.gmra.mxu0 %v4374
        %v4920 = vpop.f32.mrf.mxu0
        %v4921 = vadd.f32 %v3321, %v4920
        %v4922 = vpop.f32.mrf.mxu0
        %v4923 = vpop.f32.mrf.mxu0
        %v4924 = vadd.f32 %v3326, %v4923
        %v4925 = vpop.f32.mrf.mxu0
        %4926 = vmatprep.mubr.bf16.mxu0 %v4383
        %4927 = vmatmul.mubr.bf16.gmra.mxu0 %v4382
        %v4928 = vpop.f32.mrf.mxu0
        %v4929 = vadd.f32 %v3331, %v4928
        %v4930 = vpop.f32.mrf.mxu0
        %v4931 = vpop.f32.mrf.mxu0
        %v4932 = vadd.f32 %v3336, %v4931
        %v4933 = vpop.f32.mrf.mxu0
        %4934 = vmatprep.mubr.bf16.mxu0 %v4391
        %4935 = vmatmul.mubr.bf16.gmra.mxu0 %v4390
        %v4936 = vpop.f32.mrf.mxu0
        %v4937 = vadd.f32 %v3341, %v4936
        %v4938 = vpop.f32.mrf.mxu0
        %v4939 = vpop.f32.mrf.mxu0
        %v4940 = vadd.f32 %v3346, %v4939
        %v4941 = vpop.f32.mrf.mxu0
        %4942 = vmatprep.mubr.bf16.mxu0 %v4399
        %4943 = vmatmul.mubr.bf16.gmra.mxu0 %v4398
        %v4944 = vpop.f32.mrf.mxu0
        %v4945 = vadd.f32 %v3351, %v4944
        %v4946 = vpop.f32.mrf.mxu0
        %v4947 = vpop.f32.mrf.mxu0
        %v4948 = vadd.f32 %v3356, %v4947
        %v4949 = vpop.f32.mrf.mxu0
        %4950 = vmatprep.mubr.bf16.mxu0 %v4407
        %4951 = vmatmul.mubr.bf16.gmra.mxu0 %v4406
        %v4952 = vpop.f32.mrf.mxu0
        %v4953 = vadd.f32 %v3361, %v4952
        %v4954 = vpop.f32.mrf.mxu0
        %v4955 = vpop.f32.mrf.mxu0
        %v4956 = vadd.f32 %v3366, %v4955
        %v4957 = vpop.f32.mrf.mxu0
        %4958 = vmatprep.mubr.bf16.mxu0 %v4415
        %4959 = vmatmul.mubr.bf16.gmra.mxu0 %v4414
        %v4960 = vpop.f32.mrf.mxu0
        %v4961 = vadd.f32 %v3371, %v4960
        %v4962 = vpop.f32.mrf.mxu0
        %v4963 = vpop.f32.mrf.mxu0
        %v4964 = vadd.f32 %v3376, %v4963
        %v4965 = vpop.f32.mrf.mxu0
        %4966 = vmatprep.mubr.bf16.mxu0 %v4423
        %4967 = vmatmul.mubr.bf16.gmra.mxu0 %v4422
        %v4968 = vpop.f32.mrf.mxu0
        %v4969 = vadd.f32 %v3381, %v4968
        %v4970 = vpop.f32.mrf.mxu0
        %v4971 = vpop.f32.mrf.mxu0
        %v4972 = vadd.f32 %v3386, %v4971
        %v4973 = vpop.f32.mrf.mxu0
        %4974 = vmatprep.mubr.bf16.mxu0 %v4431
        %4975 = vmatmul.mubr.bf16.gmra.mxu0 %v4430
        %v4976 = vpop.f32.mrf.mxu0
        %v4977 = vadd.f32 %v3391, %v4976
        %v4978 = vpop.f32.mrf.mxu0
        %v4979 = vpop.f32.mrf.mxu0
        %v4980 = vadd.f32 %v3396, %v4979
        %v4981 = vpop.f32.mrf.mxu0
        %4982 = vmatprep.mubr.bf16.mxu0 %v4439
        %4983 = vmatmul.mubr.bf16.gmra.mxu0 %v4438
        %v4984 = vpop.f32.mrf.mxu0
        %v4985 = vadd.f32 %v3401, %v4984
        %v4986 = vpop.f32.mrf.mxu0
        %v4987 = vpop.f32.mrf.mxu0
        %v4988 = vadd.f32 %v3406, %v4987
        %v4989 = vpop.f32.mrf.mxu0
        %4990 = vmatprep.mubr.bf16.mxu0 %v4447
        %4991 = vmatmul.mubr.bf16.gmra.mxu0 %v4446
        %v4992 = vpop.f32.mrf.mxu0
        %v4993 = vadd.f32 %v3411, %v4992
        %v4994 = vpop.f32.mrf.mxu0
        %v4995 = vpop.f32.mrf.mxu0
        %v4996 = vadd.f32 %v3416, %v4995
        %v4997 = vpop.f32.mrf.mxu0
        %4998 = vmatprep.mubr.bf16.mxu0 %v4455
        %4999 = vmatmul.mubr.bf16.gmra.mxu0 %v4454
        %v5000 = vpop.f32.mrf.mxu0
        %v5001 = vadd.f32 %v3421, %v5000
        %v5002 = vpop.f32.mrf.mxu0
        %v5003 = vpop.f32.mrf.mxu0
        %v5004 = vadd.f32 %v3426, %v5003
        %v5005 = vpop.f32.mrf.mxu0
        %5006 = vmatprep.mubr.bf16.mxu0 %v4463
        %5007 = vmatmul.mubr.bf16.gmra.mxu0 %v4462
        %v5008 = vpop.f32.mrf.mxu0
        %v5009 = vadd.f32 %v3431, %v5008
        %v5010 = vpop.f32.mrf.mxu0
        %v5011 = vpop.f32.mrf.mxu0
        %v5012 = vadd.f32 %v3436, %v5011
        %v5013 = vpop.f32.mrf.mxu0
        %5014 = vmatprep.mubr.bf16.mxu0 %v4471
        %5015 = vmatmul.mubr.bf16.gmra.mxu0 %v4470
        %v5016 = vpop.f32.mrf.mxu0
        %v5017 = vadd.f32 %v3441, %v5016
        %v5018 = vpop.f32.mrf.mxu0
        %v5019 = vpop.f32.mrf.mxu0
        %v5020 = vadd.f32 %v3446, %v5019
        %v5021 = vpop.f32.mrf.mxu0
        %5022 = vmatprep.mubr.bf16.mxu0 %v4479
        %5023 = vmatmul.mubr.bf16.gmra.mxu0 %v4478
        %v5024 = vpop.f32.mrf.mxu0
        %v5025 = vadd.f32 %v3451, %v5024
        %v5026 = vpop.f32.mrf.mxu0
        %v5027 = vpop.f32.mrf.mxu0
        %v5028 = vadd.f32 %v3456, %v5027
        %v5029 = vpop.f32.mrf.mxu0
        %5030 = vmatprep.mubr.bf16.mxu0 %v4487
        %5031 = vmatmul.mubr.bf16.gmra.mxu0 %v4486
        %v5032 = vpop.f32.mrf.mxu0
        %v5033 = vadd.f32 %v3461, %v5032
        %v5034 = vpop.f32.mrf.mxu0
        %v5035 = vpop.f32.mrf.mxu0
        %v5036 = vadd.f32 %v3466, %v5035
        %v5037 = vpop.f32.mrf.mxu0
        %5038 = vmatprep.mubr.bf16.mxu0 %v4495
        %5039 = vmatmul.mubr.bf16.gmra.mxu0 %v4494
        %v5040 = vpop.f32.mrf.mxu0
        %v5041 = vadd.f32 %v3471, %v5040
        %v5042 = vpop.f32.mrf.mxu0
        %v5043 = vpop.f32.mrf.mxu0
        %v5044 = vadd.f32 %v3476, %v5043
        %v5045 = vpop.f32.mrf.mxu0
        %5046 = vdwg.mxu0
        %5047 = vmatprep.subr.bf16.mxu0 0
        %5048 = vmatpush1.bf16.msra.mxu0 %v3053
        %5049 = vmatprep.subr.bf16.mxu0 0
        %5050 = vmatpush1.bf16.msra.mxu0 %v3052
        %5051 = vmatprep.subr.bf16.mxu0 0
        %5052 = vmatpush1.bf16.msra.mxu0 %v3051
        %5053 = vmatprep.subr.bf16.mxu0 0
        %5054 = vmatpush1.bf16.msra.mxu0 %v3050
        %5055 = vmatprep.subr.bf16.mxu0 0
        %5056 = vmatpush1.bf16.msra.mxu0 %v3049
        %5057 = vmatprep.subr.bf16.mxu0 0
        %5058 = vmatpush1.bf16.msra.mxu0 %v3048
        %5059 = vmatprep.subr.bf16.mxu0 0
        %5060 = vmatpush1.bf16.msra.mxu0 %v3047
        %5061 = vmatprep.subr.bf16.mxu0 0
        %5062 = vmatpush1.bf16.msra.mxu0 %v3046
        %5063 = vmatprep.subr.bf16.mxu0 0
        %5064 = vmatpush2.bf16.msra.mxu0 %v3061
        %5065 = vmatprep.subr.bf16.mxu0 0
        %5066 = vmatpush2.bf16.msra.mxu0 %v3060
        %5067 = vmatprep.subr.bf16.mxu0 0
        %5068 = vmatpush2.bf16.msra.mxu0 %v3059
        %5069 = vmatprep.subr.bf16.mxu0 0
        %5070 = vmatpush2.bf16.msra.mxu0 %v3058
        %5071 = vmatprep.subr.bf16.mxu0 0
        %5072 = vmatpush2.bf16.msra.mxu0 %v3057
        %5073 = vmatprep.subr.bf16.mxu0 0
        %5074 = vmatpush2.bf16.msra.mxu0 %v3056
        %5075 = vmatprep.subr.bf16.mxu0 0
        %5076 = vmatpush2.bf16.msra.mxu0 %v3055
        %5077 = vmatprep.subr.bf16.mxu0 0
        %5078 = vmatpush2.bf16.msra.mxu0 %v3054
        %5079 = vmatprep.mubr.bf16.mxu0 %v4249
        %5080 = vmatmul.mubr.bf16.gmra.mxu0 %v4248
        %v5081 = vpop.f32.mrf.mxu0
        %v5082 = vadd.f32 %v4793, %v5081
        %v5083 = vpop.f32.mrf.mxu0
        %v5084 = vpop.f32.mrf.mxu0
        %v5085 = vadd.f32 %v4796, %v5084
        %v5086 = vpop.f32.mrf.mxu0
        %5087 = vmatprep.mubr.bf16.mxu0 %v4257
        %5088 = vmatmul.mubr.bf16.gmra.mxu0 %v4256
        %v5089 = vpop.f32.mrf.mxu0
        %v5090 = vadd.f32 %v4801, %v5089
        %v5091 = vpop.f32.mrf.mxu0
        %v5092 = vpop.f32.mrf.mxu0
        %v5093 = vadd.f32 %v4804, %v5092
        %v5094 = vpop.f32.mrf.mxu0
        %5095 = vmatprep.mubr.bf16.mxu0 %v4265
        %5096 = vmatmul.mubr.bf16.gmra.mxu0 %v4264
        %v5097 = vpop.f32.mrf.mxu0
        %v5098 = vadd.f32 %v4809, %v5097
        %v5099 = vpop.f32.mrf.mxu0
        %v5100 = vpop.f32.mrf.mxu0
        %v5101 = vadd.f32 %v4812, %v5100
        %v5102 = vpop.f32.mrf.mxu0
        %5103 = vmatprep.mubr.bf16.mxu0 %v4273
        %5104 = vmatmul.mubr.bf16.gmra.mxu0 %v4272
        %v5105 = vpop.f32.mrf.mxu0
        %v5106 = vadd.f32 %v4817, %v5105
        %v5107 = vpop.f32.mrf.mxu0
        %v5108 = vpop.f32.mrf.mxu0
        %v5109 = vadd.f32 %v4820, %v5108
        %v5110 = vpop.f32.mrf.mxu0
        %5111 = vmatprep.mubr.bf16.mxu0 %v4281
        %5112 = vmatmul.mubr.bf16.gmra.mxu0 %v4280
        %v5113 = vpop.f32.mrf.mxu0
        %v5114 = vadd.f32 %v4825, %v5113
        %v5115 = vpop.f32.mrf.mxu0
        %v5116 = vpop.f32.mrf.mxu0
        %v5117 = vadd.f32 %v4828, %v5116
        %v5118 = vpop.f32.mrf.mxu0
        %5119 = vmatprep.mubr.bf16.mxu0 %v4289
        %5120 = vmatmul.mubr.bf16.gmra.mxu0 %v4288
        %v5121 = vpop.f32.mrf.mxu0
        %v5122 = vadd.f32 %v4833, %v5121
        %v5123 = vpop.f32.mrf.mxu0
        %v5124 = vpop.f32.mrf.mxu0
        %v5125 = vadd.f32 %v4836, %v5124
        %v5126 = vpop.f32.mrf.mxu0
        %5127 = vmatprep.mubr.bf16.mxu0 %v4297
        %5128 = vmatmul.mubr.bf16.gmra.mxu0 %v4296
        %v5129 = vpop.f32.mrf.mxu0
        %v5130 = vadd.f32 %v4841, %v5129
        %v5131 = vpop.f32.mrf.mxu0
        %v5132 = vpop.f32.mrf.mxu0
        %v5133 = vadd.f32 %v4844, %v5132
        %v5134 = vpop.f32.mrf.mxu0
        %5135 = vmatprep.mubr.bf16.mxu0 %v4305
        %5136 = vmatmul.mubr.bf16.gmra.mxu0 %v4304
        %v5137 = vpop.f32.mrf.mxu0
        %v5138 = vadd.f32 %v4849, %v5137
        %v5139 = vpop.f32.mrf.mxu0
        %v5140 = vpop.f32.mrf.mxu0
        %v5141 = vadd.f32 %v4852, %v5140
        %v5142 = vpop.f32.mrf.mxu0
        %5143 = vmatprep.mubr.bf16.mxu0 %v4313
        %5144 = vmatmul.mubr.bf16.gmra.mxu0 %v4312
        %v5145 = vpop.f32.mrf.mxu0
        %v5146 = vadd.f32 %v4857, %v5145
        %v5147 = vpop.f32.mrf.mxu0
        %v5148 = vpop.f32.mrf.mxu0
        %v5149 = vadd.f32 %v4860, %v5148
        %v5150 = vpop.f32.mrf.mxu0
        %5151 = vmatprep.mubr.bf16.mxu0 %v4321
        %5152 = vmatmul.mubr.bf16.gmra.mxu0 %v4320
        %v5153 = vpop.f32.mrf.mxu0
        %v5154 = vadd.f32 %v4865, %v5153
        %v5155 = vpop.f32.mrf.mxu0
        %v5156 = vpop.f32.mrf.mxu0
        %v5157 = vadd.f32 %v4868, %v5156
        %v5158 = vpop.f32.mrf.mxu0
        %5159 = vmatprep.mubr.bf16.mxu0 %v4329
        %5160 = vmatmul.mubr.bf16.gmra.mxu0 %v4328
        %v5161 = vpop.f32.mrf.mxu0
        %v5162 = vadd.f32 %v4873, %v5161
        %v5163 = vpop.f32.mrf.mxu0
        %v5164 = vpop.f32.mrf.mxu0
        %v5165 = vadd.f32 %v4876, %v5164
        %v5166 = vpop.f32.mrf.mxu0
        %5167 = vmatprep.mubr.bf16.mxu0 %v4337
        %5168 = vmatmul.mubr.bf16.gmra.mxu0 %v4336
        %v5169 = vpop.f32.mrf.mxu0
        %v5170 = vadd.f32 %v4881, %v5169
        %v5171 = vpop.f32.mrf.mxu0
        %v5172 = vpop.f32.mrf.mxu0
        %v5173 = vadd.f32 %v4884, %v5172
        %v5174 = vpop.f32.mrf.mxu0
        %5175 = vmatprep.mubr.bf16.mxu0 %v4345
        %5176 = vmatmul.mubr.bf16.gmra.mxu0 %v4344
        %v5177 = vpop.f32.mrf.mxu0
        %v5178 = vadd.f32 %v4889, %v5177
        %v5179 = vpop.f32.mrf.mxu0
        %v5180 = vpop.f32.mrf.mxu0
        %v5181 = vadd.f32 %v4892, %v5180
        %v5182 = vpop.f32.mrf.mxu0
        %5183 = vmatprep.mubr.bf16.mxu0 %v4353
        %5184 = vmatmul.mubr.bf16.gmra.mxu0 %v4352
        %v5185 = vpop.f32.mrf.mxu0
        %v5186 = vadd.f32 %v4897, %v5185
        %v5187 = vpop.f32.mrf.mxu0
        %v5188 = vpop.f32.mrf.mxu0
        %v5189 = vadd.f32 %v4900, %v5188
        %v5190 = vpop.f32.mrf.mxu0
        %5191 = vmatprep.mubr.bf16.mxu0 %v4361
        %5192 = vmatmul.mubr.bf16.gmra.mxu0 %v4360
        %v5193 = vpop.f32.mrf.mxu0
        %v5194 = vadd.f32 %v4905, %v5193
        %v5195 = vpop.f32.mrf.mxu0
        %v5196 = vpop.f32.mrf.mxu0
        %v5197 = vadd.f32 %v4908, %v5196
        %v5198 = vpop.f32.mrf.mxu0
        %5199 = vmatprep.mubr.bf16.mxu0 %v4369
        %5200 = vmatmul.mubr.bf16.gmra.mxu0 %v4368
        %v5201 = vpop.f32.mrf.mxu0
        %v5202 = vadd.f32 %v4913, %v5201
        %v5203 = vpop.f32.mrf.mxu0
        %v5204 = vpop.f32.mrf.mxu0
        %v5205 = vadd.f32 %v4916, %v5204
        %v5206 = vpop.f32.mrf.mxu0
        %5207 = vmatprep.mubr.bf16.mxu0 %v4377
        %5208 = vmatmul.mubr.bf16.gmra.mxu0 %v4376
        %v5209 = vpop.f32.mrf.mxu0
        %v5210 = vadd.f32 %v4921, %v5209
        %v5211 = vpop.f32.mrf.mxu0
        %v5212 = vpop.f32.mrf.mxu0
        %v5213 = vadd.f32 %v4924, %v5212
        %v5214 = vpop.f32.mrf.mxu0
        %5215 = vmatprep.mubr.bf16.mxu0 %v4385
        %5216 = vmatmul.mubr.bf16.gmra.mxu0 %v4384
        %v5217 = vpop.f32.mrf.mxu0
        %v5218 = vadd.f32 %v4929, %v5217
        %v5219 = vpop.f32.mrf.mxu0
        %v5220 = vpop.f32.mrf.mxu0
        %v5221 = vadd.f32 %v4932, %v5220
        %v5222 = vpop.f32.mrf.mxu0
        %5223 = vmatprep.mubr.bf16.mxu0 %v4393
        %5224 = vmatmul.mubr.bf16.gmra.mxu0 %v4392
        %v5225 = vpop.f32.mrf.mxu0
        %v5226 = vadd.f32 %v4937, %v5225
        %v5227 = vpop.f32.mrf.mxu0
        %v5228 = vpop.f32.mrf.mxu0
        %v5229 = vadd.f32 %v4940, %v5228
        %v5230 = vpop.f32.mrf.mxu0
        %5231 = vmatprep.mubr.bf16.mxu0 %v4401
        %5232 = vmatmul.mubr.bf16.gmra.mxu0 %v4400
        %v5233 = vpop.f32.mrf.mxu0
        %v5234 = vadd.f32 %v4945, %v5233
        %v5235 = vpop.f32.mrf.mxu0
        %v5236 = vpop.f32.mrf.mxu0
        %v5237 = vadd.f32 %v4948, %v5236
        %v5238 = vpop.f32.mrf.mxu0
        %5239 = vmatprep.mubr.bf16.mxu0 %v4409
        %5240 = vmatmul.mubr.bf16.gmra.mxu0 %v4408
        %v5241 = vpop.f32.mrf.mxu0
        %v5242 = vadd.f32 %v4953, %v5241
        %v5243 = vpop.f32.mrf.mxu0
        %v5244 = vpop.f32.mrf.mxu0
        %v5245 = vadd.f32 %v4956, %v5244
        %v5246 = vpop.f32.mrf.mxu0
        %5247 = vmatprep.mubr.bf16.mxu0 %v4417
        %5248 = vmatmul.mubr.bf16.gmra.mxu0 %v4416
        %v5249 = vpop.f32.mrf.mxu0
        %v5250 = vadd.f32 %v4961, %v5249
        %v5251 = vpop.f32.mrf.mxu0
        %v5252 = vpop.f32.mrf.mxu0
        %v5253 = vadd.f32 %v4964, %v5252
        %v5254 = vpop.f32.mrf.mxu0
        %5255 = vmatprep.mubr.bf16.mxu0 %v4425
        %5256 = vmatmul.mubr.bf16.gmra.mxu0 %v4424
        %v5257 = vpop.f32.mrf.mxu0
        %v5258 = vadd.f32 %v4969, %v5257
        %v5259 = vpop.f32.mrf.mxu0
        %v5260 = vpop.f32.mrf.mxu0
        %v5261 = vadd.f32 %v4972, %v5260
        %v5262 = vpop.f32.mrf.mxu0
        %5263 = vmatprep.mubr.bf16.mxu0 %v4433
        %5264 = vmatmul.mubr.bf16.gmra.mxu0 %v4432
        %v5265 = vpop.f32.mrf.mxu0
        %v5266 = vadd.f32 %v4977, %v5265
        %v5267 = vpop.f32.mrf.mxu0
        %v5268 = vpop.f32.mrf.mxu0
        %v5269 = vadd.f32 %v4980, %v5268
        %v5270 = vpop.f32.mrf.mxu0
        %5271 = vmatprep.mubr.bf16.mxu0 %v4441
        %5272 = vmatmul.mubr.bf16.gmra.mxu0 %v4440
        %v5273 = vpop.f32.mrf.mxu0
        %v5274 = vadd.f32 %v4985, %v5273
        %v5275 = vpop.f32.mrf.mxu0
        %v5276 = vpop.f32.mrf.mxu0
        %v5277 = vadd.f32 %v4988, %v5276
        %v5278 = vpop.f32.mrf.mxu0
        %5279 = vmatprep.mubr.bf16.mxu0 %v4449
        %5280 = vmatmul.mubr.bf16.gmra.mxu0 %v4448
        %v5281 = vpop.f32.mrf.mxu0
        %v5282 = vadd.f32 %v4993, %v5281
        %v5283 = vpop.f32.mrf.mxu0
        %v5284 = vpop.f32.mrf.mxu0
        %v5285 = vadd.f32 %v4996, %v5284
        %v5286 = vpop.f32.mrf.mxu0
        %5287 = vmatprep.mubr.bf16.mxu0 %v4457
        %5288 = vmatmul.mubr.bf16.gmra.mxu0 %v4456
        %v5289 = vpop.f32.mrf.mxu0
        %v5290 = vadd.f32 %v5001, %v5289
        %v5291 = vpop.f32.mrf.mxu0
        %v5292 = vpop.f32.mrf.mxu0
        %v5293 = vadd.f32 %v5004, %v5292
        %v5294 = vpop.f32.mrf.mxu0
        %5295 = vmatprep.mubr.bf16.mxu0 %v4465
        %5296 = vmatmul.mubr.bf16.gmra.mxu0 %v4464
        %v5297 = vpop.f32.mrf.mxu0
        %v5298 = vadd.f32 %v5009, %v5297
        %v5299 = vpop.f32.mrf.mxu0
        %v5300 = vpop.f32.mrf.mxu0
        %v5301 = vadd.f32 %v5012, %v5300
        %v5302 = vpop.f32.mrf.mxu0
        %5303 = vmatprep.mubr.bf16.mxu0 %v4473
        %5304 = vmatmul.mubr.bf16.gmra.mxu0 %v4472
        %v5305 = vpop.f32.mrf.mxu0
        %v5306 = vadd.f32 %v5017, %v5305
        %v5307 = vpop.f32.mrf.mxu0
        %v5308 = vpop.f32.mrf.mxu0
        %v5309 = vadd.f32 %v5020, %v5308
        %v5310 = vpop.f32.mrf.mxu0
        %5311 = vmatprep.mubr.bf16.mxu0 %v4481
        %5312 = vmatmul.mubr.bf16.gmra.mxu0 %v4480
        %v5313 = vpop.f32.mrf.mxu0
        %v5314 = vadd.f32 %v5025, %v5313
        %v5315 = vpop.f32.mrf.mxu0
        %v5316 = vpop.f32.mrf.mxu0
        %v5317 = vadd.f32 %v5028, %v5316
        %v5318 = vpop.f32.mrf.mxu0
        %5319 = vmatprep.mubr.bf16.mxu0 %v4489
        %5320 = vmatmul.mubr.bf16.gmra.mxu0 %v4488
        %v5321 = vpop.f32.mrf.mxu0
        %v5322 = vadd.f32 %v5033, %v5321
        %v5323 = vpop.f32.mrf.mxu0
        %v5324 = vpop.f32.mrf.mxu0
        %v5325 = vadd.f32 %v5036, %v5324
        %v5326 = vpop.f32.mrf.mxu0
        %5327 = vmatprep.mubr.bf16.mxu0 %v4497
        %5328 = vmatmul.mubr.bf16.gmra.mxu0 %v4496
        %v5329 = vpop.f32.mrf.mxu0
        %v5330 = vadd.f32 %v5041, %v5329
        %v5331 = vpop.f32.mrf.mxu0
        %v5332 = vpop.f32.mrf.mxu0
        %v5333 = vadd.f32 %v5044, %v5332
        %v5334 = vpop.f32.mrf.mxu0
        %5335 = vdwg.mxu0
        %5336 = vmatprep.subr.bf16.mxu0 0
        %5337 = vmatpush1.bf16.msra.mxu0 %v3069
        %5338 = vmatprep.subr.bf16.mxu0 0
        %5339 = vmatpush1.bf16.msra.mxu0 %v3068
        %5340 = vmatprep.subr.bf16.mxu0 0
        %5341 = vmatpush1.bf16.msra.mxu0 %v3067
        %5342 = vmatprep.subr.bf16.mxu0 0
        %5343 = vmatpush1.bf16.msra.mxu0 %v3066
        %5344 = vmatprep.subr.bf16.mxu0 0
        %5345 = vmatpush1.bf16.msra.mxu0 %v3065
        %5346 = vmatprep.subr.bf16.mxu0 0
        %5347 = vmatpush1.bf16.msra.mxu0 %v3064
        %5348 = vmatprep.subr.bf16.mxu0 0
        %5349 = vmatpush1.bf16.msra.mxu0 %v3063
        %5350 = vmatprep.subr.bf16.mxu0 0
        %5351 = vmatpush1.bf16.msra.mxu0 %v3062
        %5352 = vmatprep.subr.bf16.mxu0 0
        %5353 = vmatpush2.bf16.msra.mxu0 %v3077
        %5354 = vmatprep.subr.bf16.mxu0 0
        %5355 = vmatpush2.bf16.msra.mxu0 %v3076
        %5356 = vmatprep.subr.bf16.mxu0 0
        %5357 = vmatpush2.bf16.msra.mxu0 %v3075
        %5358 = vmatprep.subr.bf16.mxu0 0
        %5359 = vmatpush2.bf16.msra.mxu0 %v3074
        %5360 = vmatprep.subr.bf16.mxu0 0
        %5361 = vmatpush2.bf16.msra.mxu0 %v3073
        %5362 = vmatprep.subr.bf16.mxu0 0
        %5363 = vmatpush2.bf16.msra.mxu0 %v3072
        %5364 = vmatprep.subr.bf16.mxu0 0
        %5365 = vmatpush2.bf16.msra.mxu0 %v3071
        %5366 = vmatprep.subr.bf16.mxu0 0
        %5367 = vmatpush2.bf16.msra.mxu0 %v3070
        %5368 = vmatprep.mubr.bf16.mxu0 %v4251
        %5369 = vmatmul.mubr.bf16.gmra.mxu0 %v4250
        %v5370 = vpop.f32.mrf.mxu0
        %v5371 = vadd.f32 %v5082, %v5370
        %v5372 = vpop.f32.mrf.mxu0
        %v5373 = vpop.f32.mrf.mxu0
        %v5374 = vadd.f32 %v5085, %v5373
        %v5375 = vpop.f32.mrf.mxu0
        %5376 = vmatprep.mubr.bf16.mxu0 %v4259
        %5377 = vmatmul.mubr.bf16.gmra.mxu0 %v4258
        %v5378 = vpop.f32.mrf.mxu0
        %v5379 = vadd.f32 %v5090, %v5378
        %v5380 = vpop.f32.mrf.mxu0
        %v5381 = vpop.f32.mrf.mxu0
        %v5382 = vadd.f32 %v5093, %v5381
        %v5383 = vpop.f32.mrf.mxu0
        %5384 = vmatprep.mubr.bf16.mxu0 %v4267
        %5385 = vmatmul.mubr.bf16.gmra.mxu0 %v4266
        %v5386 = vpop.f32.mrf.mxu0
        %v5387 = vadd.f32 %v5098, %v5386
        %v5388 = vpop.f32.mrf.mxu0
        %v5389 = vpop.f32.mrf.mxu0
        %v5390 = vadd.f32 %v5101, %v5389
        %v5391 = vpop.f32.mrf.mxu0
        %5392 = vmatprep.mubr.bf16.mxu0 %v4275
        %5393 = vmatmul.mubr.bf16.gmra.mxu0 %v4274
        %v5394 = vpop.f32.mrf.mxu0
        %v5395 = vadd.f32 %v5106, %v5394
        %v5396 = vpop.f32.mrf.mxu0
        %v5397 = vpop.f32.mrf.mxu0
        %v5398 = vadd.f32 %v5109, %v5397
        %v5399 = vpop.f32.mrf.mxu0
        %5400 = vmatprep.mubr.bf16.mxu0 %v4283
        %5401 = vmatmul.mubr.bf16.gmra.mxu0 %v4282
        %v5402 = vpop.f32.mrf.mxu0
        %v5403 = vadd.f32 %v5114, %v5402
        %v5404 = vpop.f32.mrf.mxu0
        %v5405 = vpop.f32.mrf.mxu0
        %v5406 = vadd.f32 %v5117, %v5405
        %v5407 = vpop.f32.mrf.mxu0
        %5408 = vmatprep.mubr.bf16.mxu0 %v4291
        %5409 = vmatmul.mubr.bf16.gmra.mxu0 %v4290
        %v5410 = vpop.f32.mrf.mxu0
        %v5411 = vadd.f32 %v5122, %v5410
        %v5412 = vpop.f32.mrf.mxu0
        %v5413 = vpop.f32.mrf.mxu0
        %v5414 = vadd.f32 %v5125, %v5413
        %v5415 = vpop.f32.mrf.mxu0
        %5416 = vmatprep.mubr.bf16.mxu0 %v4299
        %5417 = vmatmul.mubr.bf16.gmra.mxu0 %v4298
        %v5418 = vpop.f32.mrf.mxu0
        %v5419 = vadd.f32 %v5130, %v5418
        %v5420 = vpop.f32.mrf.mxu0
        %v5421 = vpop.f32.mrf.mxu0
        %v5422 = vadd.f32 %v5133, %v5421
        %v5423 = vpop.f32.mrf.mxu0
        %5424 = vmatprep.mubr.bf16.mxu0 %v4307
        %5425 = vmatmul.mubr.bf16.gmra.mxu0 %v4306
        %v5426 = vpop.f32.mrf.mxu0
        %v5427 = vadd.f32 %v5138, %v5426
        %v5428 = vpop.f32.mrf.mxu0
        %v5429 = vpop.f32.mrf.mxu0
        %v5430 = vadd.f32 %v5141, %v5429
        %v5431 = vpop.f32.mrf.mxu0
        %5432 = vmatprep.mubr.bf16.mxu0 %v4315
        %5433 = vmatmul.mubr.bf16.gmra.mxu0 %v4314
        %v5434 = vpop.f32.mrf.mxu0
        %v5435 = vadd.f32 %v5146, %v5434
        %v5436 = vpop.f32.mrf.mxu0
        %v5437 = vpop.f32.mrf.mxu0
        %v5438 = vadd.f32 %v5149, %v5437
        %v5439 = vpop.f32.mrf.mxu0
        %5440 = vmatprep.mubr.bf16.mxu0 %v4323
        %5441 = vmatmul.mubr.bf16.gmra.mxu0 %v4322
        %v5442 = vpop.f32.mrf.mxu0
        %v5443 = vadd.f32 %v5154, %v5442
        %v5444 = vpop.f32.mrf.mxu0
        %v5445 = vpop.f32.mrf.mxu0
        %v5446 = vadd.f32 %v5157, %v5445
        %v5447 = vpop.f32.mrf.mxu0
        %5448 = vmatprep.mubr.bf16.mxu0 %v4331
        %5449 = vmatmul.mubr.bf16.gmra.mxu0 %v4330
        %v5450 = vpop.f32.mrf.mxu0
        %v5451 = vadd.f32 %v5162, %v5450
        %v5452 = vpop.f32.mrf.mxu0
        %v5453 = vpop.f32.mrf.mxu0
        %v5454 = vadd.f32 %v5165, %v5453
        %v5455 = vpop.f32.mrf.mxu0
        %5456 = vmatprep.mubr.bf16.mxu0 %v4339
        %5457 = vmatmul.mubr.bf16.gmra.mxu0 %v4338
        %v5458 = vpop.f32.mrf.mxu0
        %v5459 = vadd.f32 %v5170, %v5458
        %v5460 = vpop.f32.mrf.mxu0
        %v5461 = vpop.f32.mrf.mxu0
        %v5462 = vadd.f32 %v5173, %v5461
        %v5463 = vpop.f32.mrf.mxu0
        %5464 = vmatprep.mubr.bf16.mxu0 %v4347
        %5465 = vmatmul.mubr.bf16.gmra.mxu0 %v4346
        %v5466 = vpop.f32.mrf.mxu0
        %v5467 = vadd.f32 %v5178, %v5466
        %v5468 = vpop.f32.mrf.mxu0
        %v5469 = vpop.f32.mrf.mxu0
        %v5470 = vadd.f32 %v5181, %v5469
        %v5471 = vpop.f32.mrf.mxu0
        %5472 = vmatprep.mubr.bf16.mxu0 %v4355
        %5473 = vmatmul.mubr.bf16.gmra.mxu0 %v4354
        %v5474 = vpop.f32.mrf.mxu0
        %v5475 = vadd.f32 %v5186, %v5474
        %v5476 = vpop.f32.mrf.mxu0
        %v5477 = vpop.f32.mrf.mxu0
        %v5478 = vadd.f32 %v5189, %v5477
        %v5479 = vpop.f32.mrf.mxu0
        %5480 = vmatprep.mubr.bf16.mxu0 %v4363
        %5481 = vmatmul.mubr.bf16.gmra.mxu0 %v4362
        %v5482 = vpop.f32.mrf.mxu0
        %v5483 = vadd.f32 %v5194, %v5482
        %v5484 = vpop.f32.mrf.mxu0
        %v5485 = vpop.f32.mrf.mxu0
        %v5486 = vadd.f32 %v5197, %v5485
        %v5487 = vpop.f32.mrf.mxu0
        %5488 = vmatprep.mubr.bf16.mxu0 %v4371
        %5489 = vmatmul.mubr.bf16.gmra.mxu0 %v4370
        %v5490 = vpop.f32.mrf.mxu0
        %v5491 = vadd.f32 %v5202, %v5490
        %v5492 = vpop.f32.mrf.mxu0
        %v5493 = vpop.f32.mrf.mxu0
        %v5494 = vadd.f32 %v5205, %v5493
        %v5495 = vpop.f32.mrf.mxu0
        %5496 = vmatprep.mubr.bf16.mxu0 %v4379
        %5497 = vmatmul.mubr.bf16.gmra.mxu0 %v4378
        %v5498 = vpop.f32.mrf.mxu0
        %v5499 = vadd.f32 %v5210, %v5498
        %v5500 = vpop.f32.mrf.mxu0
        %v5501 = vpop.f32.mrf.mxu0
        %v5502 = vadd.f32 %v5213, %v5501
        %v5503 = vpop.f32.mrf.mxu0
        %5504 = vmatprep.mubr.bf16.mxu0 %v4387
        %5505 = vmatmul.mubr.bf16.gmra.mxu0 %v4386
        %v5506 = vpop.f32.mrf.mxu0
        %v5507 = vadd.f32 %v5218, %v5506
        %v5508 = vpop.f32.mrf.mxu0
        %v5509 = vpop.f32.mrf.mxu0
        %v5510 = vadd.f32 %v5221, %v5509
        %v5511 = vpop.f32.mrf.mxu0
        %5512 = vmatprep.mubr.bf16.mxu0 %v4395
        %5513 = vmatmul.mubr.bf16.gmra.mxu0 %v4394
        %v5514 = vpop.f32.mrf.mxu0
        %v5515 = vadd.f32 %v5226, %v5514
        %v5516 = vpop.f32.mrf.mxu0
        %v5517 = vpop.f32.mrf.mxu0
        %v5518 = vadd.f32 %v5229, %v5517
        %v5519 = vpop.f32.mrf.mxu0
        %5520 = vmatprep.mubr.bf16.mxu0 %v4403
        %5521 = vmatmul.mubr.bf16.gmra.mxu0 %v4402
        %v5522 = vpop.f32.mrf.mxu0
        %v5523 = vadd.f32 %v5234, %v5522
        %v5524 = vpop.f32.mrf.mxu0
        %v5525 = vpop.f32.mrf.mxu0
        %v5526 = vadd.f32 %v5237, %v5525
        %v5527 = vpop.f32.mrf.mxu0
        %5528 = vmatprep.mubr.bf16.mxu0 %v4411
        %5529 = vmatmul.mubr.bf16.gmra.mxu0 %v4410
        %v5530 = vpop.f32.mrf.mxu0
        %v5531 = vadd.f32 %v5242, %v5530
        %v5532 = vpop.f32.mrf.mxu0
        %v5533 = vpop.f32.mrf.mxu0
        %v5534 = vadd.f32 %v5245, %v5533
        %v5535 = vpop.f32.mrf.mxu0
        %5536 = vmatprep.mubr.bf16.mxu0 %v4419
        %5537 = vmatmul.mubr.bf16.gmra.mxu0 %v4418
        %v5538 = vpop.f32.mrf.mxu0
        %v5539 = vadd.f32 %v5250, %v5538
        %v5540 = vpop.f32.mrf.mxu0
        %v5541 = vpop.f32.mrf.mxu0
        %v5542 = vadd.f32 %v5253, %v5541
        %v5543 = vpop.f32.mrf.mxu0
        %5544 = vmatprep.mubr.bf16.mxu0 %v4427
        %5545 = vmatmul.mubr.bf16.gmra.mxu0 %v4426
        %v5546 = vpop.f32.mrf.mxu0
        %v5547 = vadd.f32 %v5258, %v5546
        %v5548 = vpop.f32.mrf.mxu0
        %v5549 = vpop.f32.mrf.mxu0
        %v5550 = vadd.f32 %v5261, %v5549
        %v5551 = vpop.f32.mrf.mxu0
        %5552 = vmatprep.mubr.bf16.mxu0 %v4435
        %5553 = vmatmul.mubr.bf16.gmra.mxu0 %v4434
        %v5554 = vpop.f32.mrf.mxu0
        %v5555 = vadd.f32 %v5266, %v5554
        %v5556 = vpop.f32.mrf.mxu0
        %v5557 = vpop.f32.mrf.mxu0
        %v5558 = vadd.f32 %v5269, %v5557
        %v5559 = vpop.f32.mrf.mxu0
        %5560 = vmatprep.mubr.bf16.mxu0 %v4443
        %5561 = vmatmul.mubr.bf16.gmra.mxu0 %v4442
        %v5562 = vpop.f32.mrf.mxu0
        %v5563 = vadd.f32 %v5274, %v5562
        %v5564 = vpop.f32.mrf.mxu0
        %v5565 = vpop.f32.mrf.mxu0
        %v5566 = vadd.f32 %v5277, %v5565
        %v5567 = vpop.f32.mrf.mxu0
        %5568 = vmatprep.mubr.bf16.mxu0 %v4451
        %5569 = vmatmul.mubr.bf16.gmra.mxu0 %v4450
        %v5570 = vpop.f32.mrf.mxu0
        %v5571 = vadd.f32 %v5282, %v5570
        %v5572 = vpop.f32.mrf.mxu0
        %v5573 = vpop.f32.mrf.mxu0
        %v5574 = vadd.f32 %v5285, %v5573
        %v5575 = vpop.f32.mrf.mxu0
        %5576 = vmatprep.mubr.bf16.mxu0 %v4459
        %5577 = vmatmul.mubr.bf16.gmra.mxu0 %v4458
        %v5578 = vpop.f32.mrf.mxu0
        %v5579 = vadd.f32 %v5290, %v5578
        %v5580 = vpop.f32.mrf.mxu0
        %v5581 = vpop.f32.mrf.mxu0
        %v5582 = vadd.f32 %v5293, %v5581
        %v5583 = vpop.f32.mrf.mxu0
        %5584 = vmatprep.mubr.bf16.mxu0 %v4467
        %5585 = vmatmul.mubr.bf16.gmra.mxu0 %v4466
        %v5586 = vpop.f32.mrf.mxu0
        %v5587 = vadd.f32 %v5298, %v5586
        %v5588 = vpop.f32.mrf.mxu0
        %v5589 = vpop.f32.mrf.mxu0
        %v5590 = vadd.f32 %v5301, %v5589
        %v5591 = vpop.f32.mrf.mxu0
        %5592 = vmatprep.mubr.bf16.mxu0 %v4475
        %5593 = vmatmul.mubr.bf16.gmra.mxu0 %v4474
        %v5594 = vpop.f32.mrf.mxu0
        %v5595 = vadd.f32 %v5306, %v5594
        %v5596 = vpop.f32.mrf.mxu0
        %v5597 = vpop.f32.mrf.mxu0
        %v5598 = vadd.f32 %v5309, %v5597
        %v5599 = vpop.f32.mrf.mxu0
        %5600 = vmatprep.mubr.bf16.mxu0 %v4483
        %5601 = vmatmul.mubr.bf16.gmra.mxu0 %v4482
        %v5602 = vpop.f32.mrf.mxu0
        %v5603 = vadd.f32 %v5314, %v5602
        %v5604 = vpop.f32.mrf.mxu0
        %v5605 = vpop.f32.mrf.mxu0
        %v5606 = vadd.f32 %v5317, %v5605
        %v5607 = vpop.f32.mrf.mxu0
        %5608 = vmatprep.mubr.bf16.mxu0 %v4491
        %5609 = vmatmul.mubr.bf16.gmra.mxu0 %v4490
        %v5610 = vpop.f32.mrf.mxu0
        %v5611 = vadd.f32 %v5322, %v5610
        %v5612 = vpop.f32.mrf.mxu0
        %v5613 = vpop.f32.mrf.mxu0
        %v5614 = vadd.f32 %v5325, %v5613
        %v5615 = vpop.f32.mrf.mxu0
        %5616 = vmatprep.mubr.bf16.mxu0 %v4499
        %5617 = vmatmul.mubr.bf16.gmra.mxu0 %v4498
        %v5618 = vpop.f32.mrf.mxu0
        %v5619 = vadd.f32 %v5330, %v5618
        %v5620 = vpop.f32.mrf.mxu0
        %v5621 = vpop.f32.mrf.mxu0
        %v5622 = vadd.f32 %v5333, %v5621
        %v5623 = vpop.f32.mrf.mxu0
        %5624 = vdwg.mxu0
        %5625 = vmatprep.subr.bf16.mxu0 0
        %5626 = vmatpush1.bf16.msra.mxu0 %v3085
        %5627 = vmatprep.subr.bf16.mxu0 0
        %5628 = vmatpush1.bf16.msra.mxu0 %v3084
        %5629 = vmatprep.subr.bf16.mxu0 0
        %5630 = vmatpush1.bf16.msra.mxu0 %v3083
        %5631 = vmatprep.subr.bf16.mxu0 0
        %5632 = vmatpush1.bf16.msra.mxu0 %v3082
        %5633 = vmatprep.subr.bf16.mxu0 0
        %5634 = vmatpush1.bf16.msra.mxu0 %v3081
        %5635 = vmatprep.subr.bf16.mxu0 0
        %5636 = vmatpush1.bf16.msra.mxu0 %v3080
        %5637 = vmatprep.subr.bf16.mxu0 0
        %5638 = vmatpush1.bf16.msra.mxu0 %v3079
        %5639 = vmatprep.subr.bf16.mxu0 0
        %5640 = vmatpush1.bf16.msra.mxu0 %v3078
        %5641 = vmatprep.subr.bf16.mxu0 0
        %5642 = vmatpush2.bf16.msra.mxu0 %v3093
        %5643 = vmatprep.subr.bf16.mxu0 0
        %5644 = vmatpush2.bf16.msra.mxu0 %v3092
        %5645 = vmatprep.subr.bf16.mxu0 0
        %5646 = vmatpush2.bf16.msra.mxu0 %v3091
        %5647 = vmatprep.subr.bf16.mxu0 0
        %5648 = vmatpush2.bf16.msra.mxu0 %v3090
        %5649 = vmatprep.subr.bf16.mxu0 0
        %5650 = vmatpush2.bf16.msra.mxu0 %v3089
        %5651 = vmatprep.subr.bf16.mxu0 0
        %5652 = vmatpush2.bf16.msra.mxu0 %v3088
        %5653 = vmatprep.subr.bf16.mxu0 0
        %5654 = vmatpush2.bf16.msra.mxu0 %v3087
        %5655 = vmatprep.subr.bf16.mxu0 0
        %5656 = vmatpush2.bf16.msra.mxu0 %v3086
        %5657 = vmatprep.mubr.bf16.mxu0 %v4253
        %5658 = vmatmul.mubr.bf16.gmra.mxu0 %v4252
        %v5659 = vpop.f32.mrf.mxu0
        %v5660 = vadd.f32 %v5371, %v5659
        %v5661 = vpop.f32.mrf.mxu0
        %v5662 = vpop.f32.mrf.mxu0
        %v5663 = vadd.f32 %v5374, %v5662
        %v5664 = vpop.f32.mrf.mxu0
        %5665 = vmatprep.mubr.bf16.mxu0 %v4261
        %5666 = vmatmul.mubr.bf16.gmra.mxu0 %v4260
        %v5667 = vpop.f32.mrf.mxu0
        %v5668 = vadd.f32 %v5379, %v5667
        %v5669 = vpop.f32.mrf.mxu0
        %v5670 = vpop.f32.mrf.mxu0
        %v5671 = vadd.f32 %v5382, %v5670
        %v5672 = vpop.f32.mrf.mxu0
        %5673 = vmatprep.mubr.bf16.mxu0 %v4269
        %5674 = vmatmul.mubr.bf16.gmra.mxu0 %v4268
        %v5675 = vpop.f32.mrf.mxu0
        %v5676 = vadd.f32 %v5387, %v5675
        %v5677 = vpop.f32.mrf.mxu0
        %v5678 = vpop.f32.mrf.mxu0
        %v5679 = vadd.f32 %v5390, %v5678
        %v5680 = vpop.f32.mrf.mxu0
        %5681 = vmatprep.mubr.bf16.mxu0 %v4277
        %5682 = vmatmul.mubr.bf16.gmra.mxu0 %v4276
        %v5683 = vpop.f32.mrf.mxu0
        %v5684 = vadd.f32 %v5395, %v5683
        %v5685 = vpop.f32.mrf.mxu0
        %v5686 = vpop.f32.mrf.mxu0
        %v5687 = vadd.f32 %v5398, %v5686
        %v5688 = vpop.f32.mrf.mxu0
        %5689 = vmatprep.mubr.bf16.mxu0 %v4285
        %5690 = vmatmul.mubr.bf16.gmra.mxu0 %v4284
        %v5691 = vpop.f32.mrf.mxu0
        %v5692 = vadd.f32 %v5403, %v5691
        %v5693 = vpop.f32.mrf.mxu0
        %v5694 = vpop.f32.mrf.mxu0
        %v5695 = vadd.f32 %v5406, %v5694
        %v5696 = vpop.f32.mrf.mxu0
        %5697 = vmatprep.mubr.bf16.mxu0 %v4293
        %5698 = vmatmul.mubr.bf16.gmra.mxu0 %v4292
        %v5699 = vpop.f32.mrf.mxu0
        %v5700 = vadd.f32 %v5411, %v5699
        %v5701 = vpop.f32.mrf.mxu0
        %v5702 = vpop.f32.mrf.mxu0
        %v5703 = vadd.f32 %v5414, %v5702
        %v5704 = vpop.f32.mrf.mxu0
        %5705 = vmatprep.mubr.bf16.mxu0 %v4301
        %5706 = vmatmul.mubr.bf16.gmra.mxu0 %v4300
        %v5707 = vpop.f32.mrf.mxu0
        %v5708 = vadd.f32 %v5419, %v5707
        %v5709 = vpop.f32.mrf.mxu0
        %v5710 = vpop.f32.mrf.mxu0
        %v5711 = vadd.f32 %v5422, %v5710
        %v5712 = vpop.f32.mrf.mxu0
        %5713 = vmatprep.mubr.bf16.mxu0 %v4309
        %5714 = vmatmul.mubr.bf16.gmra.mxu0 %v4308
        %v5715 = vpop.f32.mrf.mxu0
        %v5716 = vadd.f32 %v5427, %v5715
        %v5717 = vpop.f32.mrf.mxu0
        %v5718 = vpop.f32.mrf.mxu0
        %v5719 = vadd.f32 %v5430, %v5718
        %v5720 = vpop.f32.mrf.mxu0
        %5721 = vmatprep.mubr.bf16.mxu0 %v4317
        %5722 = vmatmul.mubr.bf16.gmra.mxu0 %v4316
        %v5723 = vpop.f32.mrf.mxu0
        %v5724 = vadd.f32 %v5435, %v5723
        %v5725 = vpop.f32.mrf.mxu0
        %v5726 = vpop.f32.mrf.mxu0
        %v5727 = vadd.f32 %v5438, %v5726
        %v5728 = vpop.f32.mrf.mxu0
        %5729 = vmatprep.mubr.bf16.mxu0 %v4325
        %5730 = vmatmul.mubr.bf16.gmra.mxu0 %v4324
        %v5731 = vpop.f32.mrf.mxu0
        %v5732 = vadd.f32 %v5443, %v5731
        %v5733 = vpop.f32.mrf.mxu0
        %v5734 = vpop.f32.mrf.mxu0
        %v5735 = vadd.f32 %v5446, %v5734
        %v5736 = vpop.f32.mrf.mxu0
        %5737 = vmatprep.mubr.bf16.mxu0 %v4333
        %5738 = vmatmul.mubr.bf16.gmra.mxu0 %v4332
        %v5739 = vpop.f32.mrf.mxu0
        %v5740 = vadd.f32 %v5451, %v5739
        %v5741 = vpop.f32.mrf.mxu0
        %v5742 = vpop.f32.mrf.mxu0
        %v5743 = vadd.f32 %v5454, %v5742
        %v5744 = vpop.f32.mrf.mxu0
        %5745 = vmatprep.mubr.bf16.mxu0 %v4341
        %5746 = vmatmul.mubr.bf16.gmra.mxu0 %v4340
        %v5747 = vpop.f32.mrf.mxu0
        %v5748 = vadd.f32 %v5459, %v5747
        %v5749 = vpop.f32.mrf.mxu0
        %v5750 = vpop.f32.mrf.mxu0
        %v5751 = vadd.f32 %v5462, %v5750
        %v5752 = vpop.f32.mrf.mxu0
        %5753 = vmatprep.mubr.bf16.mxu0 %v4349
        %5754 = vmatmul.mubr.bf16.gmra.mxu0 %v4348
        %v5755 = vpop.f32.mrf.mxu0
        %v5756 = vadd.f32 %v5467, %v5755
        %v5757 = vpop.f32.mrf.mxu0
        %v5758 = vpop.f32.mrf.mxu0
        %v5759 = vadd.f32 %v5470, %v5758
        %v5760 = vpop.f32.mrf.mxu0
        %5761 = vmatprep.mubr.bf16.mxu0 %v4357
        %5762 = vmatmul.mubr.bf16.gmra.mxu0 %v4356
        %v5763 = vpop.f32.mrf.mxu0
        %v5764 = vadd.f32 %v5475, %v5763
        %v5765 = vpop.f32.mrf.mxu0
        %v5766 = vpop.f32.mrf.mxu0
        %v5767 = vadd.f32 %v5478, %v5766
        %v5768 = vpop.f32.mrf.mxu0
        %5769 = vmatprep.mubr.bf16.mxu0 %v4365
        %5770 = vmatmul.mubr.bf16.gmra.mxu0 %v4364
        %v5771 = vpop.f32.mrf.mxu0
        %v5772 = vadd.f32 %v5483, %v5771
        %v5773 = vpop.f32.mrf.mxu0
        %v5774 = vpop.f32.mrf.mxu0
        %v5775 = vadd.f32 %v5486, %v5774
        %v5776 = vpop.f32.mrf.mxu0
        %5777 = vmatprep.mubr.bf16.mxu0 %v4373
        %5778 = vmatmul.mubr.bf16.gmra.mxu0 %v4372
        %v5779 = vpop.f32.mrf.mxu0
        %v5780 = vadd.f32 %v5491, %v5779
        %v5781 = vpop.f32.mrf.mxu0
        %v5782 = vpop.f32.mrf.mxu0
        %v5783 = vadd.f32 %v5494, %v5782
        %v5784 = vpop.f32.mrf.mxu0
        %5785 = vmatprep.mubr.bf16.mxu0 %v4381
        %5786 = vmatmul.mubr.bf16.gmra.mxu0 %v4380
        %v5787 = vpop.f32.mrf.mxu0
        %v5788 = vadd.f32 %v5499, %v5787
        %v5789 = vpop.f32.mrf.mxu0
        %v5790 = vpop.f32.mrf.mxu0
        %v5791 = vadd.f32 %v5502, %v5790
        %v5792 = vpop.f32.mrf.mxu0
        %5793 = vmatprep.mubr.bf16.mxu0 %v4389
        %5794 = vmatmul.mubr.bf16.gmra.mxu0 %v4388
        %v5795 = vpop.f32.mrf.mxu0
        %v5796 = vadd.f32 %v5507, %v5795
        %v5797 = vpop.f32.mrf.mxu0
        %v5798 = vpop.f32.mrf.mxu0
        %v5799 = vadd.f32 %v5510, %v5798
        %v5800 = vpop.f32.mrf.mxu0
        %5801 = vmatprep.mubr.bf16.mxu0 %v4397
        %5802 = vmatmul.mubr.bf16.gmra.mxu0 %v4396
        %v5803 = vpop.f32.mrf.mxu0
        %v5804 = vadd.f32 %v5515, %v5803
        %v5805 = vpop.f32.mrf.mxu0
        %v5806 = vpop.f32.mrf.mxu0
        %v5807 = vadd.f32 %v5518, %v5806
        %v5808 = vpop.f32.mrf.mxu0
        %5809 = vmatprep.mubr.bf16.mxu0 %v4405
        %5810 = vmatmul.mubr.bf16.gmra.mxu0 %v4404
        %v5811 = vpop.f32.mrf.mxu0
        %v5812 = vadd.f32 %v5523, %v5811
        %v5813 = vpop.f32.mrf.mxu0
        %v5814 = vpop.f32.mrf.mxu0
        %v5815 = vadd.f32 %v5526, %v5814
        %v5816 = vpop.f32.mrf.mxu0
        %5817 = vmatprep.mubr.bf16.mxu0 %v4413
        %5818 = vmatmul.mubr.bf16.gmra.mxu0 %v4412
        %v5819 = vpop.f32.mrf.mxu0
        %v5820 = vadd.f32 %v5531, %v5819
        %v5821 = vpop.f32.mrf.mxu0
        %v5822 = vpop.f32.mrf.mxu0
        %v5823 = vadd.f32 %v5534, %v5822
        %v5824 = vpop.f32.mrf.mxu0
        %5825 = vmatprep.mubr.bf16.mxu0 %v4421
        %5826 = vmatmul.mubr.bf16.gmra.mxu0 %v4420
        %v5827 = vpop.f32.mrf.mxu0
        %v5828 = vadd.f32 %v5539, %v5827
        %v5829 = vpop.f32.mrf.mxu0
        %v5830 = vpop.f32.mrf.mxu0
        %v5831 = vadd.f32 %v5542, %v5830
        %v5832 = vpop.f32.mrf.mxu0
        %5833 = vmatprep.mubr.bf16.mxu0 %v4429
        %5834 = vmatmul.mubr.bf16.gmra.mxu0 %v4428
        %v5835 = vpop.f32.mrf.mxu0
        %v5836 = vadd.f32 %v5547, %v5835
        %v5837 = vpop.f32.mrf.mxu0
        %v5838 = vpop.f32.mrf.mxu0
        %v5839 = vadd.f32 %v5550, %v5838
        %v5840 = vpop.f32.mrf.mxu0
        %5841 = vmatprep.mubr.bf16.mxu0 %v4437
        %5842 = vmatmul.mubr.bf16.gmra.mxu0 %v4436
        %v5843 = vpop.f32.mrf.mxu0
        %v5844 = vadd.f32 %v5555, %v5843
        %v5845 = vpop.f32.mrf.mxu0
        %v5846 = vpop.f32.mrf.mxu0
        %v5847 = vadd.f32 %v5558, %v5846
        %v5848 = vpop.f32.mrf.mxu0
        %5849 = vmatprep.mubr.bf16.mxu0 %v4445
        %5850 = vmatmul.mubr.bf16.gmra.mxu0 %v4444
        %v5851 = vpop.f32.mrf.mxu0
        %v5852 = vadd.f32 %v5563, %v5851
        %v5853 = vpop.f32.mrf.mxu0
        %v5854 = vpop.f32.mrf.mxu0
        %v5855 = vadd.f32 %v5566, %v5854
        %v5856 = vpop.f32.mrf.mxu0
        %5857 = vmatprep.mubr.bf16.mxu0 %v4453
        %5858 = vmatmul.mubr.bf16.gmra.mxu0 %v4452
        %v5859 = vpop.f32.mrf.mxu0
        %v5860 = vadd.f32 %v5571, %v5859
        %v5861 = vpop.f32.mrf.mxu0
        %v5862 = vpop.f32.mrf.mxu0
        %v5863 = vadd.f32 %v5574, %v5862
        %v5864 = vpop.f32.mrf.mxu0
        %5865 = vmatprep.mubr.bf16.mxu0 %v4461
        %5866 = vmatmul.mubr.bf16.gmra.mxu0 %v4460
        %v5867 = vpop.f32.mrf.mxu0
        %v5868 = vadd.f32 %v5579, %v5867
        %v5869 = vpop.f32.mrf.mxu0
        %v5870 = vpop.f32.mrf.mxu0
        %v5871 = vadd.f32 %v5582, %v5870
        %v5872 = vpop.f32.mrf.mxu0
        %5873 = vmatprep.mubr.bf16.mxu0 %v4469
        %5874 = vmatmul.mubr.bf16.gmra.mxu0 %v4468
        %v5875 = vpop.f32.mrf.mxu0
        %v5876 = vadd.f32 %v5587, %v5875
        %v5877 = vpop.f32.mrf.mxu0
        %v5878 = vpop.f32.mrf.mxu0
        %v5879 = vadd.f32 %v5590, %v5878
        %v5880 = vpop.f32.mrf.mxu0
        %5881 = vmatprep.mubr.bf16.mxu0 %v4477
        %5882 = vmatmul.mubr.bf16.gmra.mxu0 %v4476
        %v5883 = vpop.f32.mrf.mxu0
        %v5884 = vadd.f32 %v5595, %v5883
        %v5885 = vpop.f32.mrf.mxu0
        %v5886 = vpop.f32.mrf.mxu0
        %v5887 = vadd.f32 %v5598, %v5886
        %v5888 = vpop.f32.mrf.mxu0
        %5889 = vmatprep.mubr.bf16.mxu0 %v4485
        %5890 = vmatmul.mubr.bf16.gmra.mxu0 %v4484
        %v5891 = vpop.f32.mrf.mxu0
        %v5892 = vadd.f32 %v5603, %v5891
        %v5893 = vpop.f32.mrf.mxu0
        %v5894 = vpop.f32.mrf.mxu0
        %v5895 = vadd.f32 %v5606, %v5894
        %v5896 = vpop.f32.mrf.mxu0
        %5897 = vmatprep.mubr.bf16.mxu0 %v4493
        %5898 = vmatmul.mubr.bf16.gmra.mxu0 %v4492
        %v5899 = vpop.f32.mrf.mxu0
        %v5900 = vadd.f32 %v5611, %v5899
        %v5901 = vpop.f32.mrf.mxu0
        %v5902 = vpop.f32.mrf.mxu0
        %v5903 = vadd.f32 %v5614, %v5902
        %v5904 = vpop.f32.mrf.mxu0
        %5905 = vmatprep.mubr.bf16.mxu0 %v4501
        %5906 = vmatmul.mubr.bf16.gmra.mxu0 %v4500
        %v5907 = vpop.f32.mrf.mxu0
        %v5908 = vadd.f32 %v5619, %v5907
        %v5909 = vpop.f32.mrf.mxu0
        %v5910 = vpop.f32.mrf.mxu0
        %v5911 = vadd.f32 %v5622, %v5910
        %v5912 = vpop.f32.mrf.mxu0
        %5913 = vdwg.mxu0
        %vm5914 = vcmp.gt.f32.partialorder %v5660, 0.0
        %vm5915 = vcmp.gt.f32.partialorder %v5663, 0.0
        %vm5916 = vcmp.gt.f32.partialorder %v5668, 0.0
        %vm5917 = vcmp.gt.f32.partialorder %v5671, 0.0
        %vm5918 = vcmp.gt.f32.partialorder %v5676, 0.0
        %vm5919 = vcmp.gt.f32.partialorder %v5679, 0.0
        %vm5920 = vcmp.gt.f32.partialorder %v5684, 0.0
        %vm5921 = vcmp.gt.f32.partialorder %v5687, 0.0
        %vm5922 = vcmp.gt.f32.partialorder %v5692, 0.0
        %vm5923 = vcmp.gt.f32.partialorder %v5695, 0.0
        %vm5924 = vcmp.gt.f32.partialorder %v5700, 0.0
        %vm5925 = vcmp.gt.f32.partialorder %v5703, 0.0
        %vm5926 = vcmp.gt.f32.partialorder %v5708, 0.0
        %vm5927 = vcmp.gt.f32.partialorder %v5711, 0.0
        %vm5928 = vcmp.gt.f32.partialorder %v5716, 0.0
        %vm5929 = vcmp.gt.f32.partialorder %v5719, 0.0
        %vm5930 = vcmp.gt.f32.partialorder %v5724, 0.0
        %vm5931 = vcmp.gt.f32.partialorder %v5727, 0.0
        %vm5932 = vcmp.gt.f32.partialorder %v5732, 0.0
        %vm5933 = vcmp.gt.f32.partialorder %v5735, 0.0
        %vm5934 = vcmp.gt.f32.partialorder %v5740, 0.0
        %vm5935 = vcmp.gt.f32.partialorder %v5743, 0.0
        %vm5936 = vcmp.gt.f32.partialorder %v5748, 0.0
        %vm5937 = vcmp.gt.f32.partialorder %v5751, 0.0
        %vm5938 = vcmp.gt.f32.partialorder %v5756, 0.0
        %vm5939 = vcmp.gt.f32.partialorder %v5759, 0.0
        %vm5940 = vcmp.gt.f32.partialorder %v5764, 0.0
        %vm5941 = vcmp.gt.f32.partialorder %v5767, 0.0
        %vm5942 = vcmp.gt.f32.partialorder %v5772, 0.0
        %vm5943 = vcmp.gt.f32.partialorder %v5775, 0.0
        %vm5944 = vcmp.gt.f32.partialorder %v5780, 0.0
        %vm5945 = vcmp.gt.f32.partialorder %v5783, 0.0
        %vm5946 = vcmp.gt.f32.partialorder %v5788, 0.0
        %vm5947 = vcmp.gt.f32.partialorder %v5791, 0.0
        %vm5948 = vcmp.gt.f32.partialorder %v5796, 0.0
        %vm5949 = vcmp.gt.f32.partialorder %v5799, 0.0
        %vm5950 = vcmp.gt.f32.partialorder %v5804, 0.0
        %vm5951 = vcmp.gt.f32.partialorder %v5807, 0.0
        %vm5952 = vcmp.gt.f32.partialorder %v5812, 0.0
        %vm5953 = vcmp.gt.f32.partialorder %v5815, 0.0
        %vm5954 = vcmp.gt.f32.partialorder %v5820, 0.0
        %vm5955 = vcmp.gt.f32.partialorder %v5823, 0.0
        %vm5956 = vcmp.gt.f32.partialorder %v5828, 0.0
        %vm5957 = vcmp.gt.f32.partialorder %v5831, 0.0
        %vm5958 = vcmp.gt.f32.partialorder %v5836, 0.0
        %vm5959 = vcmp.gt.f32.partialorder %v5839, 0.0
        %vm5960 = vcmp.gt.f32.partialorder %v5844, 0.0
        %vm5961 = vcmp.gt.f32.partialorder %v5847, 0.0
        %vm5962 = vcmp.gt.f32.partialorder %v5852, 0.0
        %vm5963 = vcmp.gt.f32.partialorder %v5855, 0.0
        %vm5964 = vcmp.gt.f32.partialorder %v5860, 0.0
        %vm5965 = vcmp.gt.f32.partialorder %v5863, 0.0
        %vm5966 = vcmp.gt.f32.partialorder %v5868, 0.0
        %vm5967 = vcmp.gt.f32.partialorder %v5871, 0.0
        %vm5968 = vcmp.gt.f32.partialorder %v5876, 0.0
        %vm5969 = vcmp.gt.f32.partialorder %v5879, 0.0
        %vm5970 = vcmp.gt.f32.partialorder %v5884, 0.0
        %vm5971 = vcmp.gt.f32.partialorder %v5887, 0.0
        %vm5972 = vcmp.gt.f32.partialorder %v5892, 0.0
        %vm5973 = vcmp.gt.f32.partialorder %v5895, 0.0
        %vm5974 = vcmp.gt.f32.partialorder %v5900, 0.0
        %vm5975 = vcmp.gt.f32.partialorder %v5903, 0.0
        %vm5976 = vcmp.gt.f32.partialorder %v5908, 0.0
        %vm5977 = vcmp.gt.f32.partialorder %v5911, 0.0
        %v5978 = vmul.f32 %v5660, 0.2
        %v5979 = vmul.f32 %v5663, 0.2
        %v5980 = vmul.f32 %v5668, 0.2
        %v5981 = vmul.f32 %v5671, 0.2
        %v5982 = vmul.f32 %v5676, 0.2
        %v5983 = vmul.f32 %v5679, 0.2
        %v5984 = vmul.f32 %v5684, 0.2
        %v5985 = vmul.f32 %v5687, 0.2
        %v5986 = vmul.f32 %v5692, 0.2
        %v5987 = vmul.f32 %v5695, 0.2
        %v5988 = vmul.f32 %v5700, 0.2
        %v5989 = vmul.f32 %v5703, 0.2
        %v5990 = vmul.f32 %v5708, 0.2
        %v5991 = vmul.f32 %v5711, 0.2
        %v5992 = vmul.f32 %v5716, 0.2
        %v5993 = vmul.f32 %v5719, 0.2
        %v5994 = vmul.f32 %v5724, 0.2
        %v5995 = vmul.f32 %v5727, 0.2
        %v5996 = vmul.f32 %v5732, 0.2
        %v5997 = vmul.f32 %v5735, 0.2
        %v5998 = vmul.f32 %v5740, 0.2
        %v5999 = vmul.f32 %v5743, 0.2
        %v6000 = vmul.f32 %v5748, 0.2
        %v6001 = vmul.f32 %v5751, 0.2
        %v6002 = vmul.f32 %v5756, 0.2
        %v6003 = vmul.f32 %v5759, 0.2
        %v6004 = vmul.f32 %v5764, 0.2
        %v6005 = vmul.f32 %v5767, 0.2
        %v6006 = vmul.f32 %v5772, 0.2
        %v6007 = vmul.f32 %v5775, 0.2
        %v6008 = vmul.f32 %v5780, 0.2
        %v6009 = vmul.f32 %v5783, 0.2
        %v6010 = vmul.f32 %v5788, 0.2
        %v6011 = vmul.f32 %v5791, 0.2
        %v6012 = vmul.f32 %v5796, 0.2
        %v6013 = vmul.f32 %v5799, 0.2
        %v6014 = vmul.f32 %v5804, 0.2
        %v6015 = vmul.f32 %v5807, 0.2
        %v6016 = vmul.f32 %v5812, 0.2
        %v6017 = vmul.f32 %v5815, 0.2
        %v6018 = vmul.f32 %v5820, 0.2
        %v6019 = vmul.f32 %v5823, 0.2
        %v6020 = vmul.f32 %v5828, 0.2
        %v6021 = vmul.f32 %v5831, 0.2
        %v6022 = vmul.f32 %v5836, 0.2
        %v6023 = vmul.f32 %v5839, 0.2
        %v6024 = vmul.f32 %v5844, 0.2
        %v6025 = vmul.f32 %v5847, 0.2
        %v6026 = vmul.f32 %v5852, 0.2
        %v6027 = vmul.f32 %v5855, 0.2
        %v6028 = vmul.f32 %v5860, 0.2
        %v6029 = vmul.f32 %v5863, 0.2
        %v6030 = vmul.f32 %v5868, 0.2
        %v6031 = vmul.f32 %v5871, 0.2
        %v6032 = vmul.f32 %v5876, 0.2
        %v6033 = vmul.f32 %v5879, 0.2
        %v6034 = vmul.f32 %v5884, 0.2
        %v6035 = vmul.f32 %v5887, 0.2
        %v6036 = vmul.f32 %v5892, 0.2
        %v6037 = vmul.f32 %v5895, 0.2
        %v6038 = vmul.f32 %v5900, 0.2
        %v6039 = vmul.f32 %v5903, 0.2
        %v6040 = vmul.f32 %v5908, 0.2
        %v6041 = vmul.f32 %v5911, 0.2
        %v6042 = vsel %vm5914, %v5660, %v5978
        %v6043 = vsel %vm5915, %v5663, %v5979
        %v6044 = vsel %vm5916, %v5668, %v5980
        %v6045 = vsel %vm5917, %v5671, %v5981
        %v6046 = vsel %vm5918, %v5676, %v5982
        %v6047 = vsel %vm5919, %v5679, %v5983
        %v6048 = vsel %vm5920, %v5684, %v5984
        %v6049 = vsel %vm5921, %v5687, %v5985
        %v6050 = vsel %vm5922, %v5692, %v5986
        %v6051 = vsel %vm5923, %v5695, %v5987
        %v6052 = vsel %vm5924, %v5700, %v5988
        %v6053 = vsel %vm5925, %v5703, %v5989
        %v6054 = vsel %vm5926, %v5708, %v5990
        %v6055 = vsel %vm5927, %v5711, %v5991
        %v6056 = vsel %vm5928, %v5716, %v5992
        %v6057 = vsel %vm5929, %v5719, %v5993
        %v6058 = vsel %vm5930, %v5724, %v5994
        %v6059 = vsel %vm5931, %v5727, %v5995
        %v6060 = vsel %vm5932, %v5732, %v5996
        %v6061 = vsel %vm5933, %v5735, %v5997
        %v6062 = vsel %vm5934, %v5740, %v5998
        %v6063 = vsel %vm5935, %v5743, %v5999
        %v6064 = vsel %vm5936, %v5748, %v6000
        %v6065 = vsel %vm5937, %v5751, %v6001
        %v6066 = vsel %vm5938, %v5756, %v6002
        %v6067 = vsel %vm5939, %v5759, %v6003
        %v6068 = vsel %vm5940, %v5764, %v6004
        %v6069 = vsel %vm5941, %v5767, %v6005
        %v6070 = vsel %vm5942, %v5772, %v6006
        %v6071 = vsel %vm5943, %v5775, %v6007
        %v6072 = vsel %vm5944, %v5780, %v6008
        %v6073 = vsel %vm5945, %v5783, %v6009
        %v6074 = vsel %vm5946, %v5788, %v6010
        %v6075 = vsel %vm5947, %v5791, %v6011
        %v6076 = vsel %vm5948, %v5796, %v6012
        %v6077 = vsel %vm5949, %v5799, %v6013
        %v6078 = vsel %vm5950, %v5804, %v6014
        %v6079 = vsel %vm5951, %v5807, %v6015
        %v6080 = vsel %vm5952, %v5812, %v6016
        %v6081 = vsel %vm5953, %v5815, %v6017
        %v6082 = vsel %vm5954, %v5820, %v6018
        %v6083 = vsel %vm5955, %v5823, %v6019
        %v6084 = vsel %vm5956, %v5828, %v6020
        %v6085 = vsel %vm5957, %v5831, %v6021
        %v6086 = vsel %vm5958, %v5836, %v6022
        %v6087 = vsel %vm5959, %v5839, %v6023
        %v6088 = vsel %vm5960, %v5844, %v6024
        %v6089 = vsel %vm5961, %v5847, %v6025
        %v6090 = vsel %vm5962, %v5852, %v6026
        %v6091 = vsel %vm5963, %v5855, %v6027
        %v6092 = vsel %vm5964, %v5860, %v6028
        %v6093 = vsel %vm5965, %v5863, %v6029
        %v6094 = vsel %vm5966, %v5868, %v6030
        %v6095 = vsel %vm5967, %v5871, %v6031
        %v6096 = vsel %vm5968, %v5876, %v6032
        %v6097 = vsel %vm5969, %v5879, %v6033
        %v6098 = vsel %vm5970, %v5884, %v6034
        %v6099 = vsel %vm5971, %v5887, %v6035
        %v6100 = vsel %vm5972, %v5892, %v6036
        %v6101 = vsel %vm5973, %v5895, %v6037
        %v6102 = vsel %vm5974, %v5900, %v6038
        %v6103 = vsel %vm5975, %v5903, %v6039
        %v6104 = vsel %vm5976, %v5908, %v6040
        %v6105 = vsel %vm5977, %v5911, %v6041
        %v6106 = vld [vmem:[%s5] sm:$0xff]
        %v6107 = vld [vmem:[%s5 + $0x8] sm:$0xff]
        %v6108 = vld [vmem:[%s5 + $0x10] sm:$0xff]
        %v6109 = vld [vmem:[%s5 + $0x18] sm:$0xff]
        %v6110 = vld [vmem:[%s5 + $0x20] sm:$0xff]
        %v6111 = vld [vmem:[%s5 + $0x28] sm:$0xff]
        %v6112 = vld [vmem:[%s5 + $0x30] sm:$0xff]
        %v6113 = vld [vmem:[%s5 + $0x38] sm:$0xff]
        %v6114 = vld [vmem:[%s5 + $0x40] sm:$0xff]
        %v6115 = vld [vmem:[%s5 + $0x48] sm:$0xff]
        %v6116 = vld [vmem:[%s5 + $0x50] sm:$0xff]
        %v6117 = vld [vmem:[%s5 + $0x58] sm:$0xff]
        %v6118 = vld [vmem:[%s5 + $0x60] sm:$0xff]
        %v6119 = vld [vmem:[%s5 + $0x68] sm:$0xff]
        %v6120 = vld [vmem:[%s5 + $0x70] sm:$0xff]
        %v6121 = vld [vmem:[%s5 + $0x78] sm:$0xff]
        %v6122 = vld [vmem:[%s5 + $0x80] sm:$0xff]
        %v6123 = vld [vmem:[%s5 + $0x88] sm:$0xff]
        %v6124 = vld [vmem:[%s5 + $0x90] sm:$0xff]
        %v6125 = vld [vmem:[%s5 + $0x98] sm:$0xff]
        %v6126 = vld [vmem:[%s5 + $0xa0] sm:$0xff]
        %v6127 = vld [vmem:[%s5 + $0xa8] sm:$0xff]
        %v6128 = vld [vmem:[%s5 + $0xb0] sm:$0xff]
        %v6129 = vld [vmem:[%s5 + $0xb8] sm:$0xff]
        %v6130 = vld [vmem:[%s5 + $0xc0] sm:$0xff]
        %v6131 = vld [vmem:[%s5 + $0xc8] sm:$0xff]
        %v6132 = vld [vmem:[%s5 + $0xd0] sm:$0xff]
        %v6133 = vld [vmem:[%s5 + $0xd8] sm:$0xff]
        %v6134 = vld [vmem:[%s5 + $0xe0] sm:$0xff]
        %v6135 = vld [vmem:[%s5 + $0xe8] sm:$0xff]
        %v6136 = vld [vmem:[%s5 + $0xf0] sm:$0xff]
        %v6137 = vld [vmem:[%s5 + $0xf8] sm:$0xff]
        %v6138 = vld [vmem:[%s5 + $0x100] sm:$0xff]
        %v6139 = vld [vmem:[%s5 + $0x108] sm:$0xff]
        %v6140 = vld [vmem:[%s5 + $0x110] sm:$0xff]
        %v6141 = vld [vmem:[%s5 + $0x118] sm:$0xff]
        %v6142 = vld [vmem:[%s5 + $0x120] sm:$0xff]
        %v6143 = vld [vmem:[%s5 + $0x128] sm:$0xff]
        %v6144 = vld [vmem:[%s5 + $0x130] sm:$0xff]
        %v6145 = vld [vmem:[%s5 + $0x138] sm:$0xff]
        %v6146 = vld [vmem:[%s5 + $0x140] sm:$0xff]
        %v6147 = vld [vmem:[%s5 + $0x148] sm:$0xff]
        %v6148 = vld [vmem:[%s5 + $0x150] sm:$0xff]
        %v6149 = vld [vmem:[%s5 + $0x158] sm:$0xff]
        %v6150 = vld [vmem:[%s5 + $0x160] sm:$0xff]
        %v6151 = vld [vmem:[%s5 + $0x168] sm:$0xff]
        %v6152 = vld [vmem:[%s5 + $0x170] sm:$0xff]
        %v6153 = vld [vmem:[%s5 + $0x178] sm:$0xff]
        %v6154 = vld [vmem:[%s5 + $0x180] sm:$0xff]
        %v6155 = vld [vmem:[%s5 + $0x188] sm:$0xff]
        %v6156 = vld [vmem:[%s5 + $0x190] sm:$0xff]
        %v6157 = vld [vmem:[%s5 + $0x198] sm:$0xff]
        %v6158 = vld [vmem:[%s5 + $0x1a0] sm:$0xff]
        %v6159 = vld [vmem:[%s5 + $0x1a8] sm:$0xff]
        %v6160 = vld [vmem:[%s5 + $0x1b0] sm:$0xff]
        %v6161 = vld [vmem:[%s5 + $0x1b8] sm:$0xff]
        %v6162 = vld [vmem:[%s5 + $0x1c0] sm:$0xff]
        %v6163 = vld [vmem:[%s5 + $0x1c8] sm:$0xff]
        %v6164 = vld [vmem:[%s5 + $0x1d0] sm:$0xff]
        %v6165 = vld [vmem:[%s5 + $0x1d8] sm:$0xff]
        %v6166 = vld [vmem:[%s5 + $0x1e0] sm:$0xff]
        %v6167 = vld [vmem:[%s5 + $0x1e8] sm:$0xff]
        %v6168 = vld [vmem:[%s5 + $0x1f0] sm:$0xff]
        %v6169 = vld [vmem:[%s5 + $0x1f8] sm:$0xff]
        %v6170 = vpack.c.bf16 %v6043, %v6042
        %v6171 = vpack.c.bf16 %v6045, %v6044
        %v6172 = vpack.c.bf16 %v6047, %v6046
        %v6173 = vpack.c.bf16 %v6049, %v6048
        %v6174 = vpack.c.bf16 %v6051, %v6050
        %v6175 = vpack.c.bf16 %v6053, %v6052
        %v6176 = vpack.c.bf16 %v6055, %v6054
        %v6177 = vpack.c.bf16 %v6057, %v6056
        %v6178 = vpack.c.bf16 %v6059, %v6058
        %v6179 = vpack.c.bf16 %v6061, %v6060
        %v6180 = vpack.c.bf16 %v6063, %v6062
        %v6181 = vpack.c.bf16 %v6065, %v6064
        %v6182 = vpack.c.bf16 %v6067, %v6066
        %v6183 = vpack.c.bf16 %v6069, %v6068
        %v6184 = vpack.c.bf16 %v6071, %v6070
        %v6185 = vpack.c.bf16 %v6073, %v6072
        %v6186 = vpack.c.bf16 %v6075, %v6074
        %v6187 = vpack.c.bf16 %v6077, %v6076
        %v6188 = vpack.c.bf16 %v6079, %v6078
        %v6189 = vpack.c.bf16 %v6081, %v6080
        %v6190 = vpack.c.bf16 %v6083, %v6082
        %v6191 = vpack.c.bf16 %v6085, %v6084
        %v6192 = vpack.c.bf16 %v6087, %v6086
        %v6193 = vpack.c.bf16 %v6089, %v6088
        %v6194 = vpack.c.bf16 %v6091, %v6090
        %v6195 = vpack.c.bf16 %v6093, %v6092
        %v6196 = vpack.c.bf16 %v6095, %v6094
        %v6197 = vpack.c.bf16 %v6097, %v6096
        %v6198 = vpack.c.bf16 %v6099, %v6098
        %v6199 = vpack.c.bf16 %v6101, %v6100
        %v6200 = vpack.c.bf16 %v6103, %v6102
        %v6201 = vpack.c.bf16 %v6105, %v6104
        %v6202 = vld [vmem:[%s6] sm:$0xff]
        %v6203 = vld [vmem:[%s6 + $0x8] sm:$0xff]
        %v6204 = vld [vmem:[%s6 + $0x10] sm:$0xff]
        %v6205 = vld [vmem:[%s6 + $0x18] sm:$0xff]
        %v6206 = vld [vmem:[%s6 + $0x20] sm:$0xff]
        %v6207 = vld [vmem:[%s6 + $0x28] sm:$0xff]
        %v6208 = vld [vmem:[%s6 + $0x30] sm:$0xff]
        %v6209 = vld [vmem:[%s6 + $0x38] sm:$0xff]
        %v6210 = vld [vmem:[%s6 + $0x40] sm:$0xff]
        %v6211 = vld [vmem:[%s6 + $0x48] sm:$0xff]
        %v6212 = vld [vmem:[%s6 + $0x50] sm:$0xff]
        %v6213 = vld [vmem:[%s6 + $0x58] sm:$0xff]
        %v6214 = vld [vmem:[%s6 + $0x60] sm:$0xff]
        %v6215 = vld [vmem:[%s6 + $0x68] sm:$0xff]
        %v6216 = vld [vmem:[%s6 + $0x70] sm:$0xff]
        %v6217 = vld [vmem:[%s6 + $0x78] sm:$0xff]
        %v6218 = vld [vmem:[%s6 + $0x80] sm:$0xff]
        %v6219 = vld [vmem:[%s6 + $0x88] sm:$0xff]
        %v6220 = vld [vmem:[%s6 + $0x90] sm:$0xff]
        %v6221 = vld [vmem:[%s6 + $0x98] sm:$0xff]
        %v6222 = vld [vmem:[%s6 + $0xa0] sm:$0xff]
        %v6223 = vld [vmem:[%s6 + $0xa8] sm:$0xff]
        %v6224 = vld [vmem:[%s6 + $0xb0] sm:$0xff]
        %v6225 = vld [vmem:[%s6 + $0xb8] sm:$0xff]
        %v6226 = vld [vmem:[%s6 + $0xc0] sm:$0xff]
        %v6227 = vld [vmem:[%s6 + $0xc8] sm:$0xff]
        %v6228 = vld [vmem:[%s6 + $0xd0] sm:$0xff]
        %v6229 = vld [vmem:[%s6 + $0xd8] sm:$0xff]
        %v6230 = vld [vmem:[%s6 + $0xe0] sm:$0xff]
        %v6231 = vld [vmem:[%s6 + $0xe8] sm:$0xff]
        %v6232 = vld [vmem:[%s6 + $0xf0] sm:$0xff]
        %v6233 = vld [vmem:[%s6 + $0xf8] sm:$0xff]
        %6235 = vset.pattern.permute.xlu0 0
        %6236 = vperm.xlu0 %6235, %v6202
        %v6237 = vpop.permute.xlu0 %6236
        %6240 = vset.pattern.permute.xlu0 0
        %6241 = vperm.xlu0 %6240, %v6203
        %v6242 = vpop.permute.xlu0 %6241
        %6245 = vset.pattern.permute.xlu0 0
        %6246 = vperm.xlu0 %6245, %v6204
        %v6247 = vpop.permute.xlu0 %6246
        %6250 = vset.pattern.permute.xlu0 0
        %6251 = vperm.xlu0 %6250, %v6205
        %v6252 = vpop.permute.xlu0 %6251
        %6255 = vset.pattern.permute.xlu0 0
        %6256 = vperm.xlu0 %6255, %v6206
        %v6257 = vpop.permute.xlu0 %6256
        %6260 = vset.pattern.permute.xlu0 0
        %6261 = vperm.xlu0 %6260, %v6207
        %v6262 = vpop.permute.xlu0 %6261
        %6265 = vset.pattern.permute.xlu0 0
        %6266 = vperm.xlu0 %6265, %v6208
        %v6267 = vpop.permute.xlu0 %6266
        %6270 = vset.pattern.permute.xlu0 0
        %6271 = vperm.xlu0 %6270, %v6209
        %v6272 = vpop.permute.xlu0 %6271
        %6275 = vset.pattern.permute.xlu0 0
        %6276 = vperm.xlu0 %6275, %v6210
        %v6277 = vpop.permute.xlu0 %6276
        %6280 = vset.pattern.permute.xlu0 0
        %6281 = vperm.xlu0 %6280, %v6211
        %v6282 = vpop.permute.xlu0 %6281
        %6285 = vset.pattern.permute.xlu0 0
        %6286 = vperm.xlu0 %6285, %v6212
        %v6287 = vpop.permute.xlu0 %6286
        %6290 = vset.pattern.permute.xlu0 0
        %6291 = vperm.xlu0 %6290, %v6213
        %v6292 = vpop.permute.xlu0 %6291
        %6295 = vset.pattern.permute.xlu0 0
        %6296 = vperm.xlu0 %6295, %v6214
        %v6297 = vpop.permute.xlu0 %6296
        %6300 = vset.pattern.permute.xlu0 0
        %6301 = vperm.xlu0 %6300, %v6215
        %v6302 = vpop.permute.xlu0 %6301
        %6305 = vset.pattern.permute.xlu0 0
        %6306 = vperm.xlu0 %6305, %v6216
        %v6307 = vpop.permute.xlu0 %6306
        %6310 = vset.pattern.permute.xlu0 0
        %6311 = vperm.xlu0 %6310, %v6217
        %v6312 = vpop.permute.xlu0 %6311
        %6315 = vset.pattern.permute.xlu0 0
        %6316 = vperm.xlu0 %6315, %v6218
        %v6317 = vpop.permute.xlu0 %6316
        %6320 = vset.pattern.permute.xlu0 0
        %6321 = vperm.xlu0 %6320, %v6219
        %v6322 = vpop.permute.xlu0 %6321
        %6325 = vset.pattern.permute.xlu0 0
        %6326 = vperm.xlu0 %6325, %v6220
        %v6327 = vpop.permute.xlu0 %6326
        %6330 = vset.pattern.permute.xlu0 0
        %6331 = vperm.xlu0 %6330, %v6221
        %v6332 = vpop.permute.xlu0 %6331
        %6335 = vset.pattern.permute.xlu0 0
        %6336 = vperm.xlu0 %6335, %v6222
        %v6337 = vpop.permute.xlu0 %6336
        %6340 = vset.pattern.permute.xlu0 0
        %6341 = vperm.xlu0 %6340, %v6223
        %v6342 = vpop.permute.xlu0 %6341
        %6345 = vset.pattern.permute.xlu0 0
        %6346 = vperm.xlu0 %6345, %v6224
        %v6347 = vpop.permute.xlu0 %6346
        %6350 = vset.pattern.permute.xlu0 0
        %6351 = vperm.xlu0 %6350, %v6225
        %v6352 = vpop.permute.xlu0 %6351
        %6355 = vset.pattern.permute.xlu0 0
        %6356 = vperm.xlu0 %6355, %v6226
        %v6357 = vpop.permute.xlu0 %6356
        %6360 = vset.pattern.permute.xlu0 0
        %6361 = vperm.xlu0 %6360, %v6227
        %v6362 = vpop.permute.xlu0 %6361
        %6365 = vset.pattern.permute.xlu0 0
        %6366 = vperm.xlu0 %6365, %v6228
        %v6367 = vpop.permute.xlu0 %6366
        %6370 = vset.pattern.permute.xlu0 0
        %6371 = vperm.xlu0 %6370, %v6229
        %v6372 = vpop.permute.xlu0 %6371
        %6375 = vset.pattern.permute.xlu0 0
        %6376 = vperm.xlu0 %6375, %v6230
        %v6377 = vpop.permute.xlu0 %6376
        %6380 = vset.pattern.permute.xlu0 0
        %6381 = vperm.xlu0 %6380, %v6231
        %v6382 = vpop.permute.xlu0 %6381
        %6385 = vset.pattern.permute.xlu0 0
        %6386 = vperm.xlu0 %6385, %v6232
        %v6387 = vpop.permute.xlu0 %6386
        %6390 = vset.pattern.permute.xlu0 0
        %6391 = vperm.xlu0 %6390, %v6233
        %v6392 = vpop.permute.xlu0 %6391
        %v6458 = vunpack.c.l.b16 %v6106
        %v6459 = vunpack.c.h.b16 %v6106
        %v6460 = vunpack.c.l.b16 %v6107
        %v6461 = vunpack.c.h.b16 %v6107
        %v6462 = vunpack.c.l.b16 %v6108
        %v6463 = vunpack.c.h.b16 %v6108
        %v6464 = vunpack.c.l.b16 %v6109
        %v6465 = vunpack.c.h.b16 %v6109
        %v6466 = vunpack.c.l.b16 %v6110
        %v6467 = vunpack.c.h.b16 %v6110
        %v6468 = vunpack.c.l.b16 %v6111
        %v6469 = vunpack.c.h.b16 %v6111
        %v6470 = vunpack.c.l.b16 %v6112
        %v6471 = vunpack.c.h.b16 %v6112
        %v6472 = vunpack.c.l.b16 %v6113
        %v6473 = vunpack.c.h.b16 %v6113
        %v6474 = vunpack.c.l.b16 %v6114
        %v6475 = vunpack.c.h.b16 %v6114
        %v6476 = vunpack.c.l.b16 %v6115
        %v6477 = vunpack.c.h.b16 %v6115
        %v6478 = vunpack.c.l.b16 %v6116
        %v6479 = vunpack.c.h.b16 %v6116
        %v6480 = vunpack.c.l.b16 %v6117
        %v6481 = vunpack.c.h.b16 %v6117
        %v6482 = vunpack.c.l.b16 %v6118
        %v6483 = vunpack.c.h.b16 %v6118
        %v6484 = vunpack.c.l.b16 %v6119
        %v6485 = vunpack.c.h.b16 %v6119
        %v6486 = vunpack.c.l.b16 %v6120
        %v6487 = vunpack.c.h.b16 %v6120
        %v6488 = vunpack.c.l.b16 %v6121
        %v6489 = vunpack.c.h.b16 %v6121
        %v6490 = vunpack.c.l.b16 %v6122
        %v6491 = vunpack.c.h.b16 %v6122
        %v6492 = vunpack.c.l.b16 %v6123
        %v6493 = vunpack.c.h.b16 %v6123
        %v6494 = vunpack.c.l.b16 %v6124
        %v6495 = vunpack.c.h.b16 %v6124
        %v6496 = vunpack.c.l.b16 %v6125
        %v6497 = vunpack.c.h.b16 %v6125
        %v6498 = vunpack.c.l.b16 %v6126
        %v6499 = vunpack.c.h.b16 %v6126
        %v6500 = vunpack.c.l.b16 %v6127
        %v6501 = vunpack.c.h.b16 %v6127
        %v6502 = vunpack.c.l.b16 %v6128
        %v6503 = vunpack.c.h.b16 %v6128
        %v6504 = vunpack.c.l.b16 %v6129
        %v6505 = vunpack.c.h.b16 %v6129
        %v6506 = vunpack.c.l.b16 %v6130
        %v6507 = vunpack.c.h.b16 %v6130
        %v6508 = vunpack.c.l.b16 %v6131
        %v6509 = vunpack.c.h.b16 %v6131
        %v6510 = vunpack.c.l.b16 %v6132
        %v6511 = vunpack.c.h.b16 %v6132
        %v6512 = vunpack.c.l.b16 %v6133
        %v6513 = vunpack.c.h.b16 %v6133
        %v6514 = vunpack.c.l.b16 %v6134
        %v6515 = vunpack.c.h.b16 %v6134
        %v6516 = vunpack.c.l.b16 %v6135
        %v6517 = vunpack.c.h.b16 %v6135
        %v6518 = vunpack.c.l.b16 %v6136
        %v6519 = vunpack.c.h.b16 %v6136
        %v6520 = vunpack.c.l.b16 %v6137
        %v6521 = vunpack.c.h.b16 %v6137
        %v6522 = vunpack.c.l.b16 %v6138
        %v6523 = vunpack.c.h.b16 %v6138
        %v6524 = vunpack.c.l.b16 %v6139
        %v6525 = vunpack.c.h.b16 %v6139
        %v6526 = vunpack.c.l.b16 %v6140
        %v6527 = vunpack.c.h.b16 %v6140
        %v6528 = vunpack.c.l.b16 %v6141
        %v6529 = vunpack.c.h.b16 %v6141
        %v6530 = vunpack.c.l.b16 %v6142
        %v6531 = vunpack.c.h.b16 %v6142
        %v6532 = vunpack.c.l.b16 %v6143
        %v6533 = vunpack.c.h.b16 %v6143
        %v6534 = vunpack.c.l.b16 %v6144
        %v6535 = vunpack.c.h.b16 %v6144
        %v6536 = vunpack.c.l.b16 %v6145
        %v6537 = vunpack.c.h.b16 %v6145
        %v6538 = vunpack.c.l.b16 %v6146
        %v6539 = vunpack.c.h.b16 %v6146
        %v6540 = vunpack.c.l.b16 %v6147
        %v6541 = vunpack.c.h.b16 %v6147
        %v6542 = vunpack.c.l.b16 %v6148
        %v6543 = vunpack.c.h.b16 %v6148
        %v6544 = vunpack.c.l.b16 %v6149
        %v6545 = vunpack.c.h.b16 %v6149
        %v6546 = vunpack.c.l.b16 %v6150
        %v6547 = vunpack.c.h.b16 %v6150
        %v6548 = vunpack.c.l.b16 %v6151
        %v6549 = vunpack.c.h.b16 %v6151
        %v6550 = vunpack.c.l.b16 %v6152
        %v6551 = vunpack.c.h.b16 %v6152
        %v6552 = vunpack.c.l.b16 %v6153
        %v6553 = vunpack.c.h.b16 %v6153
        %v6554 = vunpack.c.l.b16 %v6154
        %v6555 = vunpack.c.h.b16 %v6154
        %v6556 = vunpack.c.l.b16 %v6155
        %v6557 = vunpack.c.h.b16 %v6155
        %v6558 = vunpack.c.l.b16 %v6156
        %v6559 = vunpack.c.h.b16 %v6156
        %v6560 = vunpack.c.l.b16 %v6157
        %v6561 = vunpack.c.h.b16 %v6157
        %v6562 = vunpack.c.l.b16 %v6158
        %v6563 = vunpack.c.h.b16 %v6158
        %v6564 = vunpack.c.l.b16 %v6159
        %v6565 = vunpack.c.h.b16 %v6159
        %v6566 = vunpack.c.l.b16 %v6160
        %v6567 = vunpack.c.h.b16 %v6160
        %v6568 = vunpack.c.l.b16 %v6161
        %v6569 = vunpack.c.h.b16 %v6161
        %v6570 = vunpack.c.l.b16 %v6162
        %v6571 = vunpack.c.h.b16 %v6162
        %v6572 = vunpack.c.l.b16 %v6163
        %v6573 = vunpack.c.h.b16 %v6163
        %v6574 = vunpack.c.l.b16 %v6164
        %v6575 = vunpack.c.h.b16 %v6164
        %v6576 = vunpack.c.l.b16 %v6165
        %v6577 = vunpack.c.h.b16 %v6165
        %v6578 = vunpack.c.l.b16 %v6166
        %v6579 = vunpack.c.h.b16 %v6166
        %v6580 = vunpack.c.l.b16 %v6167
        %v6581 = vunpack.c.h.b16 %v6167
        %v6582 = vunpack.c.l.b16 %v6168
        %v6583 = vunpack.c.h.b16 %v6168
        %v6584 = vunpack.c.l.b16 %v6169
        %v6585 = vunpack.c.h.b16 %v6169
        %v6586 = vpack.c.b16 %v6462, %v6458
        %v6587 = vpack.c.b16 %v6463, %v6459
        %v6588 = vpack.c.b16 %v6464, %v6460
        %v6589 = vpack.c.b16 %v6465, %v6461
        %v6590 = vpack.c.b16 %v6470, %v6466
        %v6591 = vpack.c.b16 %v6471, %v6467
        %v6592 = vpack.c.b16 %v6472, %v6468
        %v6593 = vpack.c.b16 %v6473, %v6469
        %v6594 = vpack.c.b16 %v6478, %v6474
        %v6595 = vpack.c.b16 %v6479, %v6475
        %v6596 = vpack.c.b16 %v6480, %v6476
        %v6597 = vpack.c.b16 %v6481, %v6477
        %v6598 = vpack.c.b16 %v6486, %v6482
        %v6599 = vpack.c.b16 %v6487, %v6483
        %v6600 = vpack.c.b16 %v6488, %v6484
        %v6601 = vpack.c.b16 %v6489, %v6485
        %v6602 = vpack.c.b16 %v6494, %v6490
        %v6603 = vpack.c.b16 %v6495, %v6491
        %v6604 = vpack.c.b16 %v6496, %v6492
        %v6605 = vpack.c.b16 %v6497, %v6493
        %v6606 = vpack.c.b16 %v6502, %v6498
        %v6607 = vpack.c.b16 %v6503, %v6499
        %v6608 = vpack.c.b16 %v6504, %v6500
        %v6609 = vpack.c.b16 %v6505, %v6501
        %v6610 = vpack.c.b16 %v6510, %v6506
        %v6611 = vpack.c.b16 %v6511, %v6507
        %v6612 = vpack.c.b16 %v6512, %v6508
        %v6613 = vpack.c.b16 %v6513, %v6509
        %v6614 = vpack.c.b16 %v6518, %v6514
        %v6615 = vpack.c.b16 %v6519, %v6515
        %v6616 = vpack.c.b16 %v6520, %v6516
        %v6617 = vpack.c.b16 %v6521, %v6517
        %v6618 = vpack.c.b16 %v6526, %v6522
        %v6619 = vpack.c.b16 %v6527, %v6523
        %v6620 = vpack.c.b16 %v6528, %v6524
        %v6621 = vpack.c.b16 %v6529, %v6525
        %v6622 = vpack.c.b16 %v6534, %v6530
        %v6623 = vpack.c.b16 %v6535, %v6531
        %v6624 = vpack.c.b16 %v6536, %v6532
        %v6625 = vpack.c.b16 %v6537, %v6533
        %v6626 = vpack.c.b16 %v6542, %v6538
        %v6627 = vpack.c.b16 %v6543, %v6539
        %v6628 = vpack.c.b16 %v6544, %v6540
        %v6629 = vpack.c.b16 %v6545, %v6541
        %v6630 = vpack.c.b16 %v6550, %v6546
        %v6631 = vpack.c.b16 %v6551, %v6547
        %v6632 = vpack.c.b16 %v6552, %v6548
        %v6633 = vpack.c.b16 %v6553, %v6549
        %v6634 = vpack.c.b16 %v6558, %v6554
        %v6635 = vpack.c.b16 %v6559, %v6555
        %v6636 = vpack.c.b16 %v6560, %v6556
        %v6637 = vpack.c.b16 %v6561, %v6557
        %v6638 = vpack.c.b16 %v6566, %v6562
        %v6639 = vpack.c.b16 %v6567, %v6563
        %v6640 = vpack.c.b16 %v6568, %v6564
        %v6641 = vpack.c.b16 %v6569, %v6565
        %v6642 = vpack.c.b16 %v6574, %v6570
        %v6643 = vpack.c.b16 %v6575, %v6571
        %v6644 = vpack.c.b16 %v6576, %v6572
        %v6645 = vpack.c.b16 %v6577, %v6573
        %v6646 = vpack.c.b16 %v6582, %v6578
        %v6647 = vpack.c.b16 %v6583, %v6579
        %v6648 = vpack.c.b16 %v6584, %v6580
        %v6649 = vpack.c.b16 %v6585, %v6581
        %6714 = vmatprep.subr.bf16.mxu0 0
        %6715 = vmatpush1.bf16.msra.mxu0 %v6177
        %6716 = vmatprep.subr.bf16.mxu0 0
        %6717 = vmatpush1.bf16.msra.mxu0 %v6176
        %6718 = vmatprep.subr.bf16.mxu0 0
        %6719 = vmatpush1.bf16.msra.mxu0 %v6175
        %6720 = vmatprep.subr.bf16.mxu0 0
        %6721 = vmatpush1.bf16.msra.mxu0 %v6174
        %6722 = vmatprep.subr.bf16.mxu0 0
        %6723 = vmatpush1.bf16.msra.mxu0 %v6173
        %6724 = vmatprep.subr.bf16.mxu0 0
        %6725 = vmatpush1.bf16.msra.mxu0 %v6172
        %6726 = vmatprep.subr.bf16.mxu0 0
        %6727 = vmatpush1.bf16.msra.mxu0 %v6171
        %6728 = vmatprep.subr.bf16.mxu0 0
        %6729 = vmatpush1.bf16.msra.mxu0 %v6170
        %6730 = vmatprep.subr.bf16.mxu0 0
        %6731 = vmatpush2.bf16.msra.mxu0 %v6185
        %6732 = vmatprep.subr.bf16.mxu0 0
        %6733 = vmatpush2.bf16.msra.mxu0 %v6184
        %6734 = vmatprep.subr.bf16.mxu0 0
        %6735 = vmatpush2.bf16.msra.mxu0 %v6183
        %6736 = vmatprep.subr.bf16.mxu0 0
        %6737 = vmatpush2.bf16.msra.mxu0 %v6182
        %6738 = vmatprep.subr.bf16.mxu0 0
        %6739 = vmatpush2.bf16.msra.mxu0 %v6181
        %6740 = vmatprep.subr.bf16.mxu0 0
        %6741 = vmatpush2.bf16.msra.mxu0 %v6180
        %6742 = vmatprep.subr.bf16.mxu0 0
        %6743 = vmatpush2.bf16.msra.mxu0 %v6179
        %6744 = vmatprep.subr.bf16.mxu0 0
        %6745 = vmatpush2.bf16.msra.mxu0 %v6178
        %6746 = vmatprep.mubr.bf16.mxu0 %v6587
        %6747 = vmatmul.mubr.bf16.gmra.mxu0 %v6586
        %v6748 = vpop.f32.mrf.mxu0
        %v6749 = vadd.f32 %v6237, %v6748
        %v6750 = vpop.f32.mrf.mxu0
        %v6751 = vpop.f32.mrf.mxu0
        %v6752 = vadd.f32 %v6242, %v6751
        %v6753 = vpop.f32.mrf.mxu0
        %6754 = vmatprep.mubr.bf16.mxu0 %v6591
        %6755 = vmatmul.mubr.bf16.gmra.mxu0 %v6590
        %v6756 = vpop.f32.mrf.mxu0
        %v6757 = vadd.f32 %v6247, %v6756
        %v6758 = vpop.f32.mrf.mxu0
        %v6759 = vpop.f32.mrf.mxu0
        %v6760 = vadd.f32 %v6252, %v6759
        %v6761 = vpop.f32.mrf.mxu0
        %6762 = vmatprep.mubr.bf16.mxu0 %v6595
        %6763 = vmatmul.mubr.bf16.gmra.mxu0 %v6594
        %v6764 = vpop.f32.mrf.mxu0
        %v6765 = vadd.f32 %v6257, %v6764
        %v6766 = vpop.f32.mrf.mxu0
        %v6767 = vpop.f32.mrf.mxu0
        %v6768 = vadd.f32 %v6262, %v6767
        %v6769 = vpop.f32.mrf.mxu0
        %6770 = vmatprep.mubr.bf16.mxu0 %v6599
        %6771 = vmatmul.mubr.bf16.gmra.mxu0 %v6598
        %v6772 = vpop.f32.mrf.mxu0
        %v6773 = vadd.f32 %v6267, %v6772
        %v6774 = vpop.f32.mrf.mxu0
        %v6775 = vpop.f32.mrf.mxu0
        %v6776 = vadd.f32 %v6272, %v6775
        %v6777 = vpop.f32.mrf.mxu0
        %6778 = vmatprep.mubr.bf16.mxu0 %v6603
        %6779 = vmatmul.mubr.bf16.gmra.mxu0 %v6602
        %v6780 = vpop.f32.mrf.mxu0
        %v6781 = vadd.f32 %v6277, %v6780
        %v6782 = vpop.f32.mrf.mxu0
        %v6783 = vpop.f32.mrf.mxu0
        %v6784 = vadd.f32 %v6282, %v6783
        %v6785 = vpop.f32.mrf.mxu0
        %6786 = vmatprep.mubr.bf16.mxu0 %v6607
        %6787 = vmatmul.mubr.bf16.gmra.mxu0 %v6606
        %v6788 = vpop.f32.mrf.mxu0
        %v6789 = vadd.f32 %v6287, %v6788
        %v6790 = vpop.f32.mrf.mxu0
        %v6791 = vpop.f32.mrf.mxu0
        %v6792 = vadd.f32 %v6292, %v6791
        %v6793 = vpop.f32.mrf.mxu0
        %6794 = vmatprep.mubr.bf16.mxu0 %v6611
        %6795 = vmatmul.mubr.bf16.gmra.mxu0 %v6610
        %v6796 = vpop.f32.mrf.mxu0
        %v6797 = vadd.f32 %v6297, %v6796
        %v6798 = vpop.f32.mrf.mxu0
        %v6799 = vpop.f32.mrf.mxu0
        %v6800 = vadd.f32 %v6302, %v6799
        %v6801 = vpop.f32.mrf.mxu0
        %6802 = vmatprep.mubr.bf16.mxu0 %v6615
        %6803 = vmatmul.mubr.bf16.gmra.mxu0 %v6614
        %v6804 = vpop.f32.mrf.mxu0
        %v6805 = vadd.f32 %v6307, %v6804
        %v6806 = vpop.f32.mrf.mxu0
        %v6807 = vpop.f32.mrf.mxu0
        %v6808 = vadd.f32 %v6312, %v6807
        %v6809 = vpop.f32.mrf.mxu0
        %6810 = vmatprep.mubr.bf16.mxu0 %v6619
        %6811 = vmatmul.mubr.bf16.gmra.mxu0 %v6618
        %v6812 = vpop.f32.mrf.mxu0
        %v6813 = vadd.f32 %v6317, %v6812
        %v6814 = vpop.f32.mrf.mxu0
        %v6815 = vpop.f32.mrf.mxu0
        %v6816 = vadd.f32 %v6322, %v6815
        %v6817 = vpop.f32.mrf.mxu0
        %6818 = vmatprep.mubr.bf16.mxu0 %v6623
        %6819 = vmatmul.mubr.bf16.gmra.mxu0 %v6622
        %v6820 = vpop.f32.mrf.mxu0
        %v6821 = vadd.f32 %v6327, %v6820
        %v6822 = vpop.f32.mrf.mxu0
        %v6823 = vpop.f32.mrf.mxu0
        %v6824 = vadd.f32 %v6332, %v6823
        %v6825 = vpop.f32.mrf.mxu0
        %6826 = vmatprep.mubr.bf16.mxu0 %v6627
        %6827 = vmatmul.mubr.bf16.gmra.mxu0 %v6626
        %v6828 = vpop.f32.mrf.mxu0
        %v6829 = vadd.f32 %v6337, %v6828
        %v6830 = vpop.f32.mrf.mxu0
        %v6831 = vpop.f32.mrf.mxu0
        %v6832 = vadd.f32 %v6342, %v6831
        %v6833 = vpop.f32.mrf.mxu0
        %6834 = vmatprep.mubr.bf16.mxu0 %v6631
        %6835 = vmatmul.mubr.bf16.gmra.mxu0 %v6630
        %v6836 = vpop.f32.mrf.mxu0
        %v6837 = vadd.f32 %v6347, %v6836
        %v6838 = vpop.f32.mrf.mxu0
        %v6839 = vpop.f32.mrf.mxu0
        %v6840 = vadd.f32 %v6352, %v6839
        %v6841 = vpop.f32.mrf.mxu0
        %6842 = vmatprep.mubr.bf16.mxu0 %v6635
        %6843 = vmatmul.mubr.bf16.gmra.mxu0 %v6634
        %v6844 = vpop.f32.mrf.mxu0
        %v6845 = vadd.f32 %v6357, %v6844
        %v6846 = vpop.f32.mrf.mxu0
        %v6847 = vpop.f32.mrf.mxu0
        %v6848 = vadd.f32 %v6362, %v6847
        %v6849 = vpop.f32.mrf.mxu0
        %6850 = vmatprep.mubr.bf16.mxu0 %v6639
        %6851 = vmatmul.mubr.bf16.gmra.mxu0 %v6638
        %v6852 = vpop.f32.mrf.mxu0
        %v6853 = vadd.f32 %v6367, %v6852
        %v6854 = vpop.f32.mrf.mxu0
        %v6855 = vpop.f32.mrf.mxu0
        %v6856 = vadd.f32 %v6372, %v6855
        %v6857 = vpop.f32.mrf.mxu0
        %6858 = vmatprep.mubr.bf16.mxu0 %v6643
        %6859 = vmatmul.mubr.bf16.gmra.mxu0 %v6642
        %v6860 = vpop.f32.mrf.mxu0
        %v6861 = vadd.f32 %v6377, %v6860
        %v6862 = vpop.f32.mrf.mxu0
        %v6863 = vpop.f32.mrf.mxu0
        %v6864 = vadd.f32 %v6382, %v6863
        %v6865 = vpop.f32.mrf.mxu0
        %6866 = vmatprep.mubr.bf16.mxu0 %v6647
        %6867 = vmatmul.mubr.bf16.gmra.mxu0 %v6646
        %v6868 = vpop.f32.mrf.mxu0
        %v6869 = vadd.f32 %v6387, %v6868
        %v6870 = vpop.f32.mrf.mxu0
        %v6871 = vpop.f32.mrf.mxu0
        %v6872 = vadd.f32 %v6392, %v6871
        %v6873 = vpop.f32.mrf.mxu0
        %6874 = vdwg.mxu0
        %6875 = vmatprep.subr.bf16.mxu0 0
        %6876 = vmatpush1.bf16.msra.mxu0 %v6193
        %6877 = vmatprep.subr.bf16.mxu0 0
        %6878 = vmatpush1.bf16.msra.mxu0 %v6192
        %6879 = vmatprep.subr.bf16.mxu0 0
        %6880 = vmatpush1.bf16.msra.mxu0 %v6191
        %6881 = vmatprep.subr.bf16.mxu0 0
        %6882 = vmatpush1.bf16.msra.mxu0 %v6190
        %6883 = vmatprep.subr.bf16.mxu0 0
        %6884 = vmatpush1.bf16.msra.mxu0 %v6189
        %6885 = vmatprep.subr.bf16.mxu0 0
        %6886 = vmatpush1.bf16.msra.mxu0 %v6188
        %6887 = vmatprep.subr.bf16.mxu0 0
        %6888 = vmatpush1.bf16.msra.mxu0 %v6187
        %6889 = vmatprep.subr.bf16.mxu0 0
        %6890 = vmatpush1.bf16.msra.mxu0 %v6186
        %6891 = vmatprep.subr.bf16.mxu0 0
        %6892 = vmatpush2.bf16.msra.mxu0 %v6201
        %6893 = vmatprep.subr.bf16.mxu0 0
        %6894 = vmatpush2.bf16.msra.mxu0 %v6200
        %6895 = vmatprep.subr.bf16.mxu0 0
        %6896 = vmatpush2.bf16.msra.mxu0 %v6199
        %6897 = vmatprep.subr.bf16.mxu0 0
        %6898 = vmatpush2.bf16.msra.mxu0 %v6198
        %6899 = vmatprep.subr.bf16.mxu0 0
        %6900 = vmatpush2.bf16.msra.mxu0 %v6197
        %6901 = vmatprep.subr.bf16.mxu0 0
        %6902 = vmatpush2.bf16.msra.mxu0 %v6196
        %6903 = vmatprep.subr.bf16.mxu0 0
        %6904 = vmatpush2.bf16.msra.mxu0 %v6195
        %6905 = vmatprep.subr.bf16.mxu0 0
        %6906 = vmatpush2.bf16.msra.mxu0 %v6194
        %6907 = vmatprep.mubr.bf16.mxu0 %v6589
        %6908 = vmatmul.mubr.bf16.gmra.mxu0 %v6588
        %v6909 = vpop.f32.mrf.mxu0
        %v6910 = vadd.f32 %v6749, %v6909
        %v6911 = vpop.f32.mrf.mxu0
        %v6912 = vpop.f32.mrf.mxu0
        %v6913 = vadd.f32 %v6752, %v6912
        %v6914 = vpop.f32.mrf.mxu0
        %6915 = vmatprep.mubr.bf16.mxu0 %v6593
        %6916 = vmatmul.mubr.bf16.gmra.mxu0 %v6592
        %v6917 = vpop.f32.mrf.mxu0
        %v6918 = vadd.f32 %v6757, %v6917
        %v6919 = vpop.f32.mrf.mxu0
        %v6920 = vpop.f32.mrf.mxu0
        %v6921 = vadd.f32 %v6760, %v6920
        %v6922 = vpop.f32.mrf.mxu0
        %6923 = vmatprep.mubr.bf16.mxu0 %v6597
        %6924 = vmatmul.mubr.bf16.gmra.mxu0 %v6596
        %v6925 = vpop.f32.mrf.mxu0
        %v6926 = vadd.f32 %v6765, %v6925
        %v6927 = vpop.f32.mrf.mxu0
        %v6928 = vpop.f32.mrf.mxu0
        %v6929 = vadd.f32 %v6768, %v6928
        %v6930 = vpop.f32.mrf.mxu0
        %6931 = vmatprep.mubr.bf16.mxu0 %v6601
        %6932 = vmatmul.mubr.bf16.gmra.mxu0 %v6600
        %v6933 = vpop.f32.mrf.mxu0
        %v6934 = vadd.f32 %v6773, %v6933
        %v6935 = vpop.f32.mrf.mxu0
        %v6936 = vpop.f32.mrf.mxu0
        %v6937 = vadd.f32 %v6776, %v6936
        %v6938 = vpop.f32.mrf.mxu0
        %6939 = vmatprep.mubr.bf16.mxu0 %v6605
        %6940 = vmatmul.mubr.bf16.gmra.mxu0 %v6604
        %v6941 = vpop.f32.mrf.mxu0
        %v6942 = vadd.f32 %v6781, %v6941
        %v6943 = vpop.f32.mrf.mxu0
        %v6944 = vpop.f32.mrf.mxu0
        %v6945 = vadd.f32 %v6784, %v6944
        %v6946 = vpop.f32.mrf.mxu0
        %6947 = vmatprep.mubr.bf16.mxu0 %v6609
        %6948 = vmatmul.mubr.bf16.gmra.mxu0 %v6608
        %v6949 = vpop.f32.mrf.mxu0
        %v6950 = vadd.f32 %v6789, %v6949
        %v6951 = vpop.f32.mrf.mxu0
        %v6952 = vpop.f32.mrf.mxu0
        %v6953 = vadd.f32 %v6792, %v6952
        %v6954 = vpop.f32.mrf.mxu0
        %6955 = vmatprep.mubr.bf16.mxu0 %v6613
        %6956 = vmatmul.mubr.bf16.gmra.mxu0 %v6612
        %v6957 = vpop.f32.mrf.mxu0
        %v6958 = vadd.f32 %v6797, %v6957
        %v6959 = vpop.f32.mrf.mxu0
        %v6960 = vpop.f32.mrf.mxu0
        %v6961 = vadd.f32 %v6800, %v6960
        %v6962 = vpop.f32.mrf.mxu0
        %6963 = vmatprep.mubr.bf16.mxu0 %v6617
        %6964 = vmatmul.mubr.bf16.gmra.mxu0 %v6616
        %v6965 = vpop.f32.mrf.mxu0
        %v6966 = vadd.f32 %v6805, %v6965
        %v6967 = vpop.f32.mrf.mxu0
        %v6968 = vpop.f32.mrf.mxu0
        %v6969 = vadd.f32 %v6808, %v6968
        %v6970 = vpop.f32.mrf.mxu0
        %6971 = vmatprep.mubr.bf16.mxu0 %v6621
        %6972 = vmatmul.mubr.bf16.gmra.mxu0 %v6620
        %v6973 = vpop.f32.mrf.mxu0
        %v6974 = vadd.f32 %v6813, %v6973
        %v6975 = vpop.f32.mrf.mxu0
        %v6976 = vpop.f32.mrf.mxu0
        %v6977 = vadd.f32 %v6816, %v6976
        %v6978 = vpop.f32.mrf.mxu0
        %6979 = vmatprep.mubr.bf16.mxu0 %v6625
        %6980 = vmatmul.mubr.bf16.gmra.mxu0 %v6624
        %v6981 = vpop.f32.mrf.mxu0
        %v6982 = vadd.f32 %v6821, %v6981
        %v6983 = vpop.f32.mrf.mxu0
        %v6984 = vpop.f32.mrf.mxu0
        %v6985 = vadd.f32 %v6824, %v6984
        %v6986 = vpop.f32.mrf.mxu0
        %6987 = vmatprep.mubr.bf16.mxu0 %v6629
        %6988 = vmatmul.mubr.bf16.gmra.mxu0 %v6628
        %v6989 = vpop.f32.mrf.mxu0
        %v6990 = vadd.f32 %v6829, %v6989
        %v6991 = vpop.f32.mrf.mxu0
        %v6992 = vpop.f32.mrf.mxu0
        %v6993 = vadd.f32 %v6832, %v6992
        %v6994 = vpop.f32.mrf.mxu0
        %6995 = vmatprep.mubr.bf16.mxu0 %v6633
        %6996 = vmatmul.mubr.bf16.gmra.mxu0 %v6632
        %v6997 = vpop.f32.mrf.mxu0
        %v6998 = vadd.f32 %v6837, %v6997
        %v6999 = vpop.f32.mrf.mxu0
        %v7000 = vpop.f32.mrf.mxu0
        %v7001 = vadd.f32 %v6840, %v7000
        %v7002 = vpop.f32.mrf.mxu0
        %7003 = vmatprep.mubr.bf16.mxu0 %v6637
        %7004 = vmatmul.mubr.bf16.gmra.mxu0 %v6636
        %v7005 = vpop.f32.mrf.mxu0
        %v7006 = vadd.f32 %v6845, %v7005
        %v7007 = vpop.f32.mrf.mxu0
        %v7008 = vpop.f32.mrf.mxu0
        %v7009 = vadd.f32 %v6848, %v7008
        %v7010 = vpop.f32.mrf.mxu0
        %7011 = vmatprep.mubr.bf16.mxu0 %v6641
        %7012 = vmatmul.mubr.bf16.gmra.mxu0 %v6640
        %v7013 = vpop.f32.mrf.mxu0
        %v7014 = vadd.f32 %v6853, %v7013
        %v7015 = vpop.f32.mrf.mxu0
        %v7016 = vpop.f32.mrf.mxu0
        %v7017 = vadd.f32 %v6856, %v7016
        %v7018 = vpop.f32.mrf.mxu0
        %7019 = vmatprep.mubr.bf16.mxu0 %v6645
        %7020 = vmatmul.mubr.bf16.gmra.mxu0 %v6644
        %v7021 = vpop.f32.mrf.mxu0
        %v7022 = vadd.f32 %v6861, %v7021
        %v7023 = vpop.f32.mrf.mxu0
        %v7024 = vpop.f32.mrf.mxu0
        %v7025 = vadd.f32 %v6864, %v7024
        %v7026 = vpop.f32.mrf.mxu0
        %7027 = vmatprep.mubr.bf16.mxu0 %v6649
        %7028 = vmatmul.mubr.bf16.gmra.mxu0 %v6648
        %v7029 = vpop.f32.mrf.mxu0
        %v7030 = vadd.f32 %v6869, %v7029
        %v7031 = vpop.f32.mrf.mxu0
        %v7032 = vpop.f32.mrf.mxu0
        %v7033 = vadd.f32 %v6872, %v7032
        %v7034 = vpop.f32.mrf.mxu0
        %7035 = vdwg.mxu0
        %vm7036 = vcmp.gt.f32.partialorder %v6910, 0.0
        %vm7037 = vcmp.gt.f32.partialorder %v6913, 0.0
        %vm7038 = vcmp.gt.f32.partialorder %v6918, 0.0
        %vm7039 = vcmp.gt.f32.partialorder %v6921, 0.0
        %vm7040 = vcmp.gt.f32.partialorder %v6926, 0.0
        %vm7041 = vcmp.gt.f32.partialorder %v6929, 0.0
        %vm7042 = vcmp.gt.f32.partialorder %v6934, 0.0
        %vm7043 = vcmp.gt.f32.partialorder %v6937, 0.0
        %vm7044 = vcmp.gt.f32.partialorder %v6942, 0.0
        %vm7045 = vcmp.gt.f32.partialorder %v6945, 0.0
        %vm7046 = vcmp.gt.f32.partialorder %v6950, 0.0
        %vm7047 = vcmp.gt.f32.partialorder %v6953, 0.0
        %vm7048 = vcmp.gt.f32.partialorder %v6958, 0.0
        %vm7049 = vcmp.gt.f32.partialorder %v6961, 0.0
        %vm7050 = vcmp.gt.f32.partialorder %v6966, 0.0
        %vm7051 = vcmp.gt.f32.partialorder %v6969, 0.0
        %vm7052 = vcmp.gt.f32.partialorder %v6974, 0.0
        %vm7053 = vcmp.gt.f32.partialorder %v6977, 0.0
        %vm7054 = vcmp.gt.f32.partialorder %v6982, 0.0
        %vm7055 = vcmp.gt.f32.partialorder %v6985, 0.0
        %vm7056 = vcmp.gt.f32.partialorder %v6990, 0.0
        %vm7057 = vcmp.gt.f32.partialorder %v6993, 0.0
        %vm7058 = vcmp.gt.f32.partialorder %v6998, 0.0
        %vm7059 = vcmp.gt.f32.partialorder %v7001, 0.0
        %vm7060 = vcmp.gt.f32.partialorder %v7006, 0.0
        %vm7061 = vcmp.gt.f32.partialorder %v7009, 0.0
        %vm7062 = vcmp.gt.f32.partialorder %v7014, 0.0
        %vm7063 = vcmp.gt.f32.partialorder %v7017, 0.0
        %vm7064 = vcmp.gt.f32.partialorder %v7022, 0.0
        %vm7065 = vcmp.gt.f32.partialorder %v7025, 0.0
        %vm7066 = vcmp.gt.f32.partialorder %v7030, 0.0
        %vm7067 = vcmp.gt.f32.partialorder %v7033, 0.0
        %v7068 = vmul.f32 %v6910, 0.2
        %v7069 = vmul.f32 %v6913, 0.2
        %v7070 = vmul.f32 %v6918, 0.2
        %v7071 = vmul.f32 %v6921, 0.2
        %v7072 = vmul.f32 %v6926, 0.2
        %v7073 = vmul.f32 %v6929, 0.2
        %v7074 = vmul.f32 %v6934, 0.2
        %v7075 = vmul.f32 %v6937, 0.2
        %v7076 = vmul.f32 %v6942, 0.2
        %v7077 = vmul.f32 %v6945, 0.2
        %v7078 = vmul.f32 %v6950, 0.2
        %v7079 = vmul.f32 %v6953, 0.2
        %v7080 = vmul.f32 %v6958, 0.2
        %v7081 = vmul.f32 %v6961, 0.2
        %v7082 = vmul.f32 %v6966, 0.2
        %v7083 = vmul.f32 %v6969, 0.2
        %v7084 = vmul.f32 %v6974, 0.2
        %v7085 = vmul.f32 %v6977, 0.2
        %v7086 = vmul.f32 %v6982, 0.2
        %v7087 = vmul.f32 %v6985, 0.2
        %v7088 = vmul.f32 %v6990, 0.2
        %v7089 = vmul.f32 %v6993, 0.2
        %v7090 = vmul.f32 %v6998, 0.2
        %v7091 = vmul.f32 %v7001, 0.2
        %v7092 = vmul.f32 %v7006, 0.2
        %v7093 = vmul.f32 %v7009, 0.2
        %v7094 = vmul.f32 %v7014, 0.2
        %v7095 = vmul.f32 %v7017, 0.2
        %v7096 = vmul.f32 %v7022, 0.2
        %v7097 = vmul.f32 %v7025, 0.2
        %v7098 = vmul.f32 %v7030, 0.2
        %v7099 = vmul.f32 %v7033, 0.2
        %v7100 = vsel %vm7036, %v6910, %v7068
        %v7101 = vsel %vm7037, %v6913, %v7069
        %v7102 = vsel %vm7038, %v6918, %v7070
        %v7103 = vsel %vm7039, %v6921, %v7071
        %v7104 = vsel %vm7040, %v6926, %v7072
        %v7105 = vsel %vm7041, %v6929, %v7073
        %v7106 = vsel %vm7042, %v6934, %v7074
        %v7107 = vsel %vm7043, %v6937, %v7075
        %v7108 = vsel %vm7044, %v6942, %v7076
        %v7109 = vsel %vm7045, %v6945, %v7077
        %v7110 = vsel %vm7046, %v6950, %v7078
        %v7111 = vsel %vm7047, %v6953, %v7079
        %v7112 = vsel %vm7048, %v6958, %v7080
        %v7113 = vsel %vm7049, %v6961, %v7081
        %v7114 = vsel %vm7050, %v6966, %v7082
        %v7115 = vsel %vm7051, %v6969, %v7083
        %v7116 = vsel %vm7052, %v6974, %v7084
        %v7117 = vsel %vm7053, %v6977, %v7085
        %v7118 = vsel %vm7054, %v6982, %v7086
        %v7119 = vsel %vm7055, %v6985, %v7087
        %v7120 = vsel %vm7056, %v6990, %v7088
        %v7121 = vsel %vm7057, %v6993, %v7089
        %v7122 = vsel %vm7058, %v6998, %v7090
        %v7123 = vsel %vm7059, %v7001, %v7091
        %v7124 = vsel %vm7060, %v7006, %v7092
        %v7125 = vsel %vm7061, %v7009, %v7093
        %v7126 = vsel %vm7062, %v7014, %v7094
        %v7127 = vsel %vm7063, %v7017, %v7095
        %v7128 = vsel %vm7064, %v7022, %v7096
        %v7129 = vsel %vm7065, %v7025, %v7097
        %v7130 = vsel %vm7066, %v7030, %v7098
        %v7131 = vsel %vm7067, %v7033, %v7099
        %v7132 = vld [vmem:[%s7] sm:$0xff]
        %v7133 = vld [vmem:[%s7 + $0x8] sm:$0xff]
        %v7134 = vld [vmem:[%s7 + $0x10] sm:$0xff]
        %v7135 = vld [vmem:[%s7 + $0x18] sm:$0xff]
        %v7136 = vld [vmem:[%s7 + $0x20] sm:$0xff]
        %v7137 = vld [vmem:[%s7 + $0x28] sm:$0xff]
        %v7138 = vld [vmem:[%s7 + $0x30] sm:$0xff]
        %v7139 = vld [vmem:[%s7 + $0x38] sm:$0xff]
        %v7140 = vld [vmem:[%s7 + $0x40] sm:$0xff]
        %v7141 = vld [vmem:[%s7 + $0x48] sm:$0xff]
        %v7142 = vld [vmem:[%s7 + $0x50] sm:$0xff]
        %v7143 = vld [vmem:[%s7 + $0x58] sm:$0xff]
        %v7144 = vld [vmem:[%s7 + $0x60] sm:$0xff]
        %v7145 = vld [vmem:[%s7 + $0x68] sm:$0xff]
        %v7146 = vld [vmem:[%s7 + $0x70] sm:$0xff]
        %v7147 = vld [vmem:[%s7 + $0x78] sm:$0xff]
        %v7148 = vld [vmem:[%s7 + $0x80] sm:$0xff]
        %v7149 = vld [vmem:[%s7 + $0x88] sm:$0xff]
        %v7150 = vld [vmem:[%s7 + $0x90] sm:$0xff]
        %v7151 = vld [vmem:[%s7 + $0x98] sm:$0xff]
        %v7152 = vld [vmem:[%s7 + $0xa0] sm:$0xff]
        %v7153 = vld [vmem:[%s7 + $0xa8] sm:$0xff]
        %v7154 = vld [vmem:[%s7 + $0xb0] sm:$0xff]
        %v7155 = vld [vmem:[%s7 + $0xb8] sm:$0xff]
        %v7156 = vld [vmem:[%s7 + $0xc0] sm:$0xff]
        %v7157 = vld [vmem:[%s7 + $0xc8] sm:$0xff]
        %v7158 = vld [vmem:[%s7 + $0xd0] sm:$0xff]
        %v7159 = vld [vmem:[%s7 + $0xd8] sm:$0xff]
        %v7160 = vld [vmem:[%s7 + $0xe0] sm:$0xff]
        %v7161 = vld [vmem:[%s7 + $0xe8] sm:$0xff]
        %v7162 = vld [vmem:[%s7 + $0xf0] sm:$0xff]
        %v7163 = vld [vmem:[%s7 + $0xf8] sm:$0xff]
        %7165 = vset.pattern.permute.xlu0 0
        %7166 = vperm.xlu0 %7165, %v7132
        %v7167 = vpop.permute.xlu0 %7166
        %7170 = vset.pattern.permute.xlu0 0
        %7171 = vperm.xlu0 %7170, %v7133
        %v7172 = vpop.permute.xlu0 %7171
        %7175 = vset.pattern.permute.xlu0 0
        %7176 = vperm.xlu0 %7175, %v7134
        %v7177 = vpop.permute.xlu0 %7176
        %7180 = vset.pattern.permute.xlu0 0
        %7181 = vperm.xlu0 %7180, %v7135
        %v7182 = vpop.permute.xlu0 %7181
        %7185 = vset.pattern.permute.xlu0 0
        %7186 = vperm.xlu0 %7185, %v7136
        %v7187 = vpop.permute.xlu0 %7186
        %7190 = vset.pattern.permute.xlu0 0
        %7191 = vperm.xlu0 %7190, %v7137
        %v7192 = vpop.permute.xlu0 %7191
        %7195 = vset.pattern.permute.xlu0 0
        %7196 = vperm.xlu0 %7195, %v7138
        %v7197 = vpop.permute.xlu0 %7196
        %7200 = vset.pattern.permute.xlu0 0
        %7201 = vperm.xlu0 %7200, %v7139
        %v7202 = vpop.permute.xlu0 %7201
        %7205 = vset.pattern.permute.xlu0 0
        %7206 = vperm.xlu0 %7205, %v7140
        %v7207 = vpop.permute.xlu0 %7206
        %7210 = vset.pattern.permute.xlu0 0
        %7211 = vperm.xlu0 %7210, %v7141
        %v7212 = vpop.permute.xlu0 %7211
        %7215 = vset.pattern.permute.xlu0 0
        %7216 = vperm.xlu0 %7215, %v7142
        %v7217 = vpop.permute.xlu0 %7216
        %7220 = vset.pattern.permute.xlu0 0
        %7221 = vperm.xlu0 %7220, %v7143
        %v7222 = vpop.permute.xlu0 %7221
        %7225 = vset.pattern.permute.xlu0 0
        %7226 = vperm.xlu0 %7225, %v7144
        %v7227 = vpop.permute.xlu0 %7226
        %7230 = vset.pattern.permute.xlu0 0
        %7231 = vperm.xlu0 %7230, %v7145
        %v7232 = vpop.permute.xlu0 %7231
        %7235 = vset.pattern.permute.xlu0 0
        %7236 = vperm.xlu0 %7235, %v7146
        %v7237 = vpop.permute.xlu0 %7236
        %7240 = vset.pattern.permute.xlu0 0
        %7241 = vperm.xlu0 %7240, %v7147
        %v7242 = vpop.permute.xlu0 %7241
        %7245 = vset.pattern.permute.xlu0 0
        %7246 = vperm.xlu0 %7245, %v7148
        %v7247 = vpop.permute.xlu0 %7246
        %7250 = vset.pattern.permute.xlu0 0
        %7251 = vperm.xlu0 %7250, %v7149
        %v7252 = vpop.permute.xlu0 %7251
        %7255 = vset.pattern.permute.xlu0 0
        %7256 = vperm.xlu0 %7255, %v7150
        %v7257 = vpop.permute.xlu0 %7256
        %7260 = vset.pattern.permute.xlu0 0
        %7261 = vperm.xlu0 %7260, %v7151
        %v7262 = vpop.permute.xlu0 %7261
        %7265 = vset.pattern.permute.xlu0 0
        %7266 = vperm.xlu0 %7265, %v7152
        %v7267 = vpop.permute.xlu0 %7266
        %7270 = vset.pattern.permute.xlu0 0
        %7271 = vperm.xlu0 %7270, %v7153
        %v7272 = vpop.permute.xlu0 %7271
        %7275 = vset.pattern.permute.xlu0 0
        %7276 = vperm.xlu0 %7275, %v7154
        %v7277 = vpop.permute.xlu0 %7276
        %7280 = vset.pattern.permute.xlu0 0
        %7281 = vperm.xlu0 %7280, %v7155
        %v7282 = vpop.permute.xlu0 %7281
        %7285 = vset.pattern.permute.xlu0 0
        %7286 = vperm.xlu0 %7285, %v7156
        %v7287 = vpop.permute.xlu0 %7286
        %7290 = vset.pattern.permute.xlu0 0
        %7291 = vperm.xlu0 %7290, %v7157
        %v7292 = vpop.permute.xlu0 %7291
        %7295 = vset.pattern.permute.xlu0 0
        %7296 = vperm.xlu0 %7295, %v7158
        %v7297 = vpop.permute.xlu0 %7296
        %7300 = vset.pattern.permute.xlu0 0
        %7301 = vperm.xlu0 %7300, %v7159
        %v7302 = vpop.permute.xlu0 %7301
        %7305 = vset.pattern.permute.xlu0 0
        %7306 = vperm.xlu0 %7305, %v7160
        %v7307 = vpop.permute.xlu0 %7306
        %7310 = vset.pattern.permute.xlu0 0
        %7311 = vperm.xlu0 %7310, %v7161
        %v7312 = vpop.permute.xlu0 %7311
        %7315 = vset.pattern.permute.xlu0 0
        %7316 = vperm.xlu0 %7315, %v7162
        %v7317 = vpop.permute.xlu0 %7316
        %7320 = vset.pattern.permute.xlu0 0
        %7321 = vperm.xlu0 %7320, %v7163
        %v7322 = vpop.permute.xlu0 %7321
        %v7324 = vmul.f32 %v7100, %v7167
        %v7325 = vmul.f32 %v7101, %v7172
        %v7326 = vmul.f32 %v7102, %v7177
        %v7327 = vmul.f32 %v7103, %v7182
        %v7328 = vmul.f32 %v7104, %v7187
        %v7329 = vmul.f32 %v7105, %v7192
        %v7330 = vmul.f32 %v7106, %v7197
        %v7331 = vmul.f32 %v7107, %v7202
        %v7332 = vmul.f32 %v7108, %v7207
        %v7333 = vmul.f32 %v7109, %v7212
        %v7334 = vmul.f32 %v7110, %v7217
        %v7335 = vmul.f32 %v7111, %v7222
        %v7336 = vmul.f32 %v7112, %v7227
        %v7337 = vmul.f32 %v7113, %v7232
        %v7338 = vmul.f32 %v7114, %v7237
        %v7339 = vmul.f32 %v7115, %v7242
        %v7340 = vmul.f32 %v7116, %v7247
        %v7341 = vmul.f32 %v7117, %v7252
        %v7342 = vmul.f32 %v7118, %v7257
        %v7343 = vmul.f32 %v7119, %v7262
        %v7344 = vmul.f32 %v7120, %v7267
        %v7345 = vmul.f32 %v7121, %v7272
        %v7346 = vmul.f32 %v7122, %v7277
        %v7347 = vmul.f32 %v7123, %v7282
        %v7348 = vmul.f32 %v7124, %v7287
        %v7349 = vmul.f32 %v7125, %v7292
        %v7350 = vmul.f32 %v7126, %v7297
        %v7351 = vmul.f32 %v7127, %v7302
        %v7352 = vmul.f32 %v7128, %v7307
        %v7353 = vmul.f32 %v7129, %v7312
        %v7354 = vmul.f32 %v7130, %v7317
        %v7355 = vmul.f32 %v7131, %v7322
        %v7356 = vadd.f32 %v7324, %v7325
        %v7357 = vadd.f32 %v7356, %v7326
        %v7358 = vadd.f32 %v7357, %v7327
        %v7359 = vadd.f32 %v7358, %v7328
        %v7360 = vadd.f32 %v7359, %v7329
        %v7361 = vadd.f32 %v7360, %v7330
        %v7362 = vadd.f32 %v7361, %v7331
        %v7363 = vadd.f32 %v7362, %v7332
        %v7364 = vadd.f32 %v7363, %v7333
        %v7365 = vadd.f32 %v7364, %v7334
        %v7366 = vadd.f32 %v7365, %v7335
        %v7367 = vadd.f32 %v7366, %v7336
        %v7368 = vadd.f32 %v7367, %v7337
        %v7369 = vadd.f32 %v7368, %v7338
        %v7370 = vadd.f32 %v7369, %v7339
        %v7371 = vadd.f32 %v7370, %v7340
        %v7372 = vadd.f32 %v7371, %v7341
        %v7373 = vadd.f32 %v7372, %v7342
        %v7374 = vadd.f32 %v7373, %v7343
        %v7375 = vadd.f32 %v7374, %v7344
        %v7376 = vadd.f32 %v7375, %v7345
        %v7377 = vadd.f32 %v7376, %v7346
        %v7378 = vadd.f32 %v7377, %v7347
        %v7379 = vadd.f32 %v7378, %v7348
        %v7380 = vadd.f32 %v7379, %v7349
        %v7381 = vadd.f32 %v7380, %v7350
        %v7382 = vadd.f32 %v7381, %v7351
        %v7383 = vadd.f32 %v7382, %v7352
        %v7384 = vadd.f32 %v7383, %v7353
        %v7385 = vadd.f32 %v7384, %v7354
        %v7386 = vadd.f32 %v7385, %v7355
        %v7387 = vrot.slane %v7386, 4
        %v7388 = vadd.f32 %v7386, %v7387
        %v7389 = vrot.slane %v7388, 2
        %v7390 = vadd.f32 %v7388, %v7389
        %v7391 = vrot.slane %v7390, 1
        %v7392 = vadd.f32 %v7390, %v7391
        %v7393 = vld [vmem:[#allocation2] sm:$0x1]
        %7395 = vset.pattern.permute.xlu0 0
        %7396 = vperm.xlu0 %7395, %v7393
        %v7397 = vpop.permute.xlu0 %7396
        %v7399 = vlaneseq
        %v7400 = vshrl.u32 %v7399, 7
        %v7401 = vsub.s32 0, %v7400
        %v7402 = vrot.slane %v7397, %v7401
        %v7403 = vadd.f32 %v7392, %v7402
        %v7404 = vsub.f32 0.0, %v7403
        %v7405 = vmul.f32 %v7404, 1.442695
        %v7406 = vpow.pop %v7405
        %v7407 = vadd.f32 %v7406, 1.0
        %v7408 = vrcp.pop %v7407
        %7409 = vst [vmem:[%s402] sm:$0x1] %v7408
        %s7410 = sand.u32 %s227, 1
        %s7411 = scalar_lea.sflag [#allocation5], %s7410
        %s7412 = sand.u32 %s227, 1
        %s7413 = scalar_lea.vmem [#allocation4], %s7412
        // Predicated region
        $region98: #{tpu_custom_call.1} parent=92 // pred_check
          %p7414 = pneg %p237
        $region99: #{tpu_custom_call.1} parent=92 // pred_check_branch
          %7416 = sbr.rel (%p7414) target = $region101
        $region100: #{tpu_custom_call.1} parent=92 // pred_region
          %s7418 = ssub.s32 16, 16
          %7419 = vsyncadd %s7411, %s7418
          %s7420 = smul.addr %s25, 16
          %s7421 = scalar_lea.hbm %s9, %s7420
          %s7423 = sshll.u32 %s7413, 4
          %s7424 = int_to_ptr.vmem [resolvable:$true] %s7423
          %7426 = dma.vmem_to_hbm [thread:$0]  %s7424, 16, %s7421, %s7411
        $region101: #{tpu_custom_call.1} parent=92 // pred_fallthru
          _
      $region93: #{tpu_custom_call.1} parent=5 // pred_fallthru
        _
      %p7427 = scmp.le.s32.totalorder 2, %s20
      // Predicated region
      $region102: #{tpu_custom_call.1} parent=5 // pred_check
        %p7428 = pneg %p7427
      $region103: #{tpu_custom_call.1} parent=5 // pred_check_branch
        %7430 = sbr.rel (%p7428) target = $region105
      $region104: #{tpu_custom_call.1} parent=5 // pred_region
        %s7431 = ssub.s32 %s20, 2
        // Predicated region
        $region106: #{tpu_custom_call.1} parent=104 // pred_check
          %p7432 = pneg %p243
        $region107: #{tpu_custom_call.1} parent=104 // pred_check_branch
          %7434 = sbr.rel (%p7432) target = $region109
        $region108: #{tpu_custom_call.1} parent=104 // pred_region
          %s7435 = sand.u32 %s228, 1
          %s7436 = scalar_lea.sflag [#allocation5], %s7435
          %s7437 = sand.u32 %s228, 1
          %s7438 = scalar_lea.vmem [#allocation4], %s7437
          %7439 = dma.done %s7436, 16
        $region109: #{tpu_custom_call.1} parent=104 // pred_fallthru
          _
      $region105: #{tpu_custom_call.1} parent=5 // pred_fallthru
        _
    $region6: #{tpu_custom_call.1} parent=1 // loop_footer
      %s24 = sadd.s32 1, %s20
    $region7: #{tpu_custom_call.1} parent=1 // loop_footer_branch
      %19 = sbr.rel target = $region3
    $region8: #{tpu_custom_call.1} parent=1 // loop_exit
      _
    %7440 = vsyncpa [#allocation5], 1
    %s7441 = scalar_lea.sflag [#allocation5], 1
    %7442 = vsyncpa %s7441, 1

</llo_original>
